<compile_context>
chip_gen: v5e
topology: v5e:2x2
jax: 0.10.0
libtpu: 0.0.40
codegen_flags: <defaults>
</compile_context>

<pallas_src>
import functools
import math

import jax
import jax.numpy as jnp
from jax import lax
from jax.experimental import pallas as pl
from jax.experimental.pallas import tpu as pltpu

_VMEM = pl.BlockSpec(memory_space=pltpu.MemorySpace.VMEM)

_NEG_BIG = -1e30                 # stand-in for -inf in masked max reductions
_MXU_DTYPE = jnp.bfloat16        # MXU operand dtype (f32 accumulation); adj is {0,1} -> exact
_NORM_COLS = 12                  # NormalizeFeaturesV2 normalizes x[:, :12]


# ---------------------------------------------------------------- kernel ----

def _sage_conv(adj, h, active_lowp, wl, wr, bl):
    """PyG SAGEConv (mean aggr): lin_l(mean_{j->i, j active} h_j) + lin_r(h_i) + bias.

    `h` is already zeroed on inactive rows, so adj @ h only aggregates active sources and the
    masked adjacency never has to be materialized; the active-neighbour count comes from a single
    MXU matvec (deg = adj @ active) instead of an XLU row-reduce over a masked copy of adj.
    """
    f32 = jnp.float32
    deg = jnp.dot(adj, active_lowp, preferred_element_type=f32)            # (N, 1)
    inv_deg = 1.0 / jnp.maximum(deg, 1.0)                                  # deg==0 -> agg row is 0 anyway
    agg = jnp.dot(adj, h.astype(_MXU_DTYPE), preferred_element_type=f32) * inv_deg
    return (jnp.dot(agg.astype(_MXU_DTYPE), wl.astype(_MXU_DTYPE), preferred_element_type=f32)
            + jnp.dot(h.astype(_MXU_DTYPE), wr.astype(_MXU_DTYPE), preferred_element_type=f32)
            + bl)


def _graphnet_kernel(
    x_ref, adj_ref,
    c1l_ref, c1r_ref, c1b_ref, p1l_ref, p1r_ref, p1b_ref,
    c2l_ref, c2r_ref, c2b_ref, p2l_ref, p2r_ref, p2b_ref,
    c3l_ref, c3r_ref, c3b_ref, p3l_ref, p3r_ref, p3b_ref,
    w1_ref, b1_ref, w2_ref, b2_ref, w3_ref, b3_ref,
    feat_ref, out_ref,
    *, num_graphs, nodes_per_graph, ratio):
    f32 = jnp.float32
    n = num_graphs * nodes_per_graph
    nhid = c1l_ref.shape[1]

    x = x_ref[...]                      # (N, F) f32 node features
    adj = adj_ref[...]                  # (N, N) bf16, adj[target, source] in {0, 1}

    # --- NormalizeFeaturesV2: x[:, :12] /= per-column max (no zero-guard: parity w/ reference).
    # One (1, F) reciprocal row + multiply instead of dividing the whole (N, F) tile.
    colmax = jnp.max(x, axis=0, keepdims=True)
    inv_colmax = 1.0 / colmax
    col_ids = lax.broadcasted_iota(jnp.int32, x.shape, dimension=1)
    h = jnp.where(col_ids < _NORM_COLS, x * inv_colmax, x)

    conv_w = ((c1l_ref, c1r_ref, c1b_ref), (c2l_ref, c2r_ref, c2b_ref), (c3l_ref, c3r_ref, c3b_ref))
    pool_w = ((p1l_ref, p1r_ref, p1b_ref), (p2l_ref, p2r_ref, p2b_ref), (p3l_ref, p3r_ref, p3b_ref))

    active = jnp.ones((n, 1), f32)                        # nodes surviving pooling so far
    n_active = nodes_per_graph                            # per-graph active count (equal-size graphs)
    pooled_sum = jnp.zeros((num_graphs, 2 * nhid), f32)   # accumulates x1 + x2 + x3

    for layer in range(3):
        cl, cr, cb = conv_w[layer]
        pwl, pwr, pb = pool_w[layer]
        active_lowp = active.astype(_MXU_DTYPE)

        # relu(convN(x)); re-mask immediately so inactive rows stay exactly zero downstream.
        h = jnp.maximum(_sage_conv(adj, h, active_lowp, cl[...], cr[...], cb[...]), 0.0) * active

        # SAGPooling score conv (nhid -> 1), fused in the same body: adj is re-used from the same
        # VMEM-resident value and the (N, 1) score stays in vregs (no lane-width-1 HBM store).
        score = jnp.tanh(_sage_conv(adj, h, active_lowp, pwl[...], pwr[...], pb[...]))   # (N, 1)

        # Per-graph top-k (k = ceil(ratio * n_active)) via a k-step unrolled iterative argmax
        # (k is 4 / 1 / 1 here).  Tie-break: lowest node index.
        # TODO(synk): a single k is shared by all graphs -- exact for equal-sized graphs; ragged
        # batches would need per-graph k as PyG SAGPooling computes it.
        k = int(math.ceil(ratio * n_active))
        score_m = jnp.where(active > 0.0, score, _NEG_BIG)
        keep_blocks = []
        for b in range(num_graphs):
            lo = b * nodes_per_graph
            rem = score_m[lo:lo + nodes_per_graph, :]                      # (N_per, 1) static slice
            idx = lax.broadcasted_iota(jnp.int32, rem.shape, dimension=0)
            keep = jnp.zeros_like(rem)
            for _ in range(k):
                mx = jnp.max(rem, axis=0, keepdims=True)                   # (1, 1)
                is_mx = (rem >= mx) & (rem > 0.5 * _NEG_BIG)
                first = jnp.min(jnp.where(is_mx, idx, nodes_per_graph), axis=0, keepdims=True)
                pick = is_mx & (idx == first)                              # exactly one node
                keep = keep + pick.astype(f32)
                rem = jnp.where(pick, _NEG_BIG, rem)
            keep_blocks.append(keep)
        active = jnp.concatenate(keep_blocks, axis=0)                      # new active mask (N, 1)
        n_active = k

        # x[perm] * tanh(score[perm]); dropped nodes become zero rows which, together with
        # deg = adj @ active next layer, implements filter_adj without rewriting adj.
        h = h * score * active

        # global max pool + global mean pool over the surviving nodes of each graph
        # (per-graph static row slices; no (B, N, H) broadcast tensor).
        pooled_rows = []
        for b in range(num_graphs):
            lo = b * nodes_per_graph
            xb = h[lo:lo + nodes_per_graph, :]                             # (N_per, H); inactive rows = 0
            ab = active[lo:lo + nodes_per_graph, :]                        # (N_per, 1)
            cnt = jnp.maximum(jnp.sum(ab, axis=0, keepdims=True), 1.0)     # (1, 1)
            gap_b = jnp.sum(xb, axis=0, keepdims=True) / cnt               # (1, H) mean over kept nodes
            gmp_b = jnp.max(jnp.where(ab > 0.0, xb, _NEG_BIG), axis=0, keepdims=True)   # (1, H)
            pooled_rows.append(jnp.concatenate([gmp_b, gap_b], axis=1))    # cat([gmp, gap], dim=1)
        pooled_sum = pooled_sum + jnp.concatenate(pooled_rows, axis=0)     # (B, 2H)

    # --- MLP head: relu(lin1) -> dropout(identity) -> relu(lin2) -> lin3; act=None.
    # TODO(synk): F.dropout is treated as inference-mode identity (training RNG not replicated).
    h1 = jnp.maximum(jnp.dot(pooled_sum, w1_ref[...], preferred_element_type=f32) + b1_ref[...], 0.0)
    feat = jnp.maximum(jnp.dot(h1, w2_ref[...], preferred_element_type=f32) + b2_ref[...], 0.0)
    feat_ref[...] = feat
    out_ref[...] = jnp.dot(feat, w3_ref[...], preferred_element_type=f32) + b3_ref[...]


# ------------------------------------------------------------------- glue ----

def graphnet_forward(params, x, edge_attr, adj, batch, num_graphs, nodes_per_graph, ratio=0.2):
    """Whole GraphNet forward as a single fused Pallas call."""
    del batch  # graphs are contiguous equal-size node blocks; membership is implied by node index

    # NormalizeEdgesV2 -- edge_attr is never consumed downstream in this forward (glue only).
    _ = edge_attr / jnp.max(edge_attr, axis=0, keepdims=True)

    # {0,1} adjacency is exact in bf16: halves HBM/VMEM bytes and feeds the MXU directly
    # (f32 accumulation in-kernel).  v7x note: bf16, not int8/fp8.
    adj_lowp = adj.astype(_MXU_DTYPE)

    flat_params = []
    for layer in (1, 2, 3):
        flat_params += list(params[f"conv{layer}"]) + list(params[f"pool{layer}"])
    flat_params += list(params["lin1"]) + list(params["lin2"]) + list(params["lin3"])

    grph_dim = params["lin2"][0].shape[1]
    label_dim = params["lin3"][0].shape[1]

    kernel = functools.partial(_graphnet_kernel, num_graphs=num_graphs,
                               nodes_per_graph=nodes_per_graph, ratio=ratio)
    features, out = pl.pallas_call(
        kernel,
        out_shape=(jax.ShapeDtypeStruct((num_graphs, grph_dim), jnp.float32),
                   jax.ShapeDtypeStruct((num_graphs, label_dim), jnp.float32)),
        in_specs=[_VMEM] * (2 + len(flat_params)),
        out_specs=(_VMEM, _VMEM),
    )(x, adj_lowp, *flat_params)
    return features, out


def init_params(key, features, nhid, grph_dim, label_dim):
    def lin(k, fin, fout, scale=0.1):
        kw, kb = jax.random.split(k)
        return (jax.random.normal(kw, (fin, fout), jnp.float32) * scale,
                jax.random.normal(kb, (1, fout), jnp.float32) * scale)

    keys = jax.random.split(key, 9)
    p = {}
    for i, (name, fin, fout) in enumerate([("conv1", features, nhid), ("conv2", nhid, nhid),
                                           ("conv3", nhid, nhid), ("pool1", nhid, 1),
                                           ("pool2", nhid, 1), ("pool3", nhid, 1)]):
        wl, bl = lin(keys[i], fin, fout)
        wr, _ = lin(jax.random.fold_in(keys[i], 7), fin, fout)   # lin_r has no bias in PyG SAGEConv
        p[name] = (wl, wr, bl)
    p["lin1"] = lin(keys[6], 2 * nhid, nhid)
    p["lin2"] = lin(keys[7], nhid, grph_dim)
    p["lin3"] = lin(keys[8], grph_dim, label_dim)
    return p


def build_graph(num_graphs, nodes_per_graph, features, key):
    n = num_graphs * nodes_per_graph
    src, dst = [], []
    for g in range(num_graphs):
        base = g * nodes_per_graph
        for i in range(nodes_per_graph):
            for d in (1, 2):
                j = (i + d) % nodes_per_graph
                src += [base + i, base + j]
                dst += [base + j, base + i]
    edge_index = jnp.array([src, dst], dtype=jnp.int32)                       # (2, E)
    adj = jnp.zeros((n, n), jnp.float32).at[edge_index[1], edge_index[0]].set(1.0)
    batch = jnp.repeat(jnp.arange(num_graphs, dtype=jnp.int32), nodes_per_graph)
    x = jax.random.uniform(key, (n, features), jnp.float32, minval=0.1, maxval=1.0)
    e = edge_index.shape[1]
    edge_attr = jax.random.uniform(jax.random.fold_in(key, 1), (e, 1), jnp.float32,
                                   minval=0.1, maxval=1.0)
    return x, edge_index, edge_attr, batch, adj


if __name__ == "__main__":
    B, N_PER = 2, 16                       # 2 graphs, 16 nodes each (N = 32 total)
    FEATURES, NHID, GRPH_DIM, LABEL_DIM = 64, 32, 16, 1
    POOL_RATIO = 0.2

    key = jax.random.PRNGKey(0)
    k_graph, k_param = jax.random.split(key)
    x, edge_index, edge_attr, batch, adj = build_graph(B, N_PER, FEATURES, k_graph)
    params = init_params(k_param, FEATURES, NHID, GRPH_DIM, LABEL_DIM)

    features_out, out = graphnet_forward(params, x, edge_attr, adj, batch, B, N_PER, POOL_RATIO)
    jax.block_until_ready((features_out, out))

    assert features_out.shape == (B, GRPH_DIM), features_out.shape
    assert out.shape == (B, LABEL_DIM), out.shape
    assert bool(jnp.all(jnp.isfinite(features_out))) and bool(jnp.all(jnp.isfinite(out)))
    print("KERNEL_OK")
</pallas_src>

<mosaic_0001>
module attributes {stable_mosaic.version = 11 : i64} {
  func.func @_graphnet_kernel(%arg0: memref<32x64xf32, #tpu.memory_space<vmem>>, %arg1: memref<32x32xbf16, #tpu.memory_space<vmem>>, %arg2: memref<64x32xf32, #tpu.memory_space<vmem>>, %arg3: memref<64x32xf32, #tpu.memory_space<vmem>>, %arg4: memref<1x32xf32, #tpu.memory_space<vmem>>, %arg5: memref<32x1xf32, #tpu.memory_space<vmem>>, %arg6: memref<32x1xf32, #tpu.memory_space<vmem>>, %arg7: memref<1x1xf32, #tpu.memory_space<vmem>>, %arg8: memref<32x32xf32, #tpu.memory_space<vmem>>, %arg9: memref<32x32xf32, #tpu.memory_space<vmem>>, %arg10: memref<1x32xf32, #tpu.memory_space<vmem>>, %arg11: memref<32x1xf32, #tpu.memory_space<vmem>>, %arg12: memref<32x1xf32, #tpu.memory_space<vmem>>, %arg13: memref<1x1xf32, #tpu.memory_space<vmem>>, %arg14: memref<32x32xf32, #tpu.memory_space<vmem>>, %arg15: memref<32x32xf32, #tpu.memory_space<vmem>>, %arg16: memref<1x32xf32, #tpu.memory_space<vmem>>, %arg17: memref<32x1xf32, #tpu.memory_space<vmem>>, %arg18: memref<32x1xf32, #tpu.memory_space<vmem>>, %arg19: memref<1x1xf32, #tpu.memory_space<vmem>>, %arg20: memref<64x32xf32, #tpu.memory_space<vmem>>, %arg21: memref<1x32xf32, #tpu.memory_space<vmem>>, %arg22: memref<32x16xf32, #tpu.memory_space<vmem>>, %arg23: memref<1x16xf32, #tpu.memory_space<vmem>>, %arg24: memref<16x1xf32, #tpu.memory_space<vmem>>, %arg25: memref<1x1xf32, #tpu.memory_space<vmem>>, %arg26: memref<2x16xf32, #tpu.memory_space<vmem>>, %arg27: memref<2x1xf32, #tpu.memory_space<vmem>>) attributes {dimension_semantics = [], scalar_prefetch = 0 : i64, scratch_operands = 0 : i64, tpu.core_type = #tpu.core_type<tc>} {
    %c0 = arith.constant 0 : index
    %c0_0 = arith.constant 0 : index
    %0 = vector.load %arg0[%c0, %c0_0] : memref<32x64xf32, #tpu.memory_space<vmem>>, vector<32x64xf32>
    %c0_1 = arith.constant 0 : index
    %c0_2 = arith.constant 0 : index
    %1 = vector.load %arg1[%c0_1, %c0_2] : memref<32x32xbf16, #tpu.memory_space<vmem>>, vector<32x32xbf16>
    %cst = arith.constant dense<0xFF800000> : vector<64xf32>
    %2 = vector.multi_reduction <maximumf>, %0, %cst [0] : vector<32x64xf32> to vector<64xf32>
    %3 = vector.shape_cast %2 : vector<64xf32> to vector<1x64xf32>
    %cst_3 = arith.constant 1.000000e+00 : f32
    %4 = vector.broadcast %cst_3 : f32 to vector<1x64xf32>
    %5 = arith.divf %4, %3 : vector<1x64xf32>
    %6 = tpu.iota {dimensions = array<i32: 1>} : vector<32x64xi32>
    %c12_i32 = arith.constant 12 : i32
    %7 = vector.broadcast %c12_i32 : i32 to vector<32x64xi32>
    %8 = arith.cmpi slt, %6, %7 : vector<32x64xi32>
    %9 = vector.broadcast %5 : vector<1x64xf32> to vector<32x64xf32>
    %10 = arith.mulf %0, %9 : vector<32x64xf32>
    %11 = arith.select %8, %10, %0 : vector<32x64xi1>, vector<32x64xf32>
    %cst_4 = arith.constant 1.000000e+00 : f32
    %12 = vector.broadcast %cst_4 : f32 to vector<32x1xf32>
    %cst_5 = arith.constant 0.000000e+00 : f32
    %13 = vector.broadcast %cst_5 : f32 to vector<2x64xf32>
    %14 = arith.truncf %12 : vector<32x1xf32> to vector<32x1xbf16>
    %c0_6 = arith.constant 0 : index
    %c0_7 = arith.constant 0 : index
    %15 = vector.load %arg2[%c0_6, %c0_7] : memref<64x32xf32, #tpu.memory_space<vmem>>, vector<64x32xf32>
    %c0_8 = arith.constant 0 : index
    %c0_9 = arith.constant 0 : index
    %16 = vector.load %arg3[%c0_8, %c0_9] : memref<64x32xf32, #tpu.memory_space<vmem>>, vector<64x32xf32>
    %c0_10 = arith.constant 0 : index
    %c0_11 = arith.constant 0 : index
    %17 = vector.load %arg4[%c0_10, %c0_11] : memref<1x32xf32, #tpu.memory_space<vmem>>, vector<1x32xf32>
    %cst_12 = arith.constant dense<0.000000e+00> : vector<32x1xf32>
    %18 = tpu.matmul %1, %14, %cst_12 {dimension_numbers = #tpu.dot_dimension_numbers<[1], [0], [0], [1], [0, 0, 1, 1], [], []>} : vector<32x32xbf16>, vector<32x1xbf16>, vector<32x1xf32> -> vector<32x1xf32>
    %cst_13 = arith.constant 1.000000e+00 : f32
    %19 = vector.broadcast %cst_13 : f32 to vector<32x1xf32>
    %20 = arith.maximumf %18, %19 : vector<32x1xf32>
    %cst_14 = arith.constant 1.000000e+00 : f32
    %21 = vector.broadcast %cst_14 : f32 to vector<32x1xf32>
    %22 = arith.divf %21, %20 : vector<32x1xf32>
    %23 = arith.truncf %11 : vector<32x64xf32> to vector<32x64xbf16>
    %cst_15 = arith.constant dense<0.000000e+00> : vector<32x64xf32>
    %24 = tpu.matmul %1, %23, %cst_15 {dimension_numbers = #tpu.dot_dimension_numbers<[1], [0], [0], [1], [0, 0, 1, 1], [], []>} : vector<32x32xbf16>, vector<32x64xbf16>, vector<32x64xf32> -> vector<32x64xf32>
    %25 = vector.broadcast %22 : vector<32x1xf32> to vector<32x64xf32>
    %26 = arith.mulf %24, %25 : vector<32x64xf32>
    %27 = arith.truncf %26 : vector<32x64xf32> to vector<32x64xbf16>
    %28 = arith.truncf %15 : vector<64x32xf32> to vector<64x32xbf16>
    %cst_16 = arith.constant dense<0.000000e+00> : vector<32x32xf32>
    %29 = tpu.matmul %27, %28, %cst_16 {dimension_numbers = #tpu.dot_dimension_numbers<[1], [0], [0], [1], [0, 0, 1, 1], [], []>} : vector<32x64xbf16>, vector<64x32xbf16>, vector<32x32xf32> -> vector<32x32xf32>
    %30 = arith.truncf %11 : vector<32x64xf32> to vector<32x64xbf16>
    %31 = arith.truncf %16 : vector<64x32xf32> to vector<64x32xbf16>
    %cst_17 = arith.constant dense<0.000000e+00> : vector<32x32xf32>
    %32 = tpu.matmul %30, %31, %cst_17 {dimension_numbers = #tpu.dot_dimension_numbers<[1], [0], [0], [1], [0, 0, 1, 1], [], []>} : vector<32x64xbf16>, vector<64x32xbf16>, vector<32x32xf32> -> vector<32x32xf32>
    %33 = arith.addf %29, %32 : vector<32x32xf32>
    %34 = vector.broadcast %17 : vector<1x32xf32> to vector<32x32xf32>
    %35 = arith.addf %33, %34 : vector<32x32xf32>
    %cst_18 = arith.constant 0.000000e+00 : f32
    %36 = vector.broadcast %cst_18 : f32 to vector<32x32xf32>
    %37 = arith.maximumf %35, %36 : vector<32x32xf32>
    %38 = vector.broadcast %12 : vector<32x1xf32> to vector<32x32xf32>
    %39 = arith.mulf %37, %38 : vector<32x32xf32>
    %c0_19 = arith.constant 0 : index
    %c0_20 = arith.constant 0 : index
    %40 = vector.load %arg5[%c0_19, %c0_20] : memref<32x1xf32, #tpu.memory_space<vmem>>, vector<32x1xf32>
    %c0_21 = arith.constant 0 : index
    %c0_22 = arith.constant 0 : index
    %41 = vector.load %arg6[%c0_21, %c0_22] : memref<32x1xf32, #tpu.memory_space<vmem>>, vector<32x1xf32>
    %c0_23 = arith.constant 0 : index
    %c0_24 = arith.constant 0 : index
    %42 = vector.load %arg7[%c0_23, %c0_24] : memref<1x1xf32, #tpu.memory_space<vmem>>, vector<1x1xf32>
    %cst_25 = arith.constant dense<0.000000e+00> : vector<32x1xf32>
    %43 = tpu.matmul %1, %14, %cst_25 {dimension_numbers = #tpu.dot_dimension_numbers<[1], [0], [0], [1], [0, 0, 1, 1], [], []>} : vector<32x32xbf16>, vector<32x1xbf16>, vector<32x1xf32> -> vector<32x1xf32>
    %cst_26 = arith.constant 1.000000e+00 : f32
    %44 = vector.broadcast %cst_26 : f32 to vector<32x1xf32>
    %45 = arith.maximumf %43, %44 : vector<32x1xf32>
    %cst_27 = arith.constant 1.000000e+00 : f32
    %46 = vector.broadcast %cst_27 : f32 to vector<32x1xf32>
    %47 = arith.divf %46, %45 : vector<32x1xf32>
    %48 = arith.truncf %39 : vector<32x32xf32> to vector<32x32xbf16>
    %cst_28 = arith.constant dense<0.000000e+00> : vector<32x32xf32>
    %49 = tpu.matmul %1, %48, %cst_28 {dimension_numbers = #tpu.dot_dimension_numbers<[1], [0], [0], [1], [0, 0, 1, 1], [], []>} : vector<32x32xbf16>, vector<32x32xbf16>, vector<32x32xf32> -> vector<32x32xf32>
    %50 = vector.broadcast %47 : vector<32x1xf32> to vector<32x32xf32>
    %51 = arith.mulf %49, %50 : vector<32x32xf32>
    %52 = arith.truncf %51 : vector<32x32xf32> to vector<32x32xbf16>
    %53 = arith.truncf %40 : vector<32x1xf32> to vector<32x1xbf16>
    %cst_29 = arith.constant dense<0.000000e+00> : vector<32x1xf32>
    %54 = tpu.matmul %52, %53, %cst_29 {dimension_numbers = #tpu.dot_dimension_numbers<[1], [0], [0], [1], [0, 0, 1, 1], [], []>} : vector<32x32xbf16>, vector<32x1xbf16>, vector<32x1xf32> -> vector<32x1xf32>
    %55 = arith.truncf %39 : vector<32x32xf32> to vector<32x32xbf16>
    %56 = arith.truncf %41 : vector<32x1xf32> to vector<32x1xbf16>
    %cst_30 = arith.constant dense<0.000000e+00> : vector<32x1xf32>
    %57 = tpu.matmul %55, %56, %cst_30 {dimension_numbers = #tpu.dot_dimension_numbers<[1], [0], [0], [1], [0, 0, 1, 1], [], []>} : vector<32x32xbf16>, vector<32x1xbf16>, vector<32x1xf32> -> vector<32x1xf32>
    %58 = arith.addf %54, %57 : vector<32x1xf32>
    %59 = vector.broadcast %42 : vector<1x1xf32> to vector<32x1xf32>
    %60 = arith.addf %58, %59 : vector<32x1xf32>
    %61 = math.tanh %60 : vector<32x1xf32>
    %cst_31 = arith.constant 0.000000e+00 : f32
    %62 = vector.broadcast %cst_31 : f32 to vector<32x1xf32>
    %63 = arith.cmpf ogt, %12, %62 : vector<32x1xf32>
    %cst_32 = arith.constant -1.000000e+30 : f32
    %64 = vector.broadcast %cst_32 : f32 to vector<32x1xf32>
    %65 = arith.select %63, %61, %64 : vector<32x1xi1>, vector<32x1xf32>
    %66 = vector.extract_strided_slice %65 {offsets = [0, 0], sizes = [16, 1], strides = [1, 1]} : vector<32x1xf32> to vector<16x1xf32>
    %67 = tpu.iota {dimensions = array<i32: 0>} : vector<16x1xi32>
    %cst_33 = arith.constant 0.000000e+00 : f32
    %68 = vector.broadcast %cst_33 : f32 to vector<16x1xf32>
    %cst_34 = arith.constant dense<0xFF800000> : vector<1xf32>
    %69 = vector.multi_reduction <maximumf>, %66, %cst_34 [0] : vector<16x1xf32> to vector<1xf32>
    %70 = vector.shape_cast %69 : vector<1xf32> to vector<1x1xf32>
    %71 = vector.broadcast %70 : vector<1x1xf32> to vector<16x1xf32>
    %72 = arith.cmpf oge, %66, %71 : vector<16x1xf32>
    %cst_35 = arith.constant -5.000000e+29 : f32
    %73 = vector.broadcast %cst_35 : f32 to vector<16x1xf32>
    %74 = arith.cmpf ogt, %66, %73 : vector<16x1xf32>
    %75 = arith.andi %72, %74 : vector<16x1xi1>
    %c16_i32 = arith.constant 16 : i32
    %76 = vector.broadcast %c16_i32 : i32 to vector<16x1xi32>
    %77 = arith.select %75, %67, %76 : vector<16x1xi1>, vector<16x1xi32>
    %cst_36 = arith.constant dense<2147483647> : vector<1xi32>
    %78 = vector.multi_reduction <minsi>, %77, %cst_36 [0] : vector<16x1xi32> to vector<1xi32>
    %79 = vector.shape_cast %78 : vector<1xi32> to vector<1x1xi32>
    %80 = vector.broadcast %79 : vector<1x1xi32> to vector<16x1xi32>
    %81 = arith.cmpi eq, %67, %80 : vector<16x1xi32>
    %82 = arith.andi %75, %81 : vector<16x1xi1>
    %83 = arith.extui %82 : vector<16x1xi1> to vector<16x1xi32>
    %84 = arith.sitofp %83 : vector<16x1xi32> to vector<16x1xf32>
    %85 = arith.addf %68, %84 : vector<16x1xf32>
    %cst_37 = arith.constant -1.000000e+30 : f32
    %86 = vector.broadcast %cst_37 : f32 to vector<16x1xf32>
    %87 = arith.select %82, %86, %66 : vector<16x1xi1>, vector<16x1xf32>
    %cst_38 = arith.constant dense<0xFF800000> : vector<1xf32>
    %88 = vector.multi_reduction <maximumf>, %87, %cst_38 [0] : vector<16x1xf32> to vector<1xf32>
    %89 = vector.shape_cast %88 : vector<1xf32> to vector<1x1xf32>
    %90 = vector.broadcast %89 : vector<1x1xf32> to vector<16x1xf32>
    %91 = arith.cmpf oge, %87, %90 : vector<16x1xf32>
    %cst_39 = arith.constant -5.000000e+29 : f32
    %92 = vector.broadcast %cst_39 : f32 to vector<16x1xf32>
    %93 = arith.cmpf ogt, %87, %92 : vector<16x1xf32>
    %94 = arith.andi %91, %93 : vector<16x1xi1>
    %c16_i32_40 = arith.constant 16 : i32
    %95 = vector.broadcast %c16_i32_40 : i32 to vector<16x1xi32>
    %96 = arith.select %94, %67, %95 : vector<16x1xi1>, vector<16x1xi32>
    %cst_41 = arith.constant dense<2147483647> : vector<1xi32>
    %97 = vector.multi_reduction <minsi>, %96, %cst_41 [0] : vector<16x1xi32> to vector<1xi32>
    %98 = vector.shape_cast %97 : vector<1xi32> to vector<1x1xi32>
    %99 = vector.broadcast %98 : vector<1x1xi32> to vector<16x1xi32>
    %100 = arith.cmpi eq, %67, %99 : vector<16x1xi32>
    %101 = arith.andi %94, %100 : vector<16x1xi1>
    %102 = arith.extui %101 : vector<16x1xi1> to vector<16x1xi32>
    %103 = arith.sitofp %102 : vector<16x1xi32> to vector<16x1xf32>
    %104 = arith.addf %85, %103 : vector<16x1xf32>
    %cst_42 = arith.constant -1.000000e+30 : f32
    %105 = vector.broadcast %cst_42 : f32 to vector<16x1xf32>
    %106 = arith.select %101, %105, %87 : vector<16x1xi1>, vector<16x1xf32>
    %cst_43 = arith.constant dense<0xFF800000> : vector<1xf32>
    %107 = vector.multi_reduction <maximumf>, %106, %cst_43 [0] : vector<16x1xf32> to vector<1xf32>
    %108 = vector.shape_cast %107 : vector<1xf32> to vector<1x1xf32>
    %109 = vector.broadcast %108 : vector<1x1xf32> to vector<16x1xf32>
    %110 = arith.cmpf oge, %106, %109 : vector<16x1xf32>
    %cst_44 = arith.constant -5.000000e+29 : f32
    %111 = vector.broadcast %cst_44 : f32 to vector<16x1xf32>
    %112 = arith.cmpf ogt, %106, %111 : vector<16x1xf32>
    %113 = arith.andi %110, %112 : vector<16x1xi1>
    %c16_i32_45 = arith.constant 16 : i32
    %114 = vector.broadcast %c16_i32_45 : i32 to vector<16x1xi32>
    %115 = arith.select %113, %67, %114 : vector<16x1xi1>, vector<16x1xi32>
    %cst_46 = arith.constant dense<2147483647> : vector<1xi32>
    %116 = vector.multi_reduction <minsi>, %115, %cst_46 [0] : vector<16x1xi32> to vector<1xi32>
    %117 = vector.shape_cast %116 : vector<1xi32> to vector<1x1xi32>
    %118 = vector.broadcast %117 : vector<1x1xi32> to vector<16x1xi32>
    %119 = arith.cmpi eq, %67, %118 : vector<16x1xi32>
    %120 = arith.andi %113, %119 : vector<16x1xi1>
    %121 = arith.extui %120 : vector<16x1xi1> to vector<16x1xi32>
    %122 = arith.sitofp %121 : vector<16x1xi32> to vector<16x1xf32>
    %123 = arith.addf %104, %122 : vector<16x1xf32>
    %cst_47 = arith.constant -1.000000e+30 : f32
    %124 = vector.broadcast %cst_47 : f32 to vector<16x1xf32>
    %125 = arith.select %120, %124, %106 : vector<16x1xi1>, vector<16x1xf32>
    %cst_48 = arith.constant dense<0xFF800000> : vector<1xf32>
    %126 = vector.multi_reduction <maximumf>, %125, %cst_48 [0] : vector<16x1xf32> to vector<1xf32>
    %127 = vector.shape_cast %126 : vector<1xf32> to vector<1x1xf32>
    %128 = vector.broadcast %127 : vector<1x1xf32> to vector<16x1xf32>
    %129 = arith.cmpf oge, %125, %128 : vector<16x1xf32>
    %cst_49 = arith.constant -5.000000e+29 : f32
    %130 = vector.broadcast %cst_49 : f32 to vector<16x1xf32>
    %131 = arith.cmpf ogt, %125, %130 : vector<16x1xf32>
    %132 = arith.andi %129, %131 : vector<16x1xi1>
    %c16_i32_50 = arith.constant 16 : i32
    %133 = vector.broadcast %c16_i32_50 : i32 to vector<16x1xi32>
    %134 = arith.select %132, %67, %133 : vector<16x1xi1>, vector<16x1xi32>
    %cst_51 = arith.constant dense<2147483647> : vector<1xi32>
    %135 = vector.multi_reduction <minsi>, %134, %cst_51 [0] : vector<16x1xi32> to vector<1xi32>
    %136 = vector.shape_cast %135 : vector<1xi32> to vector<1x1xi32>
    %137 = vector.broadcast %136 : vector<1x1xi32> to vector<16x1xi32>
    %138 = arith.cmpi eq, %67, %137 : vector<16x1xi32>
    %139 = arith.andi %132, %138 : vector<16x1xi1>
    %140 = arith.extui %139 : vector<16x1xi1> to vector<16x1xi32>
    %141 = arith.sitofp %140 : vector<16x1xi32> to vector<16x1xf32>
    %142 = arith.addf %123, %141 : vector<16x1xf32>
    %143 = vector.extract_strided_slice %65 {offsets = [16, 0], sizes = [16, 1], strides = [1, 1]} : vector<32x1xf32> to vector<16x1xf32>
    %144 = tpu.iota {dimensions = array<i32: 0>} : vector<16x1xi32>
    %cst_52 = arith.constant 0.000000e+00 : f32
    %145 = vector.broadcast %cst_52 : f32 to vector<16x1xf32>
    %cst_53 = arith.constant dense<0xFF800000> : vector<1xf32>
    %146 = vector.multi_reduction <maximumf>, %143, %cst_53 [0] : vector<16x1xf32> to vector<1xf32>
    %147 = vector.shape_cast %146 : vector<1xf32> to vector<1x1xf32>
    %148 = vector.broadcast %147 : vector<1x1xf32> to vector<16x1xf32>
    %149 = arith.cmpf oge, %143, %148 : vector<16x1xf32>
    %cst_54 = arith.constant -5.000000e+29 : f32
    %150 = vector.broadcast %cst_54 : f32 to vector<16x1xf32>
    %151 = arith.cmpf ogt, %143, %150 : vector<16x1xf32>
    %152 = arith.andi %149, %151 : vector<16x1xi1>
    %c16_i32_55 = arith.constant 16 : i32
    %153 = vector.broadcast %c16_i32_55 : i32 to vector<16x1xi32>
    %154 = arith.select %152, %144, %153 : vector<16x1xi1>, vector<16x1xi32>
    %cst_56 = arith.constant dense<2147483647> : vector<1xi32>
    %155 = vector.multi_reduction <minsi>, %154, %cst_56 [0] : vector<16x1xi32> to vector<1xi32>
    %156 = vector.shape_cast %155 : vector<1xi32> to vector<1x1xi32>
    %157 = vector.broadcast %156 : vector<1x1xi32> to vector<16x1xi32>
    %158 = arith.cmpi eq, %144, %157 : vector<16x1xi32>
    %159 = arith.andi %152, %158 : vector<16x1xi1>
    %160 = arith.extui %159 : vector<16x1xi1> to vector<16x1xi32>
    %161 = arith.sitofp %160 : vector<16x1xi32> to vector<16x1xf32>
    %162 = arith.addf %145, %161 : vector<16x1xf32>
    %cst_57 = arith.constant -1.000000e+30 : f32
    %163 = vector.broadcast %cst_57 : f32 to vector<16x1xf32>
    %164 = arith.select %159, %163, %143 : vector<16x1xi1>, vector<16x1xf32>
    %cst_58 = arith.constant dense<0xFF800000> : vector<1xf32>
    %165 = vector.multi_reduction <maximumf>, %164, %cst_58 [0] : vector<16x1xf32> to vector<1xf32>
    %166 = vector.shape_cast %165 : vector<1xf32> to vector<1x1xf32>
    %167 = vector.broadcast %166 : vector<1x1xf32> to vector<16x1xf32>
    %168 = arith.cmpf oge, %164, %167 : vector<16x1xf32>
    %cst_59 = arith.constant -5.000000e+29 : f32
    %169 = vector.broadcast %cst_59 : f32 to vector<16x1xf32>
    %170 = arith.cmpf ogt, %164, %169 : vector<16x1xf32>
    %171 = arith.andi %168, %170 : vector<16x1xi1>
    %c16_i32_60 = arith.constant 16 : i32
    %172 = vector.broadcast %c16_i32_60 : i32 to vector<16x1xi32>
    %173 = arith.select %171, %144, %172 : vector<16x1xi1>, vector<16x1xi32>
    %cst_61 = arith.constant dense<2147483647> : vector<1xi32>
    %174 = vector.multi_reduction <minsi>, %173, %cst_61 [0] : vector<16x1xi32> to vector<1xi32>
    %175 = vector.shape_cast %174 : vector<1xi32> to vector<1x1xi32>
    %176 = vector.broadcast %175 : vector<1x1xi32> to vector<16x1xi32>
    %177 = arith.cmpi eq, %144, %176 : vector<16x1xi32>
    %178 = arith.andi %171, %177 : vector<16x1xi1>
    %179 = arith.extui %178 : vector<16x1xi1> to vector<16x1xi32>
    %180 = arith.sitofp %179 : vector<16x1xi32> to vector<16x1xf32>
    %181 = arith.addf %162, %180 : vector<16x1xf32>
    %cst_62 = arith.constant -1.000000e+30 : f32
    %182 = vector.broadcast %cst_62 : f32 to vector<16x1xf32>
    %183 = arith.select %178, %182, %164 : vector<16x1xi1>, vector<16x1xf32>
    %cst_63 = arith.constant dense<0xFF800000> : vector<1xf32>
    %184 = vector.multi_reduction <maximumf>, %183, %cst_63 [0] : vector<16x1xf32> to vector<1xf32>
    %185 = vector.shape_cast %184 : vector<1xf32> to vector<1x1xf32>
    %186 = vector.broadcast %185 : vector<1x1xf32> to vector<16x1xf32>
    %187 = arith.cmpf oge, %183, %186 : vector<16x1xf32>
    %cst_64 = arith.constant -5.000000e+29 : f32
    %188 = vector.broadcast %cst_64 : f32 to vector<16x1xf32>
    %189 = arith.cmpf ogt, %183, %188 : vector<16x1xf32>
    %190 = arith.andi %187, %189 : vector<16x1xi1>
    %c16_i32_65 = arith.constant 16 : i32
    %191 = vector.broadcast %c16_i32_65 : i32 to vector<16x1xi32>
    %192 = arith.select %190, %144, %191 : vector<16x1xi1>, vector<16x1xi32>
    %cst_66 = arith.constant dense<2147483647> : vector<1xi32>
    %193 = vector.multi_reduction <minsi>, %192, %cst_66 [0] : vector<16x1xi32> to vector<1xi32>
    %194 = vector.shape_cast %193 : vector<1xi32> to vector<1x1xi32>
    %195 = vector.broadcast %194 : vector<1x1xi32> to vector<16x1xi32>
    %196 = arith.cmpi eq, %144, %195 : vector<16x1xi32>
    %197 = arith.andi %190, %196 : vector<16x1xi1>
    %198 = arith.extui %197 : vector<16x1xi1> to vector<16x1xi32>
    %199 = arith.sitofp %198 : vector<16x1xi32> to vector<16x1xf32>
    %200 = arith.addf %181, %199 : vector<16x1xf32>
    %cst_67 = arith.constant -1.000000e+30 : f32
    %201 = vector.broadcast %cst_67 : f32 to vector<16x1xf32>
    %202 = arith.select %197, %201, %183 : vector<16x1xi1>, vector<16x1xf32>
    %cst_68 = arith.constant dense<0xFF800000> : vector<1xf32>
    %203 = vector.multi_reduction <maximumf>, %202, %cst_68 [0] : vector<16x1xf32> to vector<1xf32>
    %204 = vector.shape_cast %203 : vector<1xf32> to vector<1x1xf32>
    %205 = vector.broadcast %204 : vector<1x1xf32> to vector<16x1xf32>
    %206 = arith.cmpf oge, %202, %205 : vector<16x1xf32>
    %cst_69 = arith.constant -5.000000e+29 : f32
    %207 = vector.broadcast %cst_69 : f32 to vector<16x1xf32>
    %208 = arith.cmpf ogt, %202, %207 : vector<16x1xf32>
    %209 = arith.andi %206, %208 : vector<16x1xi1>
    %c16_i32_70 = arith.constant 16 : i32
    %210 = vector.broadcast %c16_i32_70 : i32 to vector<16x1xi32>
    %211 = arith.select %209, %144, %210 : vector<16x1xi1>, vector<16x1xi32>
    %cst_71 = arith.constant dense<2147483647> : vector<1xi32>
    %212 = vector.multi_reduction <minsi>, %211, %cst_71 [0] : vector<16x1xi32> to vector<1xi32>
    %213 = vector.shape_cast %212 : vector<1xi32> to vector<1x1xi32>
    %214 = vector.broadcast %213 : vector<1x1xi32> to vector<16x1xi32>
    %215 = arith.cmpi eq, %144, %214 : vector<16x1xi32>
    %216 = arith.andi %209, %215 : vector<16x1xi1>
    %217 = arith.extui %216 : vector<16x1xi1> to vector<16x1xi32>
    %218 = arith.sitofp %217 : vector<16x1xi32> to vector<16x1xf32>
    %219 = arith.addf %200, %218 : vector<16x1xf32>
    %220 = tpu.concatenate %142, %219 in 0 : vector<16x1xf32>, vector<16x1xf32> -> vector<32x1xf32>
    %221 = vector.broadcast %61 : vector<32x1xf32> to vector<32x32xf32>
    %222 = arith.mulf %39, %221 : vector<32x32xf32>
    %223 = vector.broadcast %220 : vector<32x1xf32> to vector<32x32xf32>
    %224 = arith.mulf %222, %223 : vector<32x32xf32>
    %225 = vector.extract_strided_slice %224 {offsets = [0, 0], sizes = [16, 32], strides = [1, 1]} : vector<32x32xf32> to vector<16x32xf32>
    %226 = vector.extract_strided_slice %220 {offsets = [0, 0], sizes = [16, 1], strides = [1, 1]} : vector<32x1xf32> to vector<16x1xf32>
    %cst_72 = arith.constant dense<0.000000e+00> : vector<1xf32>
    %227 = vector.multi_reduction <add>, %226, %cst_72 [0] : vector<16x1xf32> to vector<1xf32>
    %228 = vector.shape_cast %227 : vector<1xf32> to vector<1x1xf32>
    %cst_73 = arith.constant 1.000000e+00 : f32
    %229 = vector.broadcast %cst_73 : f32 to vector<1x1xf32>
    %230 = arith.maximumf %228, %229 : vector<1x1xf32>
    %cst_74 = arith.constant dense<0.000000e+00> : vector<32xf32>
    %231 = vector.multi_reduction <add>, %225, %cst_74 [0] : vector<16x32xf32> to vector<32xf32>
    %232 = vector.shape_cast %231 : vector<32xf32> to vector<1x32xf32>
    %233 = vector.broadcast %230 : vector<1x1xf32> to vector<1x32xf32>
    %234 = arith.divf %232, %233 : vector<1x32xf32>
    %cst_75 = arith.constant 0.000000e+00 : f32
    %235 = vector.broadcast %cst_75 : f32 to vector<16x1xf32>
    %236 = arith.cmpf ogt, %226, %235 : vector<16x1xf32>
    %cst_76 = arith.constant -1.000000e+30 : f32
    %237 = vector.shape_cast %236 : vector<16x1xi1> to vector<16x1xi1>
    %238 = vector.broadcast %237 : vector<16x1xi1> to vector<16x32xi1>
    %239 = vector.broadcast %cst_76 : f32 to vector<16x32xf32>
    %240 = arith.select %238, %225, %239 : vector<16x32xi1>, vector<16x32xf32>
    %cst_77 = arith.constant dense<0xFF800000> : vector<32xf32>
    %241 = vector.multi_reduction <maximumf>, %240, %cst_77 [0] : vector<16x32xf32> to vector<32xf32>
    %242 = vector.shape_cast %241 : vector<32xf32> to vector<1x32xf32>
    %243 = tpu.concatenate %242, %234 in 1 : vector<1x32xf32>, vector<1x32xf32> -> vector<1x64xf32>
    %244 = vector.extract_strided_slice %224 {offsets = [16, 0], sizes = [16, 32], strides = [1, 1]} : vector<32x32xf32> to vector<16x32xf32>
    %245 = vector.extract_strided_slice %220 {offsets = [16, 0], sizes = [16, 1], strides = [1, 1]} : vector<32x1xf32> to vector<16x1xf32>
    %cst_78 = arith.constant dense<0.000000e+00> : vector<1xf32>
    %246 = vector.multi_reduction <add>, %245, %cst_78 [0] : vector<16x1xf32> to vector<1xf32>
    %247 = vector.shape_cast %246 : vector<1xf32> to vector<1x1xf32>
    %cst_79 = arith.constant 1.000000e+00 : f32
    %248 = vector.broadcast %cst_79 : f32 to vector<1x1xf32>
    %249 = arith.maximumf %247, %248 : vector<1x1xf32>
    %cst_80 = arith.constant dense<0.000000e+00> : vector<32xf32>
    %250 = vector.multi_reduction <add>, %244, %cst_80 [0] : vector<16x32xf32> to vector<32xf32>
    %251 = vector.shape_cast %250 : vector<32xf32> to vector<1x32xf32>
    %252 = vector.broadcast %249 : vector<1x1xf32> to vector<1x32xf32>
    %253 = arith.divf %251, %252 : vector<1x32xf32>
    %cst_81 = arith.constant 0.000000e+00 : f32
    %254 = vector.broadcast %cst_81 : f32 to vector<16x1xf32>
    %255 = arith.cmpf ogt, %245, %254 : vector<16x1xf32>
    %cst_82 = arith.constant -1.000000e+30 : f32
    %256 = vector.shape_cast %255 : vector<16x1xi1> to vector<16x1xi1>
    %257 = vector.broadcast %256 : vector<16x1xi1> to vector<16x32xi1>
    %258 = vector.broadcast %cst_82 : f32 to vector<16x32xf32>
    %259 = arith.select %257, %244, %258 : vector<16x32xi1>, vector<16x32xf32>
    %cst_83 = arith.constant dense<0xFF800000> : vector<32xf32>
    %260 = vector.multi_reduction <maximumf>, %259, %cst_83 [0] : vector<16x32xf32> to vector<32xf32>
    %261 = vector.shape_cast %260 : vector<32xf32> to vector<1x32xf32>
    %262 = tpu.concatenate %261, %253 in 1 : vector<1x32xf32>, vector<1x32xf32> -> vector<1x64xf32>
    %263 = tpu.concatenate %243, %262 in 0 : vector<1x64xf32>, vector<1x64xf32> -> vector<2x64xf32>
    %264 = arith.addf %13, %263 : vector<2x64xf32>
    %265 = arith.truncf %220 : vector<32x1xf32> to vector<32x1xbf16>
    %c0_84 = arith.constant 0 : index
    %c0_85 = arith.constant 0 : index
    %266 = vector.load %arg8[%c0_84, %c0_85] : memref<32x32xf32, #tpu.memory_space<vmem>>, vector<32x32xf32>
    %c0_86 = arith.constant 0 : index
    %c0_87 = arith.constant 0 : index
    %267 = vector.load %arg9[%c0_86, %c0_87] : memref<32x32xf32, #tpu.memory_space<vmem>>, vector<32x32xf32>
    %c0_88 = arith.constant 0 : index
    %c0_89 = arith.constant 0 : index
    %268 = vector.load %arg10[%c0_88, %c0_89] : memref<1x32xf32, #tpu.memory_space<vmem>>, vector<1x32xf32>
    %cst_90 = arith.constant dense<0.000000e+00> : vector<32x1xf32>
    %269 = tpu.matmul %1, %265, %cst_90 {dimension_numbers = #tpu.dot_dimension_numbers<[1], [0], [0], [1], [0, 0, 1, 1], [], []>} : vector<32x32xbf16>, vector<32x1xbf16>, vector<32x1xf32> -> vector<32x1xf32>
    %cst_91 = arith.constant 1.000000e+00 : f32
    %270 = vector.broadcast %cst_91 : f32 to vector<32x1xf32>
    %271 = arith.maximumf %269, %270 : vector<32x1xf32>
    %cst_92 = arith.constant 1.000000e+00 : f32
    %272 = vector.broadcast %cst_92 : f32 to vector<32x1xf32>
    %273 = arith.divf %272, %271 : vector<32x1xf32>
    %274 = arith.truncf %224 : vector<32x32xf32> to vector<32x32xbf16>
    %cst_93 = arith.constant dense<0.000000e+00> : vector<32x32xf32>
    %275 = tpu.matmul %1, %274, %cst_93 {dimension_numbers = #tpu.dot_dimension_numbers<[1], [0], [0], [1], [0, 0, 1, 1], [], []>} : vector<32x32xbf16>, vector<32x32xbf16>, vector<32x32xf32> -> vector<32x32xf32>
    %276 = vector.broadcast %273 : vector<32x1xf32> to vector<32x32xf32>
    %277 = arith.mulf %275, %276 : vector<32x32xf32>
    %278 = arith.truncf %277 : vector<32x32xf32> to vector<32x32xbf16>
    %279 = arith.truncf %266 : vector<32x32xf32> to vector<32x32xbf16>
    %cst_94 = arith.constant dense<0.000000e+00> : vector<32x32xf32>
    %280 = tpu.matmul %278, %279, %cst_94 {dimension_numbers = #tpu.dot_dimension_numbers<[1], [0], [0], [1], [0, 0, 1, 1], [], []>} : vector<32x32xbf16>, vector<32x32xbf16>, vector<32x32xf32> -> vector<32x32xf32>
    %281 = arith.truncf %224 : vector<32x32xf32> to vector<32x32xbf16>
    %282 = arith.truncf %267 : vector<32x32xf32> to vector<32x32xbf16>
    %cst_95 = arith.constant dense<0.000000e+00> : vector<32x32xf32>
    %283 = tpu.matmul %281, %282, %cst_95 {dimension_numbers = #tpu.dot_dimension_numbers<[1], [0], [0], [1], [0, 0, 1, 1], [], []>} : vector<32x32xbf16>, vector<32x32xbf16>, vector<32x32xf32> -> vector<32x32xf32>
    %284 = arith.addf %280, %283 : vector<32x32xf32>
    %285 = vector.broadcast %268 : vector<1x32xf32> to vector<32x32xf32>
    %286 = arith.addf %284, %285 : vector<32x32xf32>
    %cst_96 = arith.constant 0.000000e+00 : f32
    %287 = vector.broadcast %cst_96 : f32 to vector<32x32xf32>
    %288 = arith.maximumf %286, %287 : vector<32x32xf32>
    %289 = vector.broadcast %220 : vector<32x1xf32> to vector<32x32xf32>
    %290 = arith.mulf %288, %289 : vector<32x32xf32>
    %c0_97 = arith.constant 0 : index
    %c0_98 = arith.constant 0 : index
    %291 = vector.load %arg11[%c0_97, %c0_98] : memref<32x1xf32, #tpu.memory_space<vmem>>, vector<32x1xf32>
    %c0_99 = arith.constant 0 : index
    %c0_100 = arith.constant 0 : index
    %292 = vector.load %arg12[%c0_99, %c0_100] : memref<32x1xf32, #tpu.memory_space<vmem>>, vector<32x1xf32>
    %c0_101 = arith.constant 0 : index
    %c0_102 = arith.constant 0 : index
    %293 = vector.load %arg13[%c0_101, %c0_102] : memref<1x1xf32, #tpu.memory_space<vmem>>, vector<1x1xf32>
    %cst_103 = arith.constant dense<0.000000e+00> : vector<32x1xf32>
    %294 = tpu.matmul %1, %265, %cst_103 {dimension_numbers = #tpu.dot_dimension_numbers<[1], [0], [0], [1], [0, 0, 1, 1], [], []>} : vector<32x32xbf16>, vector<32x1xbf16>, vector<32x1xf32> -> vector<32x1xf32>
    %cst_104 = arith.constant 1.000000e+00 : f32
    %295 = vector.broadcast %cst_104 : f32 to vector<32x1xf32>
    %296 = arith.maximumf %294, %295 : vector<32x1xf32>
    %cst_105 = arith.constant 1.000000e+00 : f32
    %297 = vector.broadcast %cst_105 : f32 to vector<32x1xf32>
    %298 = arith.divf %297, %296 : vector<32x1xf32>
    %299 = arith.truncf %290 : vector<32x32xf32> to vector<32x32xbf16>
    %cst_106 = arith.constant dense<0.000000e+00> : vector<32x32xf32>
    %300 = tpu.matmul %1, %299, %cst_106 {dimension_numbers = #tpu.dot_dimension_numbers<[1], [0], [0], [1], [0, 0, 1, 1], [], []>} : vector<32x32xbf16>, vector<32x32xbf16>, vector<32x32xf32> -> vector<32x32xf32>
    %301 = vector.broadcast %298 : vector<32x1xf32> to vector<32x32xf32>
    %302 = arith.mulf %300, %301 : vector<32x32xf32>
    %303 = arith.truncf %302 : vector<32x32xf32> to vector<32x32xbf16>
    %304 = arith.truncf %291 : vector<32x1xf32> to vector<32x1xbf16>
    %cst_107 = arith.constant dense<0.000000e+00> : vector<32x1xf32>
    %305 = tpu.matmul %303, %304, %cst_107 {dimension_numbers = #tpu.dot_dimension_numbers<[1], [0], [0], [1], [0, 0, 1, 1], [], []>} : vector<32x32xbf16>, vector<32x1xbf16>, vector<32x1xf32> -> vector<32x1xf32>
    %306 = arith.truncf %290 : vector<32x32xf32> to vector<32x32xbf16>
    %307 = arith.truncf %292 : vector<32x1xf32> to vector<32x1xbf16>
    %cst_108 = arith.constant dense<0.000000e+00> : vector<32x1xf32>
    %308 = tpu.matmul %306, %307, %cst_108 {dimension_numbers = #tpu.dot_dimension_numbers<[1], [0], [0], [1], [0, 0, 1, 1], [], []>} : vector<32x32xbf16>, vector<32x1xbf16>, vector<32x1xf32> -> vector<32x1xf32>
    %309 = arith.addf %305, %308 : vector<32x1xf32>
    %310 = vector.broadcast %293 : vector<1x1xf32> to vector<32x1xf32>
    %311 = arith.addf %309, %310 : vector<32x1xf32>
    %312 = math.tanh %311 : vector<32x1xf32>
    %cst_109 = arith.constant 0.000000e+00 : f32
    %313 = vector.broadcast %cst_109 : f32 to vector<32x1xf32>
    %314 = arith.cmpf ogt, %220, %313 : vector<32x1xf32>
    %cst_110 = arith.constant -1.000000e+30 : f32
    %315 = vector.broadcast %cst_110 : f32 to vector<32x1xf32>
    %316 = arith.select %314, %312, %315 : vector<32x1xi1>, vector<32x1xf32>
    %317 = vector.extract_strided_slice %316 {offsets = [0, 0], sizes = [16, 1], strides = [1, 1]} : vector<32x1xf32> to vector<16x1xf32>
    %318 = tpu.iota {dimensions = array<i32: 0>} : vector<16x1xi32>
    %cst_111 = arith.constant 0.000000e+00 : f32
    %319 = vector.broadcast %cst_111 : f32 to vector<16x1xf32>
    %cst_112 = arith.constant dense<0xFF800000> : vector<1xf32>
    %320 = vector.multi_reduction <maximumf>, %317, %cst_112 [0] : vector<16x1xf32> to vector<1xf32>
    %321 = vector.shape_cast %320 : vector<1xf32> to vector<1x1xf32>
    %322 = vector.broadcast %321 : vector<1x1xf32> to vector<16x1xf32>
    %323 = arith.cmpf oge, %317, %322 : vector<16x1xf32>
    %cst_113 = arith.constant -5.000000e+29 : f32
    %324 = vector.broadcast %cst_113 : f32 to vector<16x1xf32>
    %325 = arith.cmpf ogt, %317, %324 : vector<16x1xf32>
    %326 = arith.andi %323, %325 : vector<16x1xi1>
    %c16_i32_114 = arith.constant 16 : i32
    %327 = vector.broadcast %c16_i32_114 : i32 to vector<16x1xi32>
    %328 = arith.select %326, %318, %327 : vector<16x1xi1>, vector<16x1xi32>
    %cst_115 = arith.constant dense<2147483647> : vector<1xi32>
    %329 = vector.multi_reduction <minsi>, %328, %cst_115 [0] : vector<16x1xi32> to vector<1xi32>
    %330 = vector.shape_cast %329 : vector<1xi32> to vector<1x1xi32>
    %331 = vector.broadcast %330 : vector<1x1xi32> to vector<16x1xi32>
    %332 = arith.cmpi eq, %318, %331 : vector<16x1xi32>
    %333 = arith.andi %326, %332 : vector<16x1xi1>
    %334 = arith.extui %333 : vector<16x1xi1> to vector<16x1xi32>
    %335 = arith.sitofp %334 : vector<16x1xi32> to vector<16x1xf32>
    %336 = arith.addf %319, %335 : vector<16x1xf32>
    %337 = vector.extract_strided_slice %316 {offsets = [16, 0], sizes = [16, 1], strides = [1, 1]} : vector<32x1xf32> to vector<16x1xf32>
    %338 = tpu.iota {dimensions = array<i32: 0>} : vector<16x1xi32>
    %cst_116 = arith.constant 0.000000e+00 : f32
    %339 = vector.broadcast %cst_116 : f32 to vector<16x1xf32>
    %cst_117 = arith.constant dense<0xFF800000> : vector<1xf32>
    %340 = vector.multi_reduction <maximumf>, %337, %cst_117 [0] : vector<16x1xf32> to vector<1xf32>
    %341 = vector.shape_cast %340 : vector<1xf32> to vector<1x1xf32>
    %342 = vector.broadcast %341 : vector<1x1xf32> to vector<16x1xf32>
    %343 = arith.cmpf oge, %337, %342 : vector<16x1xf32>
    %cst_118 = arith.constant -5.000000e+29 : f32
    %344 = vector.broadcast %cst_118 : f32 to vector<16x1xf32>
    %345 = arith.cmpf ogt, %337, %344 : vector<16x1xf32>
    %346 = arith.andi %343, %345 : vector<16x1xi1>
    %c16_i32_119 = arith.constant 16 : i32
    %347 = vector.broadcast %c16_i32_119 : i32 to vector<16x1xi32>
    %348 = arith.select %346, %338, %347 : vector<16x1xi1>, vector<16x1xi32>
    %cst_120 = arith.constant dense<2147483647> : vector<1xi32>
    %349 = vector.multi_reduction <minsi>, %348, %cst_120 [0] : vector<16x1xi32> to vector<1xi32>
    %350 = vector.shape_cast %349 : vector<1xi32> to vector<1x1xi32>
    %351 = vector.broadcast %350 : vector<1x1xi32> to vector<16x1xi32>
    %352 = arith.cmpi eq, %338, %351 : vector<16x1xi32>
    %353 = arith.andi %346, %352 : vector<16x1xi1>
    %354 = arith.extui %353 : vector<16x1xi1> to vector<16x1xi32>
    %355 = arith.sitofp %354 : vector<16x1xi32> to vector<16x1xf32>
    %356 = arith.addf %339, %355 : vector<16x1xf32>
    %357 = tpu.concatenate %336, %356 in 0 : vector<16x1xf32>, vector<16x1xf32> -> vector<32x1xf32>
    %358 = vector.broadcast %312 : vector<32x1xf32> to vector<32x32xf32>
    %359 = arith.mulf %290, %358 : vector<32x32xf32>
    %360 = vector.broadcast %357 : vector<32x1xf32> to vector<32x32xf32>
    %361 = arith.mulf %359, %360 : vector<32x32xf32>
    %362 = vector.extract_strided_slice %361 {offsets = [0, 0], sizes = [16, 32], strides = [1, 1]} : vector<32x32xf32> to vector<16x32xf32>
    %363 = vector.extract_strided_slice %357 {offsets = [0, 0], sizes = [16, 1], strides = [1, 1]} : vector<32x1xf32> to vector<16x1xf32>
    %cst_121 = arith.constant dense<0.000000e+00> : vector<1xf32>
    %364 = vector.multi_reduction <add>, %363, %cst_121 [0] : vector<16x1xf32> to vector<1xf32>
    %365 = vector.shape_cast %364 : vector<1xf32> to vector<1x1xf32>
    %cst_122 = arith.constant 1.000000e+00 : f32
    %366 = vector.broadcast %cst_122 : f32 to vector<1x1xf32>
    %367 = arith.maximumf %365, %366 : vector<1x1xf32>
    %cst_123 = arith.constant dense<0.000000e+00> : vector<32xf32>
    %368 = vector.multi_reduction <add>, %362, %cst_123 [0] : vector<16x32xf32> to vector<32xf32>
    %369 = vector.shape_cast %368 : vector<32xf32> to vector<1x32xf32>
    %370 = vector.broadcast %367 : vector<1x1xf32> to vector<1x32xf32>
    %371 = arith.divf %369, %370 : vector<1x32xf32>
    %cst_124 = arith.constant 0.000000e+00 : f32
    %372 = vector.broadcast %cst_124 : f32 to vector<16x1xf32>
    %373 = arith.cmpf ogt, %363, %372 : vector<16x1xf32>
    %cst_125 = arith.constant -1.000000e+30 : f32
    %374 = vector.shape_cast %373 : vector<16x1xi1> to vector<16x1xi1>
    %375 = vector.broadcast %374 : vector<16x1xi1> to vector<16x32xi1>
    %376 = vector.broadcast %cst_125 : f32 to vector<16x32xf32>
    %377 = arith.select %375, %362, %376 : vector<16x32xi1>, vector<16x32xf32>
    %cst_126 = arith.constant dense<0xFF800000> : vector<32xf32>
    %378 = vector.multi_reduction <maximumf>, %377, %cst_126 [0] : vector<16x32xf32> to vector<32xf32>
    %379 = vector.shape_cast %378 : vector<32xf32> to vector<1x32xf32>
    %380 = tpu.concatenate %379, %371 in 1 : vector<1x32xf32>, vector<1x32xf32> -> vector<1x64xf32>
    %381 = vector.extract_strided_slice %361 {offsets = [16, 0], sizes = [16, 32], strides = [1, 1]} : vector<32x32xf32> to vector<16x32xf32>
    %382 = vector.extract_strided_slice %357 {offsets = [16, 0], sizes = [16, 1], strides = [1, 1]} : vector<32x1xf32> to vector<16x1xf32>
    %cst_127 = arith.constant dense<0.000000e+00> : vector<1xf32>
    %383 = vector.multi_reduction <add>, %382, %cst_127 [0] : vector<16x1xf32> to vector<1xf32>
    %384 = vector.shape_cast %383 : vector<1xf32> to vector<1x1xf32>
    %cst_128 = arith.constant 1.000000e+00 : f32
    %385 = vector.broadcast %cst_128 : f32 to vector<1x1xf32>
    %386 = arith.maximumf %384, %385 : vector<1x1xf32>
    %cst_129 = arith.constant dense<0.000000e+00> : vector<32xf32>
    %387 = vector.multi_reduction <add>, %381, %cst_129 [0] : vector<16x32xf32> to vector<32xf32>
    %388 = vector.shape_cast %387 : vector<32xf32> to vector<1x32xf32>
    %389 = vector.broadcast %386 : vector<1x1xf32> to vector<1x32xf32>
    %390 = arith.divf %388, %389 : vector<1x32xf32>
    %cst_130 = arith.constant 0.000000e+00 : f32
    %391 = vector.broadcast %cst_130 : f32 to vector<16x1xf32>
    %392 = arith.cmpf ogt, %382, %391 : vector<16x1xf32>
    %cst_131 = arith.constant -1.000000e+30 : f32
    %393 = vector.shape_cast %392 : vector<16x1xi1> to vector<16x1xi1>
    %394 = vector.broadcast %393 : vector<16x1xi1> to vector<16x32xi1>
    %395 = vector.broadcast %cst_131 : f32 to vector<16x32xf32>
    %396 = arith.select %394, %381, %395 : vector<16x32xi1>, vector<16x32xf32>
    %cst_132 = arith.constant dense<0xFF800000> : vector<32xf32>
    %397 = vector.multi_reduction <maximumf>, %396, %cst_132 [0] : vector<16x32xf32> to vector<32xf32>
    %398 = vector.shape_cast %397 : vector<32xf32> to vector<1x32xf32>
    %399 = tpu.concatenate %398, %390 in 1 : vector<1x32xf32>, vector<1x32xf32> -> vector<1x64xf32>
    %400 = tpu.concatenate %380, %399 in 0 : vector<1x64xf32>, vector<1x64xf32> -> vector<2x64xf32>
    %401 = arith.addf %264, %400 : vector<2x64xf32>
    %402 = arith.truncf %357 : vector<32x1xf32> to vector<32x1xbf16>
    %c0_133 = arith.constant 0 : index
    %c0_134 = arith.constant 0 : index
    %403 = vector.load %arg14[%c0_133, %c0_134] : memref<32x32xf32, #tpu.memory_space<vmem>>, vector<32x32xf32>
    %c0_135 = arith.constant 0 : index
    %c0_136 = arith.constant 0 : index
    %404 = vector.load %arg15[%c0_135, %c0_136] : memref<32x32xf32, #tpu.memory_space<vmem>>, vector<32x32xf32>
    %c0_137 = arith.constant 0 : index
    %c0_138 = arith.constant 0 : index
    %405 = vector.load %arg16[%c0_137, %c0_138] : memref<1x32xf32, #tpu.memory_space<vmem>>, vector<1x32xf32>
    %cst_139 = arith.constant dense<0.000000e+00> : vector<32x1xf32>
    %406 = tpu.matmul %1, %402, %cst_139 {dimension_numbers = #tpu.dot_dimension_numbers<[1], [0], [0], [1], [0, 0, 1, 1], [], []>} : vector<32x32xbf16>, vector<32x1xbf16>, vector<32x1xf32> -> vector<32x1xf32>
    %cst_140 = arith.constant 1.000000e+00 : f32
    %407 = vector.broadcast %cst_140 : f32 to vector<32x1xf32>
    %408 = arith.maximumf %406, %407 : vector<32x1xf32>
    %cst_141 = arith.constant 1.000000e+00 : f32
    %409 = vector.broadcast %cst_141 : f32 to vector<32x1xf32>
    %410 = arith.divf %409, %408 : vector<32x1xf32>
    %411 = arith.truncf %361 : vector<32x32xf32> to vector<32x32xbf16>
    %cst_142 = arith.constant dense<0.000000e+00> : vector<32x32xf32>
    %412 = tpu.matmul %1, %411, %cst_142 {dimension_numbers = #tpu.dot_dimension_numbers<[1], [0], [0], [1], [0, 0, 1, 1], [], []>} : vector<32x32xbf16>, vector<32x32xbf16>, vector<32x32xf32> -> vector<32x32xf32>
    %413 = vector.broadcast %410 : vector<32x1xf32> to vector<32x32xf32>
    %414 = arith.mulf %412, %413 : vector<32x32xf32>
    %415 = arith.truncf %414 : vector<32x32xf32> to vector<32x32xbf16>
    %416 = arith.truncf %403 : vector<32x32xf32> to vector<32x32xbf16>
    %cst_143 = arith.constant dense<0.000000e+00> : vector<32x32xf32>
    %417 = tpu.matmul %415, %416, %cst_143 {dimension_numbers = #tpu.dot_dimension_numbers<[1], [0], [0], [1], [0, 0, 1, 1], [], []>} : vector<32x32xbf16>, vector<32x32xbf16>, vector<32x32xf32> -> vector<32x32xf32>
    %418 = arith.truncf %361 : vector<32x32xf32> to vector<32x32xbf16>
    %419 = arith.truncf %404 : vector<32x32xf32> to vector<32x32xbf16>
    %cst_144 = arith.constant dense<0.000000e+00> : vector<32x32xf32>
    %420 = tpu.matmul %418, %419, %cst_144 {dimension_numbers = #tpu.dot_dimension_numbers<[1], [0], [0], [1], [0, 0, 1, 1], [], []>} : vector<32x32xbf16>, vector<32x32xbf16>, vector<32x32xf32> -> vector<32x32xf32>
    %421 = arith.addf %417, %420 : vector<32x32xf32>
    %422 = vector.broadcast %405 : vector<1x32xf32> to vector<32x32xf32>
    %423 = arith.addf %421, %422 : vector<32x32xf32>
    %cst_145 = arith.constant 0.000000e+00 : f32
    %424 = vector.broadcast %cst_145 : f32 to vector<32x32xf32>
    %425 = arith.maximumf %423, %424 : vector<32x32xf32>
    %426 = vector.broadcast %357 : vector<32x1xf32> to vector<32x32xf32>
    %427 = arith.mulf %425, %426 : vector<32x32xf32>
    %c0_146 = arith.constant 0 : index
    %c0_147 = arith.constant 0 : index
    %428 = vector.load %arg17[%c0_146, %c0_147] : memref<32x1xf32, #tpu.memory_space<vmem>>, vector<32x1xf32>
    %c0_148 = arith.constant 0 : index
    %c0_149 = arith.constant 0 : index
    %429 = vector.load %arg18[%c0_148, %c0_149] : memref<32x1xf32, #tpu.memory_space<vmem>>, vector<32x1xf32>
    %c0_150 = arith.constant 0 : index
    %c0_151 = arith.constant 0 : index
    %430 = vector.load %arg19[%c0_150, %c0_151] : memref<1x1xf32, #tpu.memory_space<vmem>>, vector<1x1xf32>
    %cst_152 = arith.constant dense<0.000000e+00> : vector<32x1xf32>
    %431 = tpu.matmul %1, %402, %cst_152 {dimension_numbers = #tpu.dot_dimension_numbers<[1], [0], [0], [1], [0, 0, 1, 1], [], []>} : vector<32x32xbf16>, vector<32x1xbf16>, vector<32x1xf32> -> vector<32x1xf32>
    %cst_153 = arith.constant 1.000000e+00 : f32
    %432 = vector.broadcast %cst_153 : f32 to vector<32x1xf32>
    %433 = arith.maximumf %431, %432 : vector<32x1xf32>
    %cst_154 = arith.constant 1.000000e+00 : f32
    %434 = vector.broadcast %cst_154 : f32 to vector<32x1xf32>
    %435 = arith.divf %434, %433 : vector<32x1xf32>
    %436 = arith.truncf %427 : vector<32x32xf32> to vector<32x32xbf16>
    %cst_155 = arith.constant dense<0.000000e+00> : vector<32x32xf32>
    %437 = tpu.matmul %1, %436, %cst_155 {dimension_numbers = #tpu.dot_dimension_numbers<[1], [0], [0], [1], [0, 0, 1, 1], [], []>} : vector<32x32xbf16>, vector<32x32xbf16>, vector<32x32xf32> -> vector<32x32xf32>
    %438 = vector.broadcast %435 : vector<32x1xf32> to vector<32x32xf32>
    %439 = arith.mulf %437, %438 : vector<32x32xf32>
    %440 = arith.truncf %439 : vector<32x32xf32> to vector<32x32xbf16>
    %441 = arith.truncf %428 : vector<32x1xf32> to vector<32x1xbf16>
    %cst_156 = arith.constant dense<0.000000e+00> : vector<32x1xf32>
    %442 = tpu.matmul %440, %441, %cst_156 {dimension_numbers = #tpu.dot_dimension_numbers<[1], [0], [0], [1], [0, 0, 1, 1], [], []>} : vector<32x32xbf16>, vector<32x1xbf16>, vector<32x1xf32> -> vector<32x1xf32>
    %443 = arith.truncf %427 : vector<32x32xf32> to vector<32x32xbf16>
    %444 = arith.truncf %429 : vector<32x1xf32> to vector<32x1xbf16>
    %cst_157 = arith.constant dense<0.000000e+00> : vector<32x1xf32>
    %445 = tpu.matmul %443, %444, %cst_157 {dimension_numbers = #tpu.dot_dimension_numbers<[1], [0], [0], [1], [0, 0, 1, 1], [], []>} : vector<32x32xbf16>, vector<32x1xbf16>, vector<32x1xf32> -> vector<32x1xf32>
    %446 = arith.addf %442, %445 : vector<32x1xf32>
    %447 = vector.broadcast %430 : vector<1x1xf32> to vector<32x1xf32>
    %448 = arith.addf %446, %447 : vector<32x1xf32>
    %449 = math.tanh %448 : vector<32x1xf32>
    %cst_158 = arith.constant 0.000000e+00 : f32
    %450 = vector.broadcast %cst_158 : f32 to vector<32x1xf32>
    %451 = arith.cmpf ogt, %357, %450 : vector<32x1xf32>
    %cst_159 = arith.constant -1.000000e+30 : f32
    %452 = vector.broadcast %cst_159 : f32 to vector<32x1xf32>
    %453 = arith.select %451, %449, %452 : vector<32x1xi1>, vector<32x1xf32>
    %454 = vector.extract_strided_slice %453 {offsets = [0, 0], sizes = [16, 1], strides = [1, 1]} : vector<32x1xf32> to vector<16x1xf32>
    %455 = tpu.iota {dimensions = array<i32: 0>} : vector<16x1xi32>
    %cst_160 = arith.constant 0.000000e+00 : f32
    %456 = vector.broadcast %cst_160 : f32 to vector<16x1xf32>
    %cst_161 = arith.constant dense<0xFF800000> : vector<1xf32>
    %457 = vector.multi_reduction <maximumf>, %454, %cst_161 [0] : vector<16x1xf32> to vector<1xf32>
    %458 = vector.shape_cast %457 : vector<1xf32> to vector<1x1xf32>
    %459 = vector.broadcast %458 : vector<1x1xf32> to vector<16x1xf32>
    %460 = arith.cmpf oge, %454, %459 : vector<16x1xf32>
    %cst_162 = arith.constant -5.000000e+29 : f32
    %461 = vector.broadcast %cst_162 : f32 to vector<16x1xf32>
    %462 = arith.cmpf ogt, %454, %461 : vector<16x1xf32>
    %463 = arith.andi %460, %462 : vector<16x1xi1>
    %c16_i32_163 = arith.constant 16 : i32
    %464 = vector.broadcast %c16_i32_163 : i32 to vector<16x1xi32>
    %465 = arith.select %463, %455, %464 : vector<16x1xi1>, vector<16x1xi32>
    %cst_164 = arith.constant dense<2147483647> : vector<1xi32>
    %466 = vector.multi_reduction <minsi>, %465, %cst_164 [0] : vector<16x1xi32> to vector<1xi32>
    %467 = vector.shape_cast %466 : vector<1xi32> to vector<1x1xi32>
    %468 = vector.broadcast %467 : vector<1x1xi32> to vector<16x1xi32>
    %469 = arith.cmpi eq, %455, %468 : vector<16x1xi32>
    %470 = arith.andi %463, %469 : vector<16x1xi1>
    %471 = arith.extui %470 : vector<16x1xi1> to vector<16x1xi32>
    %472 = arith.sitofp %471 : vector<16x1xi32> to vector<16x1xf32>
    %473 = arith.addf %456, %472 : vector<16x1xf32>
    %474 = vector.extract_strided_slice %453 {offsets = [16, 0], sizes = [16, 1], strides = [1, 1]} : vector<32x1xf32> to vector<16x1xf32>
    %475 = tpu.iota {dimensions = array<i32: 0>} : vector<16x1xi32>
    %cst_165 = arith.constant 0.000000e+00 : f32
    %476 = vector.broadcast %cst_165 : f32 to vector<16x1xf32>
    %cst_166 = arith.constant dense<0xFF800000> : vector<1xf32>
    %477 = vector.multi_reduction <maximumf>, %474, %cst_166 [0] : vector<16x1xf32> to vector<1xf32>
    %478 = vector.shape_cast %477 : vector<1xf32> to vector<1x1xf32>
    %479 = vector.broadcast %478 : vector<1x1xf32> to vector<16x1xf32>
    %480 = arith.cmpf oge, %474, %479 : vector<16x1xf32>
    %cst_167 = arith.constant -5.000000e+29 : f32
    %481 = vector.broadcast %cst_167 : f32 to vector<16x1xf32>
    %482 = arith.cmpf ogt, %474, %481 : vector<16x1xf32>
    %483 = arith.andi %480, %482 : vector<16x1xi1>
    %c16_i32_168 = arith.constant 16 : i32
    %484 = vector.broadcast %c16_i32_168 : i32 to vector<16x1xi32>
    %485 = arith.select %483, %475, %484 : vector<16x1xi1>, vector<16x1xi32>
    %cst_169 = arith.constant dense<2147483647> : vector<1xi32>
    %486 = vector.multi_reduction <minsi>, %485, %cst_169 [0] : vector<16x1xi32> to vector<1xi32>
    %487 = vector.shape_cast %486 : vector<1xi32> to vector<1x1xi32>
    %488 = vector.broadcast %487 : vector<1x1xi32> to vector<16x1xi32>
    %489 = arith.cmpi eq, %475, %488 : vector<16x1xi32>
    %490 = arith.andi %483, %489 : vector<16x1xi1>
    %491 = arith.extui %490 : vector<16x1xi1> to vector<16x1xi32>
    %492 = arith.sitofp %491 : vector<16x1xi32> to vector<16x1xf32>
    %493 = arith.addf %476, %492 : vector<16x1xf32>
    %494 = tpu.concatenate %473, %493 in 0 : vector<16x1xf32>, vector<16x1xf32> -> vector<32x1xf32>
    %495 = vector.broadcast %449 : vector<32x1xf32> to vector<32x32xf32>
    %496 = arith.mulf %427, %495 : vector<32x32xf32>
    %497 = vector.broadcast %494 : vector<32x1xf32> to vector<32x32xf32>
    %498 = arith.mulf %496, %497 : vector<32x32xf32>
    %499 = vector.extract_strided_slice %498 {offsets = [0, 0], sizes = [16, 32], strides = [1, 1]} : vector<32x32xf32> to vector<16x32xf32>
    %500 = vector.extract_strided_slice %494 {offsets = [0, 0], sizes = [16, 1], strides = [1, 1]} : vector<32x1xf32> to vector<16x1xf32>
    %cst_170 = arith.constant dense<0.000000e+00> : vector<1xf32>
    %501 = vector.multi_reduction <add>, %500, %cst_170 [0] : vector<16x1xf32> to vector<1xf32>
    %502 = vector.shape_cast %501 : vector<1xf32> to vector<1x1xf32>
    %cst_171 = arith.constant 1.000000e+00 : f32
    %503 = vector.broadcast %cst_171 : f32 to vector<1x1xf32>
    %504 = arith.maximumf %502, %503 : vector<1x1xf32>
    %cst_172 = arith.constant dense<0.000000e+00> : vector<32xf32>
    %505 = vector.multi_reduction <add>, %499, %cst_172 [0] : vector<16x32xf32> to vector<32xf32>
    %506 = vector.shape_cast %505 : vector<32xf32> to vector<1x32xf32>
    %507 = vector.broadcast %504 : vector<1x1xf32> to vector<1x32xf32>
    %508 = arith.divf %506, %507 : vector<1x32xf32>
    %cst_173 = arith.constant 0.000000e+00 : f32
    %509 = vector.broadcast %cst_173 : f32 to vector<16x1xf32>
    %510 = arith.cmpf ogt, %500, %509 : vector<16x1xf32>
    %cst_174 = arith.constant -1.000000e+30 : f32
    %511 = vector.shape_cast %510 : vector<16x1xi1> to vector<16x1xi1>
    %512 = vector.broadcast %511 : vector<16x1xi1> to vector<16x32xi1>
    %513 = vector.broadcast %cst_174 : f32 to vector<16x32xf32>
    %514 = arith.select %512, %499, %513 : vector<16x32xi1>, vector<16x32xf32>
    %cst_175 = arith.constant dense<0xFF800000> : vector<32xf32>
    %515 = vector.multi_reduction <maximumf>, %514, %cst_175 [0] : vector<16x32xf32> to vector<32xf32>
    %516 = vector.shape_cast %515 : vector<32xf32> to vector<1x32xf32>
    %517 = tpu.concatenate %516, %508 in 1 : vector<1x32xf32>, vector<1x32xf32> -> vector<1x64xf32>
    %518 = vector.extract_strided_slice %498 {offsets = [16, 0], sizes = [16, 32], strides = [1, 1]} : vector<32x32xf32> to vector<16x32xf32>
    %519 = vector.extract_strided_slice %494 {offsets = [16, 0], sizes = [16, 1], strides = [1, 1]} : vector<32x1xf32> to vector<16x1xf32>
    %cst_176 = arith.constant dense<0.000000e+00> : vector<1xf32>
    %520 = vector.multi_reduction <add>, %519, %cst_176 [0] : vector<16x1xf32> to vector<1xf32>
    %521 = vector.shape_cast %520 : vector<1xf32> to vector<1x1xf32>
    %cst_177 = arith.constant 1.000000e+00 : f32
    %522 = vector.broadcast %cst_177 : f32 to vector<1x1xf32>
    %523 = arith.maximumf %521, %522 : vector<1x1xf32>
    %cst_178 = arith.constant dense<0.000000e+00> : vector<32xf32>
    %524 = vector.multi_reduction <add>, %518, %cst_178 [0] : vector<16x32xf32> to vector<32xf32>
    %525 = vector.shape_cast %524 : vector<32xf32> to vector<1x32xf32>
    %526 = vector.broadcast %523 : vector<1x1xf32> to vector<1x32xf32>
    %527 = arith.divf %525, %526 : vector<1x32xf32>
    %cst_179 = arith.constant 0.000000e+00 : f32
    %528 = vector.broadcast %cst_179 : f32 to vector<16x1xf32>
    %529 = arith.cmpf ogt, %519, %528 : vector<16x1xf32>
    %cst_180 = arith.constant -1.000000e+30 : f32
    %530 = vector.shape_cast %529 : vector<16x1xi1> to vector<16x1xi1>
    %531 = vector.broadcast %530 : vector<16x1xi1> to vector<16x32xi1>
    %532 = vector.broadcast %cst_180 : f32 to vector<16x32xf32>
    %533 = arith.select %531, %518, %532 : vector<16x32xi1>, vector<16x32xf32>
    %cst_181 = arith.constant dense<0xFF800000> : vector<32xf32>
    %534 = vector.multi_reduction <maximumf>, %533, %cst_181 [0] : vector<16x32xf32> to vector<32xf32>
    %535 = vector.shape_cast %534 : vector<32xf32> to vector<1x32xf32>
    %536 = tpu.concatenate %535, %527 in 1 : vector<1x32xf32>, vector<1x32xf32> -> vector<1x64xf32>
    %537 = tpu.concatenate %517, %536 in 0 : vector<1x64xf32>, vector<1x64xf32> -> vector<2x64xf32>
    %538 = arith.addf %401, %537 : vector<2x64xf32>
    %c0_182 = arith.constant 0 : index
    %c0_183 = arith.constant 0 : index
    %539 = vector.load %arg20[%c0_182, %c0_183] : memref<64x32xf32, #tpu.memory_space<vmem>>, vector<64x32xf32>
    %cst_184 = arith.constant dense<0.000000e+00> : vector<2x32xf32>
    %540 = tpu.matmul %538, %539, %cst_184 {dimension_numbers = #tpu.dot_dimension_numbers<[1], [0], [0], [1], [0, 0, 1, 1], [], []>} : vector<2x64xf32>, vector<64x32xf32>, vector<2x32xf32> -> vector<2x32xf32>
    %c0_185 = arith.constant 0 : index
    %c0_186 = arith.constant 0 : index
    %541 = vector.load %arg21[%c0_185, %c0_186] : memref<1x32xf32, #tpu.memory_space<vmem>>, vector<1x32xf32>
    %542 = vector.broadcast %541 : vector<1x32xf32> to vector<2x32xf32>
    %543 = arith.addf %540, %542 : vector<2x32xf32>
    %cst_187 = arith.constant 0.000000e+00 : f32
    %544 = vector.broadcast %cst_187 : f32 to vector<2x32xf32>
    %545 = arith.maximumf %543, %544 : vector<2x32xf32>
    %c0_188 = arith.constant 0 : index
    %c0_189 = arith.constant 0 : index
    %546 = vector.load %arg22[%c0_188, %c0_189] : memref<32x16xf32, #tpu.memory_space<vmem>>, vector<32x16xf32>
    %cst_190 = arith.constant dense<0.000000e+00> : vector<2x16xf32>
    %547 = tpu.matmul %545, %546, %cst_190 {dimension_numbers = #tpu.dot_dimension_numbers<[1], [0], [0], [1], [0, 0, 1, 1], [], []>} : vector<2x32xf32>, vector<32x16xf32>, vector<2x16xf32> -> vector<2x16xf32>
    %c0_191 = arith.constant 0 : index
    %c0_192 = arith.constant 0 : index
    %548 = vector.load %arg23[%c0_191, %c0_192] : memref<1x16xf32, #tpu.memory_space<vmem>>, vector<1x16xf32>
    %549 = vector.broadcast %548 : vector<1x16xf32> to vector<2x16xf32>
    %550 = arith.addf %547, %549 : vector<2x16xf32>
    %cst_193 = arith.constant 0.000000e+00 : f32
    %551 = vector.broadcast %cst_193 : f32 to vector<2x16xf32>
    %552 = arith.maximumf %550, %551 : vector<2x16xf32>
    %c0_194 = arith.constant 0 : index
    %c0_195 = arith.constant 0 : index
    %553 = vector.load %arg26[%c0_194, %c0_195] : memref<2x16xf32, #tpu.memory_space<vmem>>, vector<2x16xf32>
    tpu.vector_store %arg26[%c0_194, %c0_195], %552 {strides = array<i32>} : memref<2x16xf32, #tpu.memory_space<vmem>>, vector<2x16xf32>,
    %c0_196 = arith.constant 0 : index
    %c0_197 = arith.constant 0 : index
    %554 = vector.load %arg24[%c0_196, %c0_197] : memref<16x1xf32, #tpu.memory_space<vmem>>, vector<16x1xf32>
    %cst_198 = arith.constant dense<0.000000e+00> : vector<2x1xf32>
    %555 = tpu.matmul %552, %554, %cst_198 {dimension_numbers = #tpu.dot_dimension_numbers<[1], [0], [0], [1], [0, 0, 1, 1], [], []>} : vector<2x16xf32>, vector<16x1xf32>, vector<2x1xf32> -> vector<2x1xf32>
    %c0_199 = arith.constant 0 : index
    %c0_200 = arith.constant 0 : index
    %556 = vector.load %arg25[%c0_199, %c0_200] : memref<1x1xf32, #tpu.memory_space<vmem>>, vector<1x1xf32>
    %557 = vector.broadcast %556 : vector<1x1xf32> to vector<2x1xf32>
    %558 = arith.addf %555, %557 : vector<2x1xf32>
    %c0_201 = arith.constant 0 : index
    %c0_202 = arith.constant 0 : index
    %559 = vector.load %arg27[%c0_201, %c0_202] : memref<2x1xf32, #tpu.memory_space<vmem>>, vector<2x1xf32>
    tpu.vector_store %arg27[%c0_201, %c0_202], %558 {strides = array<i32>} : memref<2x1xf32, #tpu.memory_space<vmem>>, vector<2x1xf32>,
    return
  }
}

</mosaic_0001>

<llo_original>
// kernel: tpu_custom_call.1
$region0: #{tpu_custom_call.1}
  #allocation0 [shape = 'u32[]', space=smem, size = 0x4, offset = 0x4, fixed_abs, tag = 'smem constant byte address 0x4 - core index']
  #allocation1 [shape = 'u32[72,128]{1,0:T(1,128)}', space=vmem, size = 0x9000, scoped, tag = 'internal scratch']
  #allocation2 [shape = 'f32[1,1]{1,0:T(1,128)S(1)}', space=vmem, size = 0x200, scoped, tag = 'scoped memory for tpu_custom_call.1']
  #allocation3 [shape = 'f32[1,1]{1,0:T(1,128)S(1)}', space=vmem, size = 0x200, scoped, tag = 'scoped memory for tpu_custom_call.1']
  #allocation4 [shape = 'f32[1,1]{1,0:T(1,128)S(1)}', space=vmem, size = 0x200, scoped, tag = 'scoped memory for tpu_custom_call.1']
  #allocation5 [shape = 'f32[1,1]{1,0:T(1,128)S(1)}', space=vmem, size = 0x200, scoped, tag = 'scoped memory for tpu_custom_call.1']
  %s0 = inlined_call_operand.vmem [shape: f32[32,64], index: 0, kind: input, shape index: {}]
  %s1 = inlined_call_operand.vmem [shape: bf16[32,32], index: 1, kind: input, shape index: {}]
  %s2 = inlined_call_operand.vmem [shape: f32[64,32], index: 2, kind: input, shape index: {}]
  %s3 = inlined_call_operand.vmem [shape: f32[64,32], index: 3, kind: input, shape index: {}]
  %s4 = inlined_call_operand.vmem [shape: f32[1,32], index: 4, kind: input, shape index: {}]
  %s5 = inlined_call_operand.vmem [shape: f32[32,1], index: 5, kind: input, shape index: {}]
  %s6 = inlined_call_operand.vmem [shape: f32[32,1], index: 6, kind: input, shape index: {}]
  %s7 = inlined_call_operand.<no memory space> [shape: f32[1,1], index: 7, kind: input, shape index: {}]
  %s8 = inlined_call_operand.vmem [shape: f32[32,32], index: 8, kind: input, shape index: {}]
  %s9 = inlined_call_operand.vmem [shape: f32[32,32], index: 9, kind: input, shape index: {}]
  %s10 = inlined_call_operand.vmem [shape: f32[1,32], index: 10, kind: input, shape index: {}]
  %s11 = inlined_call_operand.vmem [shape: f32[32,1], index: 11, kind: input, shape index: {}]
  %s12 = inlined_call_operand.vmem [shape: f32[32,1], index: 12, kind: input, shape index: {}]
  %s13 = inlined_call_operand.<no memory space> [shape: f32[1,1], index: 13, kind: input, shape index: {}]
  %s14 = inlined_call_operand.vmem [shape: f32[32,32], index: 14, kind: input, shape index: {}]
  %s15 = inlined_call_operand.vmem [shape: f32[32,32], index: 15, kind: input, shape index: {}]
  %s16 = inlined_call_operand.vmem [shape: f32[1,32], index: 16, kind: input, shape index: {}]
  %s17 = inlined_call_operand.vmem [shape: f32[32,1], index: 17, kind: input, shape index: {}]
  %s18 = inlined_call_operand.vmem [shape: f32[32,1], index: 18, kind: input, shape index: {}]
  %s19 = inlined_call_operand.<no memory space> [shape: f32[1,1], index: 19, kind: input, shape index: {}]
  %s20 = inlined_call_operand.vmem [shape: f32[64,32], index: 20, kind: input, shape index: {}]
  %s21 = inlined_call_operand.vmem [shape: f32[1,32], index: 21, kind: input, shape index: {}]
  %s22 = inlined_call_operand.vmem [shape: f32[32,16], index: 22, kind: input, shape index: {}]
  %s23 = inlined_call_operand.vmem [shape: f32[1,16], index: 23, kind: input, shape index: {}]
  %s24 = inlined_call_operand.vmem [shape: f32[16,1], index: 24, kind: input, shape index: {}]
  %s25 = inlined_call_operand.<no memory space> [shape: f32[1,1], index: 25, kind: input, shape index: {}]
  %s26 = inlined_call_operand.hbm [shape: f32[2,16], index: 26, kind: output, shape index: {0}]
  %s27 = inlined_call_operand.vmem [shape: f32[2,1], index: 27, kind: output, shape index: {1}]
  %28 = xla_tuple %s26, %s27
  %s29 = sld [smem:[#allocation0]]
  $region122: #{tpu_custom_call.1} parent=0
    _
  %s31 = ssub.s32 1, %s29
  %s32 = scalar_select 0, %s31, %s29
  %v33 = vstv %s7
  %34 = vst [vmem:[#allocation2] sm:$0x1] %v33
  %v35 = vstv %s13
  %36 = vst [vmem:[#allocation3] sm:$0x1] %v35
  %v37 = vstv %s19
  %38 = vst [vmem:[#allocation4] sm:$0x1] %v37
  %v39 = vstv %s25
  %40 = vst [vmem:[#allocation5] sm:$0x1] %v39
  $region1: #{tpu_custom_call.1} parent=0
    #allocation6 [shape = 'u8[1024]{0}', space=vmem, size = 0x400, scoped, tag = 'output window, operand 0, single buffered']
    #allocation7 [shape = 's32[1]{0}', space=sflag, size = 0x4, scoped, tag = 'scoped memory for tpu_custom_call.1']
    %41 = vsyncpa [#allocation7], 0
    // Predicated region
    $region2: #{tpu_custom_call.1} parent=1 // pred_check
      _
    $region3: #{tpu_custom_call.1} parent=1 // pred_check_branch
      %43 = sbr.rel (0) target = $region5
    $region4: #{tpu_custom_call.1} parent=1 // pred_region
      _
    $region5: #{tpu_custom_call.1} parent=1 // pred_fallthru
      _
    // Predicated region
    $region6: #{tpu_custom_call.1} parent=1 // pred_check
      _
    $region7: #{tpu_custom_call.1} parent=1 // pred_check_branch
      %45 = sbr.rel (0) target = $region9
    $region8: #{tpu_custom_call.1} parent=1 // pred_region
      _
    $region9: #{tpu_custom_call.1} parent=1 // pred_fallthru
      _
    // Predicated region
    $region10: #{tpu_custom_call.1} parent=1 // pred_check
      _
    $region11: #{tpu_custom_call.1} parent=1 // pred_check_branch
      %47 = sbr.rel (0) target = $region13
    $region12: #{tpu_custom_call.1} parent=1 // pred_region
      _
    $region13: #{tpu_custom_call.1} parent=1 // pred_fallthru
      _
    // Predicated region
    $region14: #{tpu_custom_call.1} parent=1 // pred_check
      _
    $region15: #{tpu_custom_call.1} parent=1 // pred_check_branch
      %49 = sbr.rel (0) target = $region17
    $region16: #{tpu_custom_call.1} parent=1 // pred_region
      _
    $region17: #{tpu_custom_call.1} parent=1 // pred_fallthru
      _
    // Predicated region
    $region18: #{tpu_custom_call.1} parent=1 // pred_check
      _
    $region19: #{tpu_custom_call.1} parent=1 // pred_check_branch
      %51 = sbr.rel (0) target = $region21
    $region20: #{tpu_custom_call.1} parent=1 // pred_region
      _
    $region21: #{tpu_custom_call.1} parent=1 // pred_fallthru
      _
    // Predicated region
    $region22: #{tpu_custom_call.1} parent=1 // pred_check
      _
    $region23: #{tpu_custom_call.1} parent=1 // pred_check_branch
      %53 = sbr.rel (0) target = $region25
    $region24: #{tpu_custom_call.1} parent=1 // pred_region
      _
    $region25: #{tpu_custom_call.1} parent=1 // pred_fallthru
      _
    // Predicated region
    $region26: #{tpu_custom_call.1} parent=1 // pred_check
      _
    $region27: #{tpu_custom_call.1} parent=1 // pred_check_branch
      %55 = sbr.rel (0) target = $region29
    $region28: #{tpu_custom_call.1} parent=1 // pred_region
      _
    $region29: #{tpu_custom_call.1} parent=1 // pred_fallthru
      _
    // Predicated region
    $region30: #{tpu_custom_call.1} parent=1 // pred_check
      _
    $region31: #{tpu_custom_call.1} parent=1 // pred_check_branch
      %57 = sbr.rel (0) target = $region33
    $region32: #{tpu_custom_call.1} parent=1 // pred_region
      _
    $region33: #{tpu_custom_call.1} parent=1 // pred_fallthru
      _
    // Predicated region
    $region34: #{tpu_custom_call.1} parent=1 // pred_check
      _
    $region35: #{tpu_custom_call.1} parent=1 // pred_check_branch
      %59 = sbr.rel (0) target = $region37
    $region36: #{tpu_custom_call.1} parent=1 // pred_region
      _
    $region37: #{tpu_custom_call.1} parent=1 // pred_fallthru
      _
    // Predicated region
    $region38: #{tpu_custom_call.1} parent=1 // pred_check
      _
    $region39: #{tpu_custom_call.1} parent=1 // pred_check_branch
      %61 = sbr.rel (0) target = $region41
    $region40: #{tpu_custom_call.1} parent=1 // pred_region
      _
    $region41: #{tpu_custom_call.1} parent=1 // pred_fallthru
      _
    // Predicated region
    $region42: #{tpu_custom_call.1} parent=1 // pred_check
      _
    $region43: #{tpu_custom_call.1} parent=1 // pred_check_branch
      %63 = sbr.rel (0) target = $region45
    $region44: #{tpu_custom_call.1} parent=1 // pred_region
      _
    $region45: #{tpu_custom_call.1} parent=1 // pred_fallthru
      _
    // Predicated region
    $region46: #{tpu_custom_call.1} parent=1 // pred_check
      _
    $region47: #{tpu_custom_call.1} parent=1 // pred_check_branch
      %65 = sbr.rel (0) target = $region49
    $region48: #{tpu_custom_call.1} parent=1 // pred_region
      _
    $region49: #{tpu_custom_call.1} parent=1 // pred_fallthru
      _
    // Predicated region
    $region50: #{tpu_custom_call.1} parent=1 // pred_check
      _
    $region51: #{tpu_custom_call.1} parent=1 // pred_check_branch
      %67 = sbr.rel (0) target = $region53
    $region52: #{tpu_custom_call.1} parent=1 // pred_region
      _
    $region53: #{tpu_custom_call.1} parent=1 // pred_fallthru
      _
    // Predicated region
    $region54: #{tpu_custom_call.1} parent=1 // pred_check
      _
    $region55: #{tpu_custom_call.1} parent=1 // pred_check_branch
      %69 = sbr.rel (0) target = $region57
    $region56: #{tpu_custom_call.1} parent=1 // pred_region
      _
    $region57: #{tpu_custom_call.1} parent=1 // pred_fallthru
      _
    // Predicated region
    $region58: #{tpu_custom_call.1} parent=1 // pred_check
      _
    $region59: #{tpu_custom_call.1} parent=1 // pred_check_branch
      %71 = sbr.rel (0) target = $region61
    $region60: #{tpu_custom_call.1} parent=1 // pred_region
      _
    $region61: #{tpu_custom_call.1} parent=1 // pred_fallthru
      _
    // Predicated region
    $region62: #{tpu_custom_call.1} parent=1 // pred_check
      _
    $region63: #{tpu_custom_call.1} parent=1 // pred_check_branch
      %73 = sbr.rel (0) target = $region65
    $region64: #{tpu_custom_call.1} parent=1 // pred_region
      _
    $region65: #{tpu_custom_call.1} parent=1 // pred_fallthru
      _
    // Predicated region
    $region66: #{tpu_custom_call.1} parent=1 // pred_check
      _
    $region67: #{tpu_custom_call.1} parent=1 // pred_check_branch
      %75 = sbr.rel (0) target = $region69
    $region68: #{tpu_custom_call.1} parent=1 // pred_region
      _
    $region69: #{tpu_custom_call.1} parent=1 // pred_fallthru
      _
    // Predicated region
    $region70: #{tpu_custom_call.1} parent=1 // pred_check
      _
    $region71: #{tpu_custom_call.1} parent=1 // pred_check_branch
      %77 = sbr.rel (0) target = $region73
    $region72: #{tpu_custom_call.1} parent=1 // pred_region
      _
    $region73: #{tpu_custom_call.1} parent=1 // pred_fallthru
      _
    // Predicated region
    $region74: #{tpu_custom_call.1} parent=1 // pred_check
      _
    $region75: #{tpu_custom_call.1} parent=1 // pred_check_branch
      %79 = sbr.rel (0) target = $region77
    $region76: #{tpu_custom_call.1} parent=1 // pred_region
      _
    $region77: #{tpu_custom_call.1} parent=1 // pred_fallthru
      _
    // Predicated region
    $region78: #{tpu_custom_call.1} parent=1 // pred_check
      _
    $region79: #{tpu_custom_call.1} parent=1 // pred_check_branch
      %81 = sbr.rel (0) target = $region81
    $region80: #{tpu_custom_call.1} parent=1 // pred_region
      _
    $region81: #{tpu_custom_call.1} parent=1 // pred_fallthru
      _
    // Predicated region
    $region82: #{tpu_custom_call.1} parent=1 // pred_check
      _
    $region83: #{tpu_custom_call.1} parent=1 // pred_check_branch
      %83 = sbr.rel (0) target = $region85
    $region84: #{tpu_custom_call.1} parent=1 // pred_region
      _
    $region85: #{tpu_custom_call.1} parent=1 // pred_fallthru
      _
    // Predicated region
    $region86: #{tpu_custom_call.1} parent=1 // pred_check
      _
    $region87: #{tpu_custom_call.1} parent=1 // pred_check_branch
      %85 = sbr.rel (0) target = $region89
    $region88: #{tpu_custom_call.1} parent=1 // pred_region
      _
    $region89: #{tpu_custom_call.1} parent=1 // pred_fallthru
      _
    // Predicated region
    $region90: #{tpu_custom_call.1} parent=1 // pred_check
      _
    $region91: #{tpu_custom_call.1} parent=1 // pred_check_branch
      %87 = sbr.rel (0) target = $region93
    $region92: #{tpu_custom_call.1} parent=1 // pred_region
      _
    $region93: #{tpu_custom_call.1} parent=1 // pred_fallthru
      _
    // Predicated region
    $region94: #{tpu_custom_call.1} parent=1 // pred_check
      _
    $region95: #{tpu_custom_call.1} parent=1 // pred_check_branch
      %89 = sbr.rel (0) target = $region97
    $region96: #{tpu_custom_call.1} parent=1 // pred_region
      _
    $region97: #{tpu_custom_call.1} parent=1 // pred_fallthru
      _
    // Predicated region
    $region98: #{tpu_custom_call.1} parent=1 // pred_check
      _
    $region99: #{tpu_custom_call.1} parent=1 // pred_check_branch
      %91 = sbr.rel (0) target = $region101
    $region100: #{tpu_custom_call.1} parent=1 // pred_region
      _
    $region101: #{tpu_custom_call.1} parent=1 // pred_fallthru
      _
    // Predicated region
    $region102: #{tpu_custom_call.1} parent=1 // pred_check
      _
    $region103: #{tpu_custom_call.1} parent=1 // pred_check_branch
      %93 = sbr.rel (0) target = $region105
    $region104: #{tpu_custom_call.1} parent=1 // pred_region
      _
    $region105: #{tpu_custom_call.1} parent=1 // pred_fallthru
      _
    %v96 = vld [vmem:[%s0] sm:$0xff]
    %v97 = vld [vmem:[%s0 + $0x8] sm:$0xff]
    %v98 = vld [vmem:[%s0 + $0x10] sm:$0xff]
    %v99 = vld [vmem:[%s0 + $0x18] sm:$0xff]
    %v100 = vld [vmem:[%s1] sm:$0xf]
    %v101 = vld [vmem:[%s1 + $0x4] sm:$0xf]
    %v102 = vld [vmem:[%s1 + $0x8] sm:$0xf]
    %v103 = vld [vmem:[%s1 + $0xc] sm:$0xf]
    %vm104 = vcmask 523264
    %v105 = vsel %vm104, %v96, -inf
    %v106 = vsel %vm104, %v97, -inf
    %v107 = vsel %vm104, %v98, -inf
    %v108 = vsel %vm104, %v99, -inf
    %v109 = vmax.f32 %v105, %v106
    %v110 = vmax.f32 %v107, %v108
    %v111 = vmax.f32 %v109, %v110
    %v112 = vrot.slane %v111, 4
    %v113 = vmax.f32 %v111, %v112
    %v114 = vrot.slane %v113, 2
    %v115 = vmax.f32 %v113, %v114
    %v116 = vrot.slane %v115, 1
    %v117 = vmax.f32 %v115, %v116
    %v118 = vrcp.pop %v117
    %v119 = vmul.f32 %v117, %v118
    %v120 = vsub.f32 1.0, %v119
    %v121 = vmul.f32 %v118, %v120
    %v122 = vadd.f32 %v118, %v121
    %vm123 = vweird.f32 %v117
    %vm124 = vweird.f32 %v118
    %vm125 = vmor %vm123, %vm124
    %v126 = vsel %vm125, %v118, %v122
    %v127 = vand.u32 2147483647, %v117
    %vm128 = vcmp.eq.f32.partialorder %v127, 8.507059e+37
    %v129 = vand.u32 %v117, 2147483648
    %v130 = vor.u32 1.1754944e-38, %v129
    %v131 = vsel %vm128, %v130, %v126
    %v132 = vmul.f32 1.0, %v131
    %v133 = vlaneseq
    %v134 = vand.u32 %v133, 127
    %vm135 = vcmp.lt.s32.totalorder %v134, 12
    %v136 = vmul.f32 %v96, %v132
    %v137 = vmul.f32 %v97, %v132
    %v138 = vmul.f32 %v98, %v132
    %v139 = vmul.f32 %v99, %v132
    %v140 = vsel %vm135, %v136, %v96
    %v141 = vsel %vm135, %v137, %v97
    %v142 = vsel %vm135, %v138, %v98
    %v143 = vsel %vm135, %v139, %v99
    %v144 = vld [vmem:[%s2] sm:$0xff]
    %v145 = vld [vmem:[%s2 + $0x8] sm:$0xff]
    %v146 = vld [vmem:[%s2 + $0x10] sm:$0xff]
    %v147 = vld [vmem:[%s2 + $0x18] sm:$0xff]
    %v148 = vld [vmem:[%s2 + $0x20] sm:$0xff]
    %v149 = vld [vmem:[%s2 + $0x28] sm:$0xff]
    %v150 = vld [vmem:[%s2 + $0x30] sm:$0xff]
    %v151 = vld [vmem:[%s2 + $0x38] sm:$0xff]
    %v152 = vld [vmem:[%s3] sm:$0xff]
    %v153 = vld [vmem:[%s3 + $0x8] sm:$0xff]
    %v154 = vld [vmem:[%s3 + $0x10] sm:$0xff]
    %v155 = vld [vmem:[%s3 + $0x18] sm:$0xff]
    %v156 = vld [vmem:[%s3 + $0x20] sm:$0xff]
    %v157 = vld [vmem:[%s3 + $0x28] sm:$0xff]
    %v158 = vld [vmem:[%s3 + $0x30] sm:$0xff]
    %v159 = vld [vmem:[%s3 + $0x38] sm:$0xff]
    %v160 = vld [vmem:[%s4] sm:$0x1]
    %v165 = vunpack.c.l.b16 %v100
    %v166 = vunpack.c.l.b16 %v101
    %v167 = vunpack.c.l.b16 %v102
    %v168 = vunpack.c.l.b16 %v103
    %v169 = vpack.c.b16 %v166, %v165
    %v170 = vpack.c.b16 %v168, %v167
    %vm171 = vcmask 261120
    %v173 = vsel %vm171, %v169, 0
    %v176 = vsel %vm171, %v170, 0
    %178 = vmatpush.bf16.msra.mxu0 0
    %179 = vmatpush.bf16.msra.mxu0 0
    %180 = vmatpush.bf16.msra.mxu0 0
    %181 = vmatpush.bf16.msra.mxu0 0
    %182 = vmatpush.bf16.msra.mxu0 0
    %183 = vmatpush.bf16.msra.mxu0 0
    %184 = vmatpush.bf16.msra.mxu0 1065369472
    %185 = vmatpush.bf16.msra.mxu0 1065369472
    %186 = vmatmul.bf16.gmra.mxu0 %v173
    %v187 = vpop.f32.mrf.mxu0
    %v188 = vadd.f32 0.0, %v187
    %v189 = vpop.f32.mrf.mxu0
    %v190 = vadd.f32 0.0, %v189
    %191 = vmatmul.bf16.gmra.mxu0 %v176
    %v192 = vpop.f32.mrf.mxu0
    %v193 = vadd.f32 0.0, %v192
    %v194 = vpop.f32.mrf.mxu0
    %v195 = vadd.f32 0.0, %v194
    %196 = vdwg.mxu0
    %v197 = vmax.f32 %v188, 1.0
    %v198 = vmax.f32 %v190, 1.0
    %v199 = vmax.f32 %v193, 1.0
    %v200 = vmax.f32 %v195, 1.0
    %v201 = vrcp.pop %v197
    %v202 = vmul.f32 %v197, %v201
    %v203 = vsub.f32 1.0, %v202
    %v204 = vmul.f32 %v201, %v203
    %v205 = vadd.f32 %v201, %v204
    %vm206 = vweird.f32 %v197
    %vm207 = vweird.f32 %v201
    %vm208 = vmor %vm206, %vm207
    %v209 = vsel %vm208, %v201, %v205
    %v210 = vand.u32 2147483647, %v197
    %vm211 = vcmp.eq.f32.partialorder %v210, 8.507059e+37
    %v212 = vand.u32 %v197, 2147483648
    %v213 = vor.u32 1.1754944e-38, %v212
    %v214 = vsel %vm211, %v213, %v209
    %v215 = vmul.f32 1.0, %v214
    %v216 = vrcp.pop %v198
    %v217 = vmul.f32 %v198, %v216
    %v218 = vsub.f32 1.0, %v217
    %v219 = vmul.f32 %v216, %v218
    %v220 = vadd.f32 %v216, %v219
    %vm221 = vweird.f32 %v198
    %vm222 = vweird.f32 %v216
    %vm223 = vmor %vm221, %vm222
    %v224 = vsel %vm223, %v216, %v220
    %v225 = vand.u32 2147483647, %v198
    %vm226 = vcmp.eq.f32.partialorder %v225, 8.507059e+37
    %v227 = vand.u32 %v198, 2147483648
    %v228 = vor.u32 1.1754944e-38, %v227
    %v229 = vsel %vm226, %v228, %v224
    %v230 = vmul.f32 1.0, %v229
    %v231 = vrcp.pop %v199
    %v232 = vmul.f32 %v199, %v231
    %v233 = vsub.f32 1.0, %v232
    %v234 = vmul.f32 %v231, %v233
    %v235 = vadd.f32 %v231, %v234
    %vm236 = vweird.f32 %v199
    %vm237 = vweird.f32 %v231
    %vm238 = vmor %vm236, %vm237
    %v239 = vsel %vm238, %v231, %v235
    %v240 = vand.u32 2147483647, %v199
    %vm241 = vcmp.eq.f32.partialorder %v240, 8.507059e+37
    %v242 = vand.u32 %v199, 2147483648
    %v243 = vor.u32 1.1754944e-38, %v242
    %v244 = vsel %vm241, %v243, %v239
    %v245 = vmul.f32 1.0, %v244
    %v246 = vrcp.pop %v200
    %v247 = vmul.f32 %v200, %v246
    %v248 = vsub.f32 1.0, %v247
    %v249 = vmul.f32 %v246, %v248
    %v250 = vadd.f32 %v246, %v249
    %vm251 = vweird.f32 %v200
    %vm252 = vweird.f32 %v246
    %vm253 = vmor %vm251, %vm252
    %v254 = vsel %vm253, %v246, %v250
    %v255 = vand.u32 2147483647, %v200
    %vm256 = vcmp.eq.f32.partialorder %v255, 8.507059e+37
    %v257 = vand.u32 %v200, 2147483648
    %v258 = vor.u32 1.1754944e-38, %v257
    %v259 = vsel %vm256, %v258, %v254
    %v260 = vmul.f32 1.0, %v259
    %v261 = vpack.c.bf16 %v141, %v140
    %v262 = vpack.c.bf16 %v143, %v142
    %263 = vmatpush.bf16.msra.mxu0 0
    %264 = vmatpush.bf16.msra.mxu0 0
    %265 = vmatpush.bf16.msra.mxu0 0
    %266 = vmatpush.bf16.msra.mxu0 0
    %267 = vmatpush.bf16.msra.mxu0 0
    %268 = vmatpush.bf16.msra.mxu0 0
    %269 = vmatpush.bf16.msra.mxu0 %v262
    %270 = vmatpush.bf16.msra.mxu0 %v261
    %271 = vmatmul.bf16.gmra.mxu0 %v173
    %v272 = vpop.f32.mrf.mxu0
    %v273 = vadd.f32 0.0, %v272
    %v274 = vpop.f32.mrf.mxu0
    %v275 = vadd.f32 0.0, %v274
    %276 = vmatmul.bf16.gmra.mxu0 %v176
    %v277 = vpop.f32.mrf.mxu0
    %v278 = vadd.f32 0.0, %v277
    %v279 = vpop.f32.mrf.mxu0
    %v280 = vadd.f32 0.0, %v279
    %281 = vdwg.mxu0
    %283 = vset.pattern.permute.xlu0 0
    %284 = vperm.xlu0 %283, %v215
    %v285 = vpop.permute.xlu0 %284
    %288 = vset.pattern.permute.xlu0 0
    %289 = vperm.xlu0 %288, %v230
    %v290 = vpop.permute.xlu0 %289
    %293 = vset.pattern.permute.xlu0 0
    %294 = vperm.xlu0 %293, %v245
    %v295 = vpop.permute.xlu0 %294
    %298 = vset.pattern.permute.xlu0 0
    %299 = vperm.xlu0 %298, %v260
    %v300 = vpop.permute.xlu0 %299
    %v302 = vmul.f32 %v273, %v285
    %v303 = vmul.f32 %v275, %v290
    %v304 = vmul.f32 %v278, %v295
    %v305 = vmul.f32 %v280, %v300
    %v306 = vpack.c.bf16 %v303, %v302
    %v307 = vpack.c.bf16 %v305, %v304
    %v308 = vpack.c.bf16 %v145, %v144
    %v309 = vpack.c.bf16 %v147, %v146
    %v310 = vpack.c.bf16 %v149, %v148
    %v311 = vpack.c.bf16 %v151, %v150
    %v312 = vpack.c.bf16 %v153, %v152
    %v313 = vpack.c.bf16 %v155, %v154
    %v314 = vpack.c.bf16 %v157, %v156
    %v315 = vpack.c.bf16 %v159, %v158
    %v317 = vsel %vm104, %v261, 0
    %v320 = vsel %vm104, %v262, 0
    %322 = vmatpush.bf16.msra.mxu0 0
    %323 = vmatpush.bf16.msra.mxu0 0
    %324 = vmatpush.bf16.msra.mxu0 0
    %325 = vmatpush.bf16.msra.mxu0 0
    %326 = vmatpush.bf16.msra.mxu0 %v315
    %327 = vmatpush.bf16.msra.mxu0 %v314
    %328 = vmatpush.bf16.msra.mxu0 %v313
    %329 = vmatpush.bf16.msra.mxu0 %v312
    %330 = vmatmul.bf16.gmra.mxu0 %v317
    %v331 = vpop.f32.mrf.mxu0
    %v332 = vadd.f32 0.0, %v331
    %v333 = vpop.f32.mrf.mxu0
    %v334 = vadd.f32 0.0, %v333
    %335 = vmatmul.bf16.gmra.mxu0 %v320
    %v336 = vpop.f32.mrf.mxu0
    %v337 = vadd.f32 0.0, %v336
    %v338 = vpop.f32.mrf.mxu0
    %v339 = vadd.f32 0.0, %v338
    %340 = vdwg.mxu0
    %v342 = vsel %vm104, %v306, 0
    %v345 = vsel %vm104, %v307, 0
    %347 = vmatpush.bf16.msra.mxu0 0
    %348 = vmatpush.bf16.msra.mxu0 0
    %349 = vmatpush.bf16.msra.mxu0 0
    %350 = vmatpush.bf16.msra.mxu0 0
    %351 = vmatpush.bf16.msra.mxu0 %v311
    %352 = vmatpush.bf16.msra.mxu0 %v310
    %353 = vmatpush.bf16.msra.mxu0 %v309
    %354 = vmatpush.bf16.msra.mxu0 %v308
    %355 = vmatmul.bf16.gmra.mxu0 %v342
    %v356 = vpop.f32.mrf.mxu0
    %v357 = vadd.f32 %v332, %v356
    %v358 = vpop.f32.mrf.mxu0
    %v359 = vadd.f32 %v334, %v358
    %360 = vmatmul.bf16.gmra.mxu0 %v345
    %v361 = vpop.f32.mrf.mxu0
    %v362 = vadd.f32 %v337, %v361
    %v363 = vpop.f32.mrf.mxu0
    %v364 = vadd.f32 %v339, %v363
    %365 = vdwg.mxu0
    %v367 = vperm.slane %v160, 0
    %v369 = vadd.f32 %v357, %v367
    %v370 = vadd.f32 %v359, %v367
    %v371 = vadd.f32 %v362, %v367
    %v372 = vadd.f32 %v364, %v367
    %v373 = vmax.f32 %v369, 0.0
    %v374 = vmax.f32 %v370, 0.0
    %v375 = vmax.f32 %v371, 0.0
    %v376 = vmax.f32 %v372, 0.0
    %v377 = vld [vmem:[%s5] sm:$0xff]
    %v378 = vld [vmem:[%s5 + $0x8] sm:$0xff]
    %v379 = vld [vmem:[%s5 + $0x10] sm:$0xff]
    %v380 = vld [vmem:[%s5 + $0x18] sm:$0xff]
    %v381 = vld [vmem:[%s6] sm:$0xff]
    %v382 = vld [vmem:[%s6 + $0x8] sm:$0xff]
    %v383 = vld [vmem:[%s6 + $0x10] sm:$0xff]
    %v384 = vld [vmem:[%s6 + $0x18] sm:$0xff]
    %v385 = vld [vmem:[#allocation2] sm:$0x1]
    %v386 = vpack.c.bf16 %v374, %v373
    %v387 = vpack.c.bf16 %v376, %v375
    %388 = vmatpush.bf16.msra.mxu0 0
    %389 = vmatpush.bf16.msra.mxu0 0
    %390 = vmatpush.bf16.msra.mxu0 0
    %391 = vmatpush.bf16.msra.mxu0 0
    %392 = vmatpush.bf16.msra.mxu0 0
    %393 = vmatpush.bf16.msra.mxu0 0
    %394 = vmatpush.bf16.msra.mxu0 %v387
    %395 = vmatpush.bf16.msra.mxu0 %v386
    %396 = vmatmul.bf16.gmra.mxu0 %v173
    %v397 = vpop.f32.mrf.mxu0
    %v398 = vadd.f32 0.0, %v397
    %v399 = vpop.f32.mrf.mxu0
    %v400 = vadd.f32 0.0, %v399
    %401 = vmatmul.bf16.gmra.mxu0 %v176
    %v402 = vpop.f32.mrf.mxu0
    %v403 = vadd.f32 0.0, %v402
    %v404 = vpop.f32.mrf.mxu0
    %v405 = vadd.f32 0.0, %v404
    %406 = vdwg.mxu0
    %v407 = vmul.f32 %v398, %v285
    %v408 = vmul.f32 %v400, %v290
    %v409 = vmul.f32 %v403, %v295
    %v410 = vmul.f32 %v405, %v300
    %v411 = vpack.c.bf16 %v408, %v407
    %v412 = vpack.c.bf16 %v410, %v409
    %v413 = vpack.c.bf16 %v378, %v377
    %v414 = vpack.c.bf16 %v380, %v379
    %v415 = vpack.c.bf16 %v382, %v381
    %v416 = vpack.c.bf16 %v384, %v383
    %v418 = vsel %vm171, %v386, 0
    %v421 = vsel %vm171, %v387, 0
    %423 = vmatpush.bf16.msra.mxu0 0
    %424 = vmatpush.bf16.msra.mxu0 0
    %425 = vmatpush.bf16.msra.mxu0 0
    %426 = vmatpush.bf16.msra.mxu0 0
    %427 = vmatpush.bf16.msra.mxu0 0
    %428 = vmatpush.bf16.msra.mxu0 0
    %429 = vmatpush.bf16.msra.mxu0 %v416
    %430 = vmatpush.bf16.msra.mxu0 %v415
    %431 = vmatmul.bf16.gmra.mxu0 %v418
    %v432 = vpop.f32.mrf.mxu0
    %v433 = vadd.f32 0.0, %v432
    %v434 = vpop.f32.mrf.mxu0
    %v435 = vadd.f32 0.0, %v434
    %436 = vmatmul.bf16.gmra.mxu0 %v421
    %v437 = vpop.f32.mrf.mxu0
    %v438 = vadd.f32 0.0, %v437
    %v439 = vpop.f32.mrf.mxu0
    %v440 = vadd.f32 0.0, %v439
    %441 = vdwg.mxu0
    %v443 = vsel %vm171, %v411, 0
    %v446 = vsel %vm171, %v412, 0
    %448 = vmatpush.bf16.msra.mxu0 0
    %449 = vmatpush.bf16.msra.mxu0 0
    %450 = vmatpush.bf16.msra.mxu0 0
    %451 = vmatpush.bf16.msra.mxu0 0
    %452 = vmatpush.bf16.msra.mxu0 0
    %453 = vmatpush.bf16.msra.mxu0 0
    %454 = vmatpush.bf16.msra.mxu0 %v414
    %455 = vmatpush.bf16.msra.mxu0 %v413
    %456 = vmatmul.bf16.gmra.mxu0 %v443
    %v457 = vpop.f32.mrf.mxu0
    %v458 = vadd.f32 %v433, %v457
    %v459 = vpop.f32.mrf.mxu0
    %v460 = vadd.f32 %v435, %v459
    %461 = vmatmul.bf16.gmra.mxu0 %v446
    %v462 = vpop.f32.mrf.mxu0
    %v463 = vadd.f32 %v438, %v462
    %v464 = vpop.f32.mrf.mxu0
    %v465 = vadd.f32 %v440, %v464
    %466 = vdwg.mxu0
    %v468 = vperm.slane %v385, 0
    %v470 = vadd.f32 %v458, %v468
    %v471 = vadd.f32 %v460, %v468
    %v472 = vadd.f32 %v463, %v468
    %v473 = vadd.f32 %v465, %v468
    %v474 = vtanh.pop %v470
    %v475 = vtanh.pop %v471
    %v476 = vtanh.pop %v472
    %v477 = vtanh.pop %v473
    %vm478 = vcmp.gt.f32.partialorder 1.0, 0.0
    %v479 = vsel %vm478, %v474, -1e+30
    %v480 = vsel %vm478, %v475, -1e+30
    %v481 = vsel %vm478, %v476, -1e+30
    %v482 = vsel %vm478, %v477, -1e+30
    %v483 = vlaneseq
    %v484 = vshrl.u32 %v483, 7
    %v485 = vadd.s32 %v484, 8
    %vm486 = vcmask 7168
    %v487 = vsel %vm486, %v479, -inf
    %v488 = vsel %vm486, %v480, -inf
    %v489 = vmax.f32 %v487, %v488
    %v490 = vrot.slane %v489, 4
    %v491 = vmax.f32 %v489, %v490
    %v492 = vrot.slane %v491, 2
    %v493 = vmax.f32 %v491, %v492
    %v494 = vrot.slane %v493, 1
    %v495 = vmax.f32 %v493, %v494
    %vm496 = vcmp.ge.f32.partialorder %v479, %v495
    %vm497 = vcmp.ge.f32.partialorder %v480, %v495
    %vm498 = vcmp.gt.f32.partialorder %v479, -5e+29
    %vm499 = vcmp.gt.f32.partialorder %v480, -5e+29
    %vm500 = vmand %vm496, %vm498
    %vm501 = vmand %vm497, %vm499
    %v502 = vsel %vm500, %v484, 16
    %v503 = vsel %vm501, %v485, 16
    %v504 = vsel %vm486, %v502, 2147483647
    %v505 = vsel %vm486, %v503, 2147483647
    %vm506 = vcmp.lt.s32.totalorder %v504, %v505
    %v507 = vsel %vm506, %v504, %v505
    %v508 = vrot.slane %v507, 4
    %vm509 = vcmp.lt.s32.totalorder %v507, %v508
    %v510 = vsel %vm509, %v507, %v508
    %v511 = vrot.slane %v510, 2
    %vm512 = vcmp.lt.s32.totalorder %v510, %v511
    %v513 = vsel %vm512, %v510, %v511
    %v514 = vrot.slane %v513, 1
    %vm515 = vcmp.lt.s32.totalorder %v513, %v514
    %v516 = vsel %vm515, %v513, %v514
    %vm517 = vcmp.eq.s32.totalorder %v484, %v516
    %vm518 = vcmp.eq.s32.totalorder %v485, %v516
    %vm519 = vmand %vm500, %vm517
    %vm520 = vmand %vm501, %vm518
    %v521 = vsel %vm519, 1, 0
    %v522 = vsel %vm520, 1, 0
    %v523 = vcvt.s32.f32 %v521
    %v524 = vcvt.s32.f32 %v522
    %v525 = vadd.f32 %v523, 0.0
    %v526 = vadd.f32 %v524, 0.0
    %v527 = vsel %vm519, -1e+30, %v479
    %v528 = vsel %vm520, -1e+30, %v480
    %v529 = vsel %vm486, %v527, -inf
    %v530 = vsel %vm486, %v528, -inf
    %v531 = vmax.f32 %v529, %v530
    %v532 = vrot.slane %v531, 4
    %v533 = vmax.f32 %v531, %v532
    %v534 = vrot.slane %v533, 2
    %v535 = vmax.f32 %v533, %v534
    %v536 = vrot.slane %v535, 1
    %v537 = vmax.f32 %v535, %v536
    %vm538 = vcmp.ge.f32.partialorder %v527, %v537
    %vm539 = vcmp.ge.f32.partialorder %v528, %v537
    %vm540 = vcmp.gt.f32.partialorder %v527, -5e+29
    %vm541 = vcmp.gt.f32.partialorder %v528, -5e+29
    %vm542 = vmand %vm538, %vm540
    %vm543 = vmand %vm539, %vm541
    %v544 = vsel %vm542, %v484, 16
    %v545 = vsel %vm543, %v485, 16
    %v546 = vsel %vm486, %v544, 2147483647
    %v547 = vsel %vm486, %v545, 2147483647
    %vm548 = vcmp.lt.s32.totalorder %v546, %v547
    %v549 = vsel %vm548, %v546, %v547
    %v550 = vrot.slane %v549, 4
    %vm551 = vcmp.lt.s32.totalorder %v549, %v550
    %v552 = vsel %vm551, %v549, %v550
    %v553 = vrot.slane %v552, 2
    %vm554 = vcmp.lt.s32.totalorder %v552, %v553
    %v555 = vsel %vm554, %v552, %v553
    %v556 = vrot.slane %v555, 1
    %vm557 = vcmp.lt.s32.totalorder %v555, %v556
    %v558 = vsel %vm557, %v555, %v556
    %vm559 = vcmp.eq.s32.totalorder %v484, %v558
    %vm560 = vcmp.eq.s32.totalorder %v485, %v558
    %vm561 = vmand %vm542, %vm559
    %vm562 = vmand %vm543, %vm560
    %v563 = vsel %vm561, 1, 0
    %v564 = vsel %vm562, 1, 0
    %v565 = vcvt.s32.f32 %v563
    %v566 = vcvt.s32.f32 %v564
    %v567 = vadd.f32 %v525, %v565
    %v568 = vadd.f32 %v526, %v566
    %v569 = vsel %vm561, -1e+30, %v527
    %v570 = vsel %vm562, -1e+30, %v528
    %v571 = vsel %vm486, %v569, -inf
    %v572 = vsel %vm486, %v570, -inf
    %v573 = vmax.f32 %v571, %v572
    %v574 = vrot.slane %v573, 4
    %v575 = vmax.f32 %v573, %v574
    %v576 = vrot.slane %v575, 2
    %v577 = vmax.f32 %v575, %v576
    %v578 = vrot.slane %v577, 1
    %v579 = vmax.f32 %v577, %v578
    %vm580 = vcmp.ge.f32.partialorder %v569, %v579
    %vm581 = vcmp.ge.f32.partialorder %v570, %v579
    %vm582 = vcmp.gt.f32.partialorder %v569, -5e+29
    %vm583 = vcmp.gt.f32.partialorder %v570, -5e+29
    %vm584 = vmand %vm580, %vm582
    %vm585 = vmand %vm581, %vm583
    %v586 = vsel %vm584, %v484, 16
    %v587 = vsel %vm585, %v485, 16
    %v588 = vsel %vm486, %v586, 2147483647
    %v589 = vsel %vm486, %v587, 2147483647
    %vm590 = vcmp.lt.s32.totalorder %v588, %v589
    %v591 = vsel %vm590, %v588, %v589
    %v592 = vrot.slane %v591, 4
    %vm593 = vcmp.lt.s32.totalorder %v591, %v592
    %v594 = vsel %vm593, %v591, %v592
    %v595 = vrot.slane %v594, 2
    %vm596 = vcmp.lt.s32.totalorder %v594, %v595
    %v597 = vsel %vm596, %v594, %v595
    %v598 = vrot.slane %v597, 1
    %vm599 = vcmp.lt.s32.totalorder %v597, %v598
    %v600 = vsel %vm599, %v597, %v598
    %vm601 = vcmp.eq.s32.totalorder %v484, %v600
    %vm602 = vcmp.eq.s32.totalorder %v485, %v600
    %vm603 = vmand %vm584, %vm601
    %vm604 = vmand %vm585, %vm602
    %v605 = vsel %vm603, 1, 0
    %v606 = vsel %vm604, 1, 0
    %v607 = vcvt.s32.f32 %v605
    %v608 = vcvt.s32.f32 %v606
    %v609 = vadd.f32 %v567, %v607
    %v610 = vadd.f32 %v568, %v608
    %v611 = vsel %vm603, -1e+30, %v569
    %v612 = vsel %vm604, -1e+30, %v570
    %v613 = vsel %vm486, %v611, -inf
    %v614 = vsel %vm486, %v612, -inf
    %v615 = vmax.f32 %v613, %v614
    %v616 = vrot.slane %v615, 4
    %v617 = vmax.f32 %v615, %v616
    %v618 = vrot.slane %v617, 2
    %v619 = vmax.f32 %v617, %v618
    %v620 = vrot.slane %v619, 1
    %v621 = vmax.f32 %v619, %v620
    %vm622 = vcmp.ge.f32.partialorder %v611, %v621
    %vm623 = vcmp.ge.f32.partialorder %v612, %v621
    %vm624 = vcmp.gt.f32.partialorder %v611, -5e+29
    %vm625 = vcmp.gt.f32.partialorder %v612, -5e+29
    %vm626 = vmand %vm622, %vm624
    %vm627 = vmand %vm623, %vm625
    %v628 = vsel %vm626, %v484, 16
    %v629 = vsel %vm627, %v485, 16
    %v630 = vsel %vm486, %v628, 2147483647
    %v631 = vsel %vm486, %v629, 2147483647
    %vm632 = vcmp.lt.s32.totalorder %v630, %v631
    %v633 = vsel %vm632, %v630, %v631
    %v634 = vrot.slane %v633, 4
    %vm635 = vcmp.lt.s32.totalorder %v633, %v634
    %v636 = vsel %vm635, %v633, %v634
    %v637 = vrot.slane %v636, 2
    %vm638 = vcmp.lt.s32.totalorder %v636, %v637
    %v639 = vsel %vm638, %v636, %v637
    %v640 = vrot.slane %v639, 1
    %vm641 = vcmp.lt.s32.totalorder %v639, %v640
    %v642 = vsel %vm641, %v639, %v640
    %vm643 = vcmp.eq.s32.totalorder %v484, %v642
    %vm644 = vcmp.eq.s32.totalorder %v485, %v642
    %vm645 = vmand %vm626, %vm643
    %vm646 = vmand %vm627, %vm644
    %v647 = vsel %vm645, 1, 0
    %v648 = vsel %vm646, 1, 0
    %v649 = vcvt.s32.f32 %v647
    %v650 = vcvt.s32.f32 %v648
    %v651 = vadd.f32 %v609, %v649
    %v652 = vadd.f32 %v610, %v650
    %v653 = vsel %vm486, %v481, -inf
    %v654 = vsel %vm486, %v482, -inf
    %v655 = vmax.f32 %v653, %v654
    %v656 = vrot.slane %v655, 4
    %v657 = vmax.f32 %v655, %v656
    %v658 = vrot.slane %v657, 2
    %v659 = vmax.f32 %v657, %v658
    %v660 = vrot.slane %v659, 1
    %v661 = vmax.f32 %v659, %v660
    %vm662 = vcmp.ge.f32.partialorder %v481, %v661
    %vm663 = vcmp.ge.f32.partialorder %v482, %v661
    %vm664 = vcmp.gt.f32.partialorder %v481, -5e+29
    %vm665 = vcmp.gt.f32.partialorder %v482, -5e+29
    %vm666 = vmand %vm662, %vm664
    %vm667 = vmand %vm663, %vm665
    %v668 = vsel %vm666, %v484, 16
    %v669 = vsel %vm667, %v485, 16
    %v670 = vsel %vm486, %v668, 2147483647
    %v671 = vsel %vm486, %v669, 2147483647
    %vm672 = vcmp.lt.s32.totalorder %v670, %v671
    %v673 = vsel %vm672, %v670, %v671
    %v674 = vrot.slane %v673, 4
    %vm675 = vcmp.lt.s32.totalorder %v673, %v674
    %v676 = vsel %vm675, %v673, %v674
    %v677 = vrot.slane %v676, 2
    %vm678 = vcmp.lt.s32.totalorder %v676, %v677
    %v679 = vsel %vm678, %v676, %v677
    %v680 = vrot.slane %v679, 1
    %vm681 = vcmp.lt.s32.totalorder %v679, %v680
    %v682 = vsel %vm681, %v679, %v680
    %vm683 = vcmp.eq.s32.totalorder %v484, %v682
    %vm684 = vcmp.eq.s32.totalorder %v485, %v682
    %vm685 = vmand %vm666, %vm683
    %vm686 = vmand %vm667, %vm684
    %v687 = vsel %vm685, 1, 0
    %v688 = vsel %vm686, 1, 0
    %v689 = vcvt.s32.f32 %v687
    %v690 = vcvt.s32.f32 %v688
    %v691 = vadd.f32 %v689, 0.0
    %v692 = vadd.f32 %v690, 0.0
    %v693 = vsel %vm685, -1e+30, %v481
    %v694 = vsel %vm686, -1e+30, %v482
    %v695 = vsel %vm486, %v693, -inf
    %v696 = vsel %vm486, %v694, -inf
    %v697 = vmax.f32 %v695, %v696
    %v698 = vrot.slane %v697, 4
    %v699 = vmax.f32 %v697, %v698
    %v700 = vrot.slane %v699, 2
    %v701 = vmax.f32 %v699, %v700
    %v702 = vrot.slane %v701, 1
    %v703 = vmax.f32 %v701, %v702
    %vm704 = vcmp.ge.f32.partialorder %v693, %v703
    %vm705 = vcmp.ge.f32.partialorder %v694, %v703
    %vm706 = vcmp.gt.f32.partialorder %v693, -5e+29
    %vm707 = vcmp.gt.f32.partialorder %v694, -5e+29
    %vm708 = vmand %vm704, %vm706
    %vm709 = vmand %vm705, %vm707
    %v710 = vsel %vm708, %v484, 16
    %v711 = vsel %vm709, %v485, 16
    %v712 = vsel %vm486, %v710, 2147483647
    %v713 = vsel %vm486, %v711, 2147483647
    %vm714 = vcmp.lt.s32.totalorder %v712, %v713
    %v715 = vsel %vm714, %v712, %v713
    %v716 = vrot.slane %v715, 4
    %vm717 = vcmp.lt.s32.totalorder %v715, %v716
    %v718 = vsel %vm717, %v715, %v716
    %v719 = vrot.slane %v718, 2
    %vm720 = vcmp.lt.s32.totalorder %v718, %v719
    %v721 = vsel %vm720, %v718, %v719
    %v722 = vrot.slane %v721, 1
    %vm723 = vcmp.lt.s32.totalorder %v721, %v722
    %v724 = vsel %vm723, %v721, %v722
    %vm725 = vcmp.eq.s32.totalorder %v484, %v724
    %vm726 = vcmp.eq.s32.totalorder %v485, %v724
    %vm727 = vmand %vm708, %vm725
    %vm728 = vmand %vm709, %vm726
    %v729 = vsel %vm727, 1, 0
    %v730 = vsel %vm728, 1, 0
    %v731 = vcvt.s32.f32 %v729
    %v732 = vcvt.s32.f32 %v730
    %v733 = vadd.f32 %v691, %v731
    %v734 = vadd.f32 %v692, %v732
    %v735 = vsel %vm727, -1e+30, %v693
    %v736 = vsel %vm728, -1e+30, %v694
    %v737 = vsel %vm486, %v735, -inf
    %v738 = vsel %vm486, %v736, -inf
    %v739 = vmax.f32 %v737, %v738
    %v740 = vrot.slane %v739, 4
    %v741 = vmax.f32 %v739, %v740
    %v742 = vrot.slane %v741, 2
    %v743 = vmax.f32 %v741, %v742
    %v744 = vrot.slane %v743, 1
    %v745 = vmax.f32 %v743, %v744
    %vm746 = vcmp.ge.f32.partialorder %v735, %v745
    %vm747 = vcmp.ge.f32.partialorder %v736, %v745
    %vm748 = vcmp.gt.f32.partialorder %v735, -5e+29
    %vm749 = vcmp.gt.f32.partialorder %v736, -5e+29
    %vm750 = vmand %vm746, %vm748
    %vm751 = vmand %vm747, %vm749
    %v752 = vsel %vm750, %v484, 16
    %v753 = vsel %vm751, %v485, 16
    %v754 = vsel %vm486, %v752, 2147483647
    %v755 = vsel %vm486, %v753, 2147483647
    %vm756 = vcmp.lt.s32.totalorder %v754, %v755
    %v757 = vsel %vm756, %v754, %v755
    %v758 = vrot.slane %v757, 4
    %vm759 = vcmp.lt.s32.totalorder %v757, %v758
    %v760 = vsel %vm759, %v757, %v758
    %v761 = vrot.slane %v760, 2
    %vm762 = vcmp.lt.s32.totalorder %v760, %v761
    %v763 = vsel %vm762, %v760, %v761
    %v764 = vrot.slane %v763, 1
    %vm765 = vcmp.lt.s32.totalorder %v763, %v764
    %v766 = vsel %vm765, %v763, %v764
    %vm767 = vcmp.eq.s32.totalorder %v484, %v766
    %vm768 = vcmp.eq.s32.totalorder %v485, %v766
    %vm769 = vmand %vm750, %vm767
    %vm770 = vmand %vm751, %vm768
    %v771 = vsel %vm769, 1, 0
    %v772 = vsel %vm770, 1, 0
    %v773 = vcvt.s32.f32 %v771
    %v774 = vcvt.s32.f32 %v772
    %v775 = vadd.f32 %v733, %v773
    %v776 = vadd.f32 %v734, %v774
    %v777 = vsel %vm769, -1e+30, %v735
    %v778 = vsel %vm770, -1e+30, %v736
    %v779 = vsel %vm486, %v777, -inf
    %v780 = vsel %vm486, %v778, -inf
    %v781 = vmax.f32 %v779, %v780
    %v782 = vrot.slane %v781, 4
    %v783 = vmax.f32 %v781, %v782
    %v784 = vrot.slane %v783, 2
    %v785 = vmax.f32 %v783, %v784
    %v786 = vrot.slane %v785, 1
    %v787 = vmax.f32 %v785, %v786
    %vm788 = vcmp.ge.f32.partialorder %v777, %v787
    %vm789 = vcmp.ge.f32.partialorder %v778, %v787
    %vm790 = vcmp.gt.f32.partialorder %v777, -5e+29
    %vm791 = vcmp.gt.f32.partialorder %v778, -5e+29
    %vm792 = vmand %vm788, %vm790
    %vm793 = vmand %vm789, %vm791
    %v794 = vsel %vm792, %v484, 16
    %v795 = vsel %vm793, %v485, 16
    %v796 = vsel %vm486, %v794, 2147483647
    %v797 = vsel %vm486, %v795, 2147483647
    %vm798 = vcmp.lt.s32.totalorder %v796, %v797
    %v799 = vsel %vm798, %v796, %v797
    %v800 = vrot.slane %v799, 4
    %vm801 = vcmp.lt.s32.totalorder %v799, %v800
    %v802 = vsel %vm801, %v799, %v800
    %v803 = vrot.slane %v802, 2
    %vm804 = vcmp.lt.s32.totalorder %v802, %v803
    %v805 = vsel %vm804, %v802, %v803
    %v806 = vrot.slane %v805, 1
    %vm807 = vcmp.lt.s32.totalorder %v805, %v806
    %v808 = vsel %vm807, %v805, %v806
    %vm809 = vcmp.eq.s32.totalorder %v484, %v808
    %vm810 = vcmp.eq.s32.totalorder %v485, %v808
    %vm811 = vmand %vm792, %vm809
    %vm812 = vmand %vm793, %vm810
    %v813 = vsel %vm811, 1, 0
    %v814 = vsel %vm812, 1, 0
    %v815 = vcvt.s32.f32 %v813
    %v816 = vcvt.s32.f32 %v814
    %v817 = vadd.f32 %v775, %v815
    %v818 = vadd.f32 %v776, %v816
    %820 = vset.pattern.permute.xlu0 0
    %821 = vperm.xlu0 %820, %v474
    %v822 = vpop.permute.xlu0 %821
    %825 = vset.pattern.permute.xlu0 0
    %826 = vperm.xlu0 %825, %v475
    %v827 = vpop.permute.xlu0 %826
    %830 = vset.pattern.permute.xlu0 0
    %831 = vperm.xlu0 %830, %v476
    %v832 = vpop.permute.xlu0 %831
    %835 = vset.pattern.permute.xlu0 0
    %836 = vperm.xlu0 %835, %v477
    %v837 = vpop.permute.xlu0 %836
    %v839 = vmul.f32 %v373, %v822
    %v840 = vmul.f32 %v374, %v827
    %v841 = vmul.f32 %v375, %v832
    %v842 = vmul.f32 %v376, %v837
    %844 = vset.pattern.permute.xlu0 0
    %845 = vperm.xlu0 %844, %v651
    %v846 = vpop.permute.xlu0 %845
    %849 = vset.pattern.permute.xlu0 0
    %850 = vperm.xlu0 %849, %v652
    %v851 = vpop.permute.xlu0 %850
    %854 = vset.pattern.permute.xlu0 0
    %855 = vperm.xlu0 %854, %v817
    %v856 = vpop.permute.xlu0 %855
    %859 = vset.pattern.permute.xlu0 0
    %860 = vperm.xlu0 %859, %v818
    %v861 = vpop.permute.xlu0 %860
    %v863 = vmul.f32 %v839, %v846
    %v864 = vmul.f32 %v840, %v851
    %v865 = vmul.f32 %v841, %v856
    %v866 = vmul.f32 %v842, %v861
    %v867 = vsel %vm486, %v651, 0.0
    %v868 = vsel %vm486, %v652, 0.0
    %v869 = vadd.f32 %v867, %v868
    %v870 = vrot.slane %v869, 4
    %v871 = vadd.f32 %v869, %v870
    %v872 = vrot.slane %v871, 2
    %v873 = vadd.f32 %v871, %v872
    %v874 = vrot.slane %v873, 1
    %v875 = vadd.f32 %v873, %v874
    %v876 = vmax.f32 %v875, 1.0
    %v877 = vsel %vm171, %v863, 0.0
    %v878 = vsel %vm171, %v864, 0.0
    %v879 = vadd.f32 %v877, %v878
    %v880 = vrot.slane %v879, 4
    %v881 = vadd.f32 %v879, %v880
    %v882 = vrot.slane %v881, 2
    %v883 = vadd.f32 %v881, %v882
    %v884 = vrot.slane %v883, 1
    %v885 = vadd.f32 %v883, %v884
    %887 = vset.pattern.permute.xlu0 0
    %888 = vperm.xlu0 %887, %v876
    %v889 = vpop.permute.xlu0 %888
    %v891 = vrcp.pop %v889
    %v892 = vmul.f32 %v889, %v891
    %v893 = vsub.f32 1.0, %v892
    %v894 = vmul.f32 %v891, %v893
    %v895 = vadd.f32 %v891, %v894
    %vm896 = vweird.f32 %v889
    %vm897 = vweird.f32 %v891
    %vm898 = vmor %vm896, %vm897
    %v899 = vsel %vm898, %v891, %v895
    %v900 = vand.u32 2147483647, %v889
    %vm901 = vcmp.eq.f32.partialorder %v900, 8.507059e+37
    %v902 = vand.u32 %v889, 2147483648
    %v903 = vor.u32 1.1754944e-38, %v902
    %v904 = vsel %vm901, %v903, %v899
    %v905 = vmul.f32 %v885, %v904
    %vm906 = vcmp.gt.f32.partialorder %v651, 0.0
    %vm907 = vcmp.gt.f32.partialorder %v652, 0.0
    %v908 = vsel %vm906, 1, 0
    %v909 = vsel %vm907, 1, 0
    %910 = vset.pattern.permute.xlu0 0
    %911 = vperm.xlu0 %910, %v908
    %v912 = vpop.permute.xlu0 %911
    %913 = vset.pattern.permute.xlu0 0
    %914 = vperm.xlu0 %913, %v909
    %v915 = vpop.permute.xlu0 %914
    %vm916 = vcmp.eq.s32.totalorder %v912, 1
    %vm917 = vcmp.eq.s32.totalorder %v915, 1
    %v918 = vsel %vm916, %v863, -1e+30
    %v919 = vsel %vm917, %v864, -1e+30
    %v920 = vsel %vm171, %v918, -inf
    %v921 = vsel %vm171, %v919, -inf
    %v922 = vmax.f32 %v920, %v921
    %v923 = vrot.slane %v922, 4
    %v924 = vmax.f32 %v922, %v923
    %v925 = vrot.slane %v924, 2
    %v926 = vmax.f32 %v924, %v925
    %v927 = vrot.slane %v926, 1
    %v928 = vmax.f32 %v926, %v927
    %930 = vrot.lane.b32.xlu0 %v905, 32
    %v931 = vpop.permute.xlu0 %930
    %v933 = vsel %vm171, %v928, %v931
    %v934 = vsel %vm486, %v817, 0.0
    %v935 = vsel %vm486, %v818, 0.0
    %v936 = vadd.f32 %v934, %v935
    %v937 = vrot.slane %v936, 4
    %v938 = vadd.f32 %v936, %v937
    %v939 = vrot.slane %v938, 2
    %v940 = vadd.f32 %v938, %v939
    %v941 = vrot.slane %v940, 1
    %v942 = vadd.f32 %v940, %v941
    %v943 = vmax.f32 %v942, 1.0
    %v944 = vsel %vm171, %v865, 0.0
    %v945 = vsel %vm171, %v866, 0.0
    %v946 = vadd.f32 %v944, %v945
    %v947 = vrot.slane %v946, 4
    %v948 = vadd.f32 %v946, %v947
    %v949 = vrot.slane %v948, 2
    %v950 = vadd.f32 %v948, %v949
    %v951 = vrot.slane %v950, 1
    %v952 = vadd.f32 %v950, %v951
    %954 = vset.pattern.permute.xlu0 0
    %955 = vperm.xlu0 %954, %v943
    %v956 = vpop.permute.xlu0 %955
    %v958 = vrcp.pop %v956
    %v959 = vmul.f32 %v956, %v958
    %v960 = vsub.f32 1.0, %v959
    %v961 = vmul.f32 %v958, %v960
    %v962 = vadd.f32 %v958, %v961
    %vm963 = vweird.f32 %v956
    %vm964 = vweird.f32 %v958
    %vm965 = vmor %vm963, %vm964
    %v966 = vsel %vm965, %v958, %v962
    %v967 = vand.u32 2147483647, %v956
    %vm968 = vcmp.eq.f32.partialorder %v967, 8.507059e+37
    %v969 = vand.u32 %v956, 2147483648
    %v970 = vor.u32 1.1754944e-38, %v969
    %v971 = vsel %vm968, %v970, %v966
    %v972 = vmul.f32 %v952, %v971
    %vm973 = vcmp.gt.f32.partialorder %v817, 0.0
    %vm974 = vcmp.gt.f32.partialorder %v818, 0.0
    %v975 = vsel %vm973, 1, 0
    %v976 = vsel %vm974, 1, 0
    %977 = vset.pattern.permute.xlu0 0
    %978 = vperm.xlu0 %977, %v975
    %v979 = vpop.permute.xlu0 %978
    %980 = vset.pattern.permute.xlu0 0
    %981 = vperm.xlu0 %980, %v976
    %v982 = vpop.permute.xlu0 %981
    %vm983 = vcmp.eq.s32.totalorder %v979, 1
    %vm984 = vcmp.eq.s32.totalorder %v982, 1
    %v985 = vsel %vm983, %v865, -1e+30
    %v986 = vsel %vm984, %v866, -1e+30
    %v987 = vsel %vm171, %v985, -inf
    %v988 = vsel %vm171, %v986, -inf
    %v989 = vmax.f32 %v987, %v988
    %v990 = vrot.slane %v989, 4
    %v991 = vmax.f32 %v989, %v990
    %v992 = vrot.slane %v991, 2
    %v993 = vmax.f32 %v991, %v992
    %v994 = vrot.slane %v993, 1
    %v995 = vmax.f32 %v993, %v994
    %997 = vrot.lane.b32.xlu0 %v972, 32
    %v998 = vpop.permute.xlu0 %997
    %v1000 = vsel %vm171, %v995, %v998
    %v1002 = vrot.slane %v1000, 7
    %vm1004 = vcmask 1040384
    %v1005 = vsel %vm1004, %v933, %v1002
    %v1006 = vadd.f32 %v1005, 0.0
    %v1007 = vpack.c.bf16 %v652, %v651
    %v1008 = vpack.c.bf16 %v818, %v817
    %v1009 = vld [vmem:[%s8] sm:$0xff]
    %v1010 = vld [vmem:[%s8 + $0x8] sm:$0xff]
    %v1011 = vld [vmem:[%s8 + $0x10] sm:$0xff]
    %v1012 = vld [vmem:[%s8 + $0x18] sm:$0xff]
    %v1013 = vld [vmem:[%s9] sm:$0xff]
    %v1014 = vld [vmem:[%s9 + $0x8] sm:$0xff]
    %v1015 = vld [vmem:[%s9 + $0x10] sm:$0xff]
    %v1016 = vld [vmem:[%s9 + $0x18] sm:$0xff]
    %v1017 = vld [vmem:[%s10] sm:$0x1]
    %1018 = vmatpush.bf16.msra.mxu0 0
    %1019 = vmatpush.bf16.msra.mxu0 0
    %1020 = vmatpush.bf16.msra.mxu0 0
    %1021 = vmatpush.bf16.msra.mxu0 0
    %1022 = vmatpush.bf16.msra.mxu0 0
    %1023 = vmatpush.bf16.msra.mxu0 0
    %1024 = vmatpush.bf16.msra.mxu0 %v1008
    %1025 = vmatpush.bf16.msra.mxu0 %v1007
    %1026 = vmatmul.bf16.gmra.mxu0 %v173
    %v1027 = vpop.f32.mrf.mxu0
    %v1028 = vadd.f32 0.0, %v1027
    %v1029 = vpop.f32.mrf.mxu0
    %v1030 = vadd.f32 0.0, %v1029
    %1031 = vmatmul.bf16.gmra.mxu0 %v176
    %v1032 = vpop.f32.mrf.mxu0
    %v1033 = vadd.f32 0.0, %v1032
    %v1034 = vpop.f32.mrf.mxu0
    %v1035 = vadd.f32 0.0, %v1034
    %1036 = vdwg.mxu0
    %v1037 = vmax.f32 %v1028, 1.0
    %v1038 = vmax.f32 %v1030, 1.0
    %v1039 = vmax.f32 %v1033, 1.0
    %v1040 = vmax.f32 %v1035, 1.0
    %v1041 = vrcp.pop %v1037
    %v1042 = vmul.f32 %v1037, %v1041
    %v1043 = vsub.f32 1.0, %v1042
    %v1044 = vmul.f32 %v1041, %v1043
    %v1045 = vadd.f32 %v1041, %v1044
    %vm1046 = vweird.f32 %v1037
    %vm1047 = vweird.f32 %v1041
    %vm1048 = vmor %vm1046, %vm1047
    %v1049 = vsel %vm1048, %v1041, %v1045
    %v1050 = vand.u32 2147483647, %v1037
    %vm1051 = vcmp.eq.f32.partialorder %v1050, 8.507059e+37
    %v1052 = vand.u32 %v1037, 2147483648
    %v1053 = vor.u32 1.1754944e-38, %v1052
    %v1054 = vsel %vm1051, %v1053, %v1049
    %v1055 = vmul.f32 1.0, %v1054
    %v1056 = vrcp.pop %v1038
    %v1057 = vmul.f32 %v1038, %v1056
    %v1058 = vsub.f32 1.0, %v1057
    %v1059 = vmul.f32 %v1056, %v1058
    %v1060 = vadd.f32 %v1056, %v1059
    %vm1061 = vweird.f32 %v1038
    %vm1062 = vweird.f32 %v1056
    %vm1063 = vmor %vm1061, %vm1062
    %v1064 = vsel %vm1063, %v1056, %v1060
    %v1065 = vand.u32 2147483647, %v1038
    %vm1066 = vcmp.eq.f32.partialorder %v1065, 8.507059e+37
    %v1067 = vand.u32 %v1038, 2147483648
    %v1068 = vor.u32 1.1754944e-38, %v1067
    %v1069 = vsel %vm1066, %v1068, %v1064
    %v1070 = vmul.f32 1.0, %v1069
    %v1071 = vrcp.pop %v1039
    %v1072 = vmul.f32 %v1039, %v1071
    %v1073 = vsub.f32 1.0, %v1072
    %v1074 = vmul.f32 %v1071, %v1073
    %v1075 = vadd.f32 %v1071, %v1074
    %vm1076 = vweird.f32 %v1039
    %vm1077 = vweird.f32 %v1071
    %vm1078 = vmor %vm1076, %vm1077
    %v1079 = vsel %vm1078, %v1071, %v1075
    %v1080 = vand.u32 2147483647, %v1039
    %vm1081 = vcmp.eq.f32.partialorder %v1080, 8.507059e+37
    %v1082 = vand.u32 %v1039, 2147483648
    %v1083 = vor.u32 1.1754944e-38, %v1082
    %v1084 = vsel %vm1081, %v1083, %v1079
    %v1085 = vmul.f32 1.0, %v1084
    %v1086 = vrcp.pop %v1040
    %v1087 = vmul.f32 %v1040, %v1086
    %v1088 = vsub.f32 1.0, %v1087
    %v1089 = vmul.f32 %v1086, %v1088
    %v1090 = vadd.f32 %v1086, %v1089
    %vm1091 = vweird.f32 %v1040
    %vm1092 = vweird.f32 %v1086
    %vm1093 = vmor %vm1091, %vm1092
    %v1094 = vsel %vm1093, %v1086, %v1090
    %v1095 = vand.u32 2147483647, %v1040
    %vm1096 = vcmp.eq.f32.partialorder %v1095, 8.507059e+37
    %v1097 = vand.u32 %v1040, 2147483648
    %v1098 = vor.u32 1.1754944e-38, %v1097
    %v1099 = vsel %vm1096, %v1098, %v1094
    %v1100 = vmul.f32 1.0, %v1099
    %v1101 = vpack.c.bf16 %v864, %v863
    %v1102 = vpack.c.bf16 %v866, %v865
    %1103 = vmatpush.bf16.msra.mxu0 0
    %1104 = vmatpush.bf16.msra.mxu0 0
    %1105 = vmatpush.bf16.msra.mxu0 0
    %1106 = vmatpush.bf16.msra.mxu0 0
    %1107 = vmatpush.bf16.msra.mxu0 0
    %1108 = vmatpush.bf16.msra.mxu0 0
    %1109 = vmatpush.bf16.msra.mxu0 %v1102
    %1110 = vmatpush.bf16.msra.mxu0 %v1101
    %1111 = vmatmul.bf16.gmra.mxu0 %v173
    %v1112 = vpop.f32.mrf.mxu0
    %v1113 = vadd.f32 0.0, %v1112
    %v1114 = vpop.f32.mrf.mxu0
    %v1115 = vadd.f32 0.0, %v1114
    %1116 = vmatmul.bf16.gmra.mxu0 %v176
    %v1117 = vpop.f32.mrf.mxu0
    %v1118 = vadd.f32 0.0, %v1117
    %v1119 = vpop.f32.mrf.mxu0
    %v1120 = vadd.f32 0.0, %v1119
    %1121 = vdwg.mxu0
    %1123 = vset.pattern.permute.xlu0 0
    %1124 = vperm.xlu0 %1123, %v1055
    %v1125 = vpop.permute.xlu0 %1124
    %1128 = vset.pattern.permute.xlu0 0
    %1129 = vperm.xlu0 %1128, %v1070
    %v1130 = vpop.permute.xlu0 %1129
    %1133 = vset.pattern.permute.xlu0 0
    %1134 = vperm.xlu0 %1133, %v1085
    %v1135 = vpop.permute.xlu0 %1134
    %1138 = vset.pattern.permute.xlu0 0
    %1139 = vperm.xlu0 %1138, %v1100
    %v1140 = vpop.permute.xlu0 %1139
    %v1142 = vmul.f32 %v1113, %v1125
    %v1143 = vmul.f32 %v1115, %v1130
    %v1144 = vmul.f32 %v1118, %v1135
    %v1145 = vmul.f32 %v1120, %v1140
    %v1146 = vpack.c.bf16 %v1143, %v1142
    %v1147 = vpack.c.bf16 %v1145, %v1144
    %v1148 = vpack.c.bf16 %v1010, %v1009
    %v1149 = vpack.c.bf16 %v1012, %v1011
    %v1150 = vpack.c.bf16 %v1014, %v1013
    %v1151 = vpack.c.bf16 %v1016, %v1015
    %v1153 = vsel %vm171, %v1101, 0
    %v1156 = vsel %vm171, %v1102, 0
    %1158 = vmatpush.bf16.msra.mxu0 0
    %1159 = vmatpush.bf16.msra.mxu0 0
    %1160 = vmatpush.bf16.msra.mxu0 0
    %1161 = vmatpush.bf16.msra.mxu0 0
    %1162 = vmatpush.bf16.msra.mxu0 0
    %1163 = vmatpush.bf16.msra.mxu0 0
    %1164 = vmatpush.bf16.msra.mxu0 %v1151
    %1165 = vmatpush.bf16.msra.mxu0 %v1150
    %1166 = vmatmul.bf16.gmra.mxu0 %v1153
    %v1167 = vpop.f32.mrf.mxu0
    %v1168 = vadd.f32 0.0, %v1167
    %v1169 = vpop.f32.mrf.mxu0
    %v1170 = vadd.f32 0.0, %v1169
    %1171 = vmatmul.bf16.gmra.mxu0 %v1156
    %v1172 = vpop.f32.mrf.mxu0
    %v1173 = vadd.f32 0.0, %v1172
    %v1174 = vpop.f32.mrf.mxu0
    %v1175 = vadd.f32 0.0, %v1174
    %1176 = vdwg.mxu0
    %v1178 = vsel %vm171, %v1146, 0
    %v1181 = vsel %vm171, %v1147, 0
    %1183 = vmatpush.bf16.msra.mxu0 0
    %1184 = vmatpush.bf16.msra.mxu0 0
    %1185 = vmatpush.bf16.msra.mxu0 0
    %1186 = vmatpush.bf16.msra.mxu0 0
    %1187 = vmatpush.bf16.msra.mxu0 0
    %1188 = vmatpush.bf16.msra.mxu0 0
    %1189 = vmatpush.bf16.msra.mxu0 %v1149
    %1190 = vmatpush.bf16.msra.mxu0 %v1148
    %1191 = vmatmul.bf16.gmra.mxu0 %v1178
    %v1192 = vpop.f32.mrf.mxu0
    %v1193 = vadd.f32 %v1168, %v1192
    %v1194 = vpop.f32.mrf.mxu0
    %v1195 = vadd.f32 %v1170, %v1194
    %1196 = vmatmul.bf16.gmra.mxu0 %v1181
    %v1197 = vpop.f32.mrf.mxu0
    %v1198 = vadd.f32 %v1173, %v1197
    %v1199 = vpop.f32.mrf.mxu0
    %v1200 = vadd.f32 %v1175, %v1199
    %1201 = vdwg.mxu0
    %v1203 = vperm.slane %v1017, 0
    %v1205 = vadd.f32 %v1193, %v1203
    %v1206 = vadd.f32 %v1195, %v1203
    %v1207 = vadd.f32 %v1198, %v1203
    %v1208 = vadd.f32 %v1200, %v1203
    %v1209 = vmax.f32 %v1205, 0.0
    %v1210 = vmax.f32 %v1206, 0.0
    %v1211 = vmax.f32 %v1207, 0.0
    %v1212 = vmax.f32 %v1208, 0.0
    %v1213 = vmul.f32 %v1209, %v846
    %v1214 = vmul.f32 %v1210, %v851
    %v1215 = vmul.f32 %v1211, %v856
    %v1216 = vmul.f32 %v1212, %v861
    %v1217 = vld [vmem:[%s11] sm:$0xff]
    %v1218 = vld [vmem:[%s11 + $0x8] sm:$0xff]
    %v1219 = vld [vmem:[%s11 + $0x10] sm:$0xff]
    %v1220 = vld [vmem:[%s11 + $0x18] sm:$0xff]
    %v1221 = vld [vmem:[%s12] sm:$0xff]
    %v1222 = vld [vmem:[%s12 + $0x8] sm:$0xff]
    %v1223 = vld [vmem:[%s12 + $0x10] sm:$0xff]
    %v1224 = vld [vmem:[%s12 + $0x18] sm:$0xff]
    %v1225 = vld [vmem:[#allocation3] sm:$0x1]
    %v1226 = vpack.c.bf16 %v1214, %v1213
    %v1227 = vpack.c.bf16 %v1216, %v1215
    %1228 = vmatpush.bf16.msra.mxu0 0
    %1229 = vmatpush.bf16.msra.mxu0 0
    %1230 = vmatpush.bf16.msra.mxu0 0
    %1231 = vmatpush.bf16.msra.mxu0 0
    %1232 = vmatpush.bf16.msra.mxu0 0
    %1233 = vmatpush.bf16.msra.mxu0 0
    %1234 = vmatpush.bf16.msra.mxu0 %v1227
    %1235 = vmatpush.bf16.msra.mxu0 %v1226
    %1236 = vmatmul.bf16.gmra.mxu0 %v173
    %v1237 = vpop.f32.mrf.mxu0
    %v1238 = vadd.f32 0.0, %v1237
    %v1239 = vpop.f32.mrf.mxu0
    %v1240 = vadd.f32 0.0, %v1239
    %1241 = vmatmul.bf16.gmra.mxu0 %v176
    %v1242 = vpop.f32.mrf.mxu0
    %v1243 = vadd.f32 0.0, %v1242
    %v1244 = vpop.f32.mrf.mxu0
    %v1245 = vadd.f32 0.0, %v1244
    %1246 = vdwg.mxu0
    %v1247 = vmul.f32 %v1238, %v1125
    %v1248 = vmul.f32 %v1240, %v1130
    %v1249 = vmul.f32 %v1243, %v1135
    %v1250 = vmul.f32 %v1245, %v1140
    %v1251 = vpack.c.bf16 %v1248, %v1247
    %v1252 = vpack.c.bf16 %v1250, %v1249
    %v1253 = vpack.c.bf16 %v1218, %v1217
    %v1254 = vpack.c.bf16 %v1220, %v1219
    %v1255 = vpack.c.bf16 %v1222, %v1221
    %v1256 = vpack.c.bf16 %v1224, %v1223
    %v1258 = vsel %vm171, %v1226, 0
    %v1261 = vsel %vm171, %v1227, 0
    %1263 = vmatpush.bf16.msra.mxu0 0
    %1264 = vmatpush.bf16.msra.mxu0 0
    %1265 = vmatpush.bf16.msra.mxu0 0
    %1266 = vmatpush.bf16.msra.mxu0 0
    %1267 = vmatpush.bf16.msra.mxu0 0
    %1268 = vmatpush.bf16.msra.mxu0 0
    %1269 = vmatpush.bf16.msra.mxu0 %v1256
    %1270 = vmatpush.bf16.msra.mxu0 %v1255
    %1271 = vmatmul.bf16.gmra.mxu0 %v1258
    %v1272 = vpop.f32.mrf.mxu0
    %v1273 = vadd.f32 0.0, %v1272
    %v1274 = vpop.f32.mrf.mxu0
    %v1275 = vadd.f32 0.0, %v1274
    %1276 = vmatmul.bf16.gmra.mxu0 %v1261
    %v1277 = vpop.f32.mrf.mxu0
    %v1278 = vadd.f32 0.0, %v1277
    %v1279 = vpop.f32.mrf.mxu0
    %v1280 = vadd.f32 0.0, %v1279
    %1281 = vdwg.mxu0
    %v1283 = vsel %vm171, %v1251, 0
    %v1286 = vsel %vm171, %v1252, 0
    %1288 = vmatpush.bf16.msra.mxu0 0
    %1289 = vmatpush.bf16.msra.mxu0 0
    %1290 = vmatpush.bf16.msra.mxu0 0
    %1291 = vmatpush.bf16.msra.mxu0 0
    %1292 = vmatpush.bf16.msra.mxu0 0
    %1293 = vmatpush.bf16.msra.mxu0 0
    %1294 = vmatpush.bf16.msra.mxu0 %v1254
    %1295 = vmatpush.bf16.msra.mxu0 %v1253
    %1296 = vmatmul.bf16.gmra.mxu0 %v1283
    %v1297 = vpop.f32.mrf.mxu0
    %v1298 = vadd.f32 %v1273, %v1297
    %v1299 = vpop.f32.mrf.mxu0
    %v1300 = vadd.f32 %v1275, %v1299
    %1301 = vmatmul.bf16.gmra.mxu0 %v1286
    %v1302 = vpop.f32.mrf.mxu0
    %v1303 = vadd.f32 %v1278, %v1302
    %v1304 = vpop.f32.mrf.mxu0
    %v1305 = vadd.f32 %v1280, %v1304
    %1306 = vdwg.mxu0
    %v1308 = vperm.slane %v1225, 0
    %v1310 = vadd.f32 %v1298, %v1308
    %v1311 = vadd.f32 %v1300, %v1308
    %v1312 = vadd.f32 %v1303, %v1308
    %v1313 = vadd.f32 %v1305, %v1308
    %v1314 = vtanh.pop %v1310
    %v1315 = vtanh.pop %v1311
    %v1316 = vtanh.pop %v1312
    %v1317 = vtanh.pop %v1313
    %v1318 = vsel %vm906, %v1314, -1e+30
    %v1319 = vsel %vm907, %v1315, -1e+30
    %v1320 = vsel %vm973, %v1316, -1e+30
    %v1321 = vsel %vm974, %v1317, -1e+30
    %v1322 = vsel %vm486, %v1318, -inf
    %v1323 = vsel %vm486, %v1319, -inf
    %v1324 = vmax.f32 %v1322, %v1323
    %v1325 = vrot.slane %v1324, 4
    %v1326 = vmax.f32 %v1324, %v1325
    %v1327 = vrot.slane %v1326, 2
    %v1328 = vmax.f32 %v1326, %v1327
    %v1329 = vrot.slane %v1328, 1
    %v1330 = vmax.f32 %v1328, %v1329
    %vm1331 = vcmp.ge.f32.partialorder %v1318, %v1330
    %vm1332 = vcmp.ge.f32.partialorder %v1319, %v1330
    %vm1333 = vcmp.gt.f32.partialorder %v1318, -5e+29
    %vm1334 = vcmp.gt.f32.partialorder %v1319, -5e+29
    %vm1335 = vmand %vm1331, %vm1333
    %vm1336 = vmand %vm1332, %vm1334
    %v1337 = vsel %vm1335, %v484, 16
    %v1338 = vsel %vm1336, %v485, 16
    %v1339 = vsel %vm486, %v1337, 2147483647
    %v1340 = vsel %vm486, %v1338, 2147483647
    %vm1341 = vcmp.lt.s32.totalorder %v1339, %v1340
    %v1342 = vsel %vm1341, %v1339, %v1340
    %v1343 = vrot.slane %v1342, 4
    %vm1344 = vcmp.lt.s32.totalorder %v1342, %v1343
    %v1345 = vsel %vm1344, %v1342, %v1343
    %v1346 = vrot.slane %v1345, 2
    %vm1347 = vcmp.lt.s32.totalorder %v1345, %v1346
    %v1348 = vsel %vm1347, %v1345, %v1346
    %v1349 = vrot.slane %v1348, 1
    %vm1350 = vcmp.lt.s32.totalorder %v1348, %v1349
    %v1351 = vsel %vm1350, %v1348, %v1349
    %vm1352 = vcmp.eq.s32.totalorder %v484, %v1351
    %vm1353 = vcmp.eq.s32.totalorder %v485, %v1351
    %vm1354 = vmand %vm1335, %vm1352
    %vm1355 = vmand %vm1336, %vm1353
    %v1356 = vsel %vm1354, 1, 0
    %v1357 = vsel %vm1355, 1, 0
    %v1358 = vcvt.s32.f32 %v1356
    %v1359 = vcvt.s32.f32 %v1357
    %v1360 = vadd.f32 %v1358, 0.0
    %v1361 = vadd.f32 %v1359, 0.0
    %v1362 = vsel %vm486, %v1320, -inf
    %v1363 = vsel %vm486, %v1321, -inf
    %v1364 = vmax.f32 %v1362, %v1363
    %v1365 = vrot.slane %v1364, 4
    %v1366 = vmax.f32 %v1364, %v1365
    %v1367 = vrot.slane %v1366, 2
    %v1368 = vmax.f32 %v1366, %v1367
    %v1369 = vrot.slane %v1368, 1
    %v1370 = vmax.f32 %v1368, %v1369
    %vm1371 = vcmp.ge.f32.partialorder %v1320, %v1370
    %vm1372 = vcmp.ge.f32.partialorder %v1321, %v1370
    %vm1373 = vcmp.gt.f32.partialorder %v1320, -5e+29
    %vm1374 = vcmp.gt.f32.partialorder %v1321, -5e+29
    %vm1375 = vmand %vm1371, %vm1373
    %vm1376 = vmand %vm1372, %vm1374
    %v1377 = vsel %vm1375, %v484, 16
    %v1378 = vsel %vm1376, %v485, 16
    %v1379 = vsel %vm486, %v1377, 2147483647
    %v1380 = vsel %vm486, %v1378, 2147483647
    %vm1381 = vcmp.lt.s32.totalorder %v1379, %v1380
    %v1382 = vsel %vm1381, %v1379, %v1380
    %v1383 = vrot.slane %v1382, 4
    %vm1384 = vcmp.lt.s32.totalorder %v1382, %v1383
    %v1385 = vsel %vm1384, %v1382, %v1383
    %v1386 = vrot.slane %v1385, 2
    %vm1387 = vcmp.lt.s32.totalorder %v1385, %v1386
    %v1388 = vsel %vm1387, %v1385, %v1386
    %v1389 = vrot.slane %v1388, 1
    %vm1390 = vcmp.lt.s32.totalorder %v1388, %v1389
    %v1391 = vsel %vm1390, %v1388, %v1389
    %vm1392 = vcmp.eq.s32.totalorder %v484, %v1391
    %vm1393 = vcmp.eq.s32.totalorder %v485, %v1391
    %vm1394 = vmand %vm1375, %vm1392
    %vm1395 = vmand %vm1376, %vm1393
    %v1396 = vsel %vm1394, 1, 0
    %v1397 = vsel %vm1395, 1, 0
    %v1398 = vcvt.s32.f32 %v1396
    %v1399 = vcvt.s32.f32 %v1397
    %v1400 = vadd.f32 %v1398, 0.0
    %v1401 = vadd.f32 %v1399, 0.0
    %1403 = vset.pattern.permute.xlu0 0
    %1404 = vperm.xlu0 %1403, %v1314
    %v1405 = vpop.permute.xlu0 %1404
    %1408 = vset.pattern.permute.xlu0 0
    %1409 = vperm.xlu0 %1408, %v1315
    %v1410 = vpop.permute.xlu0 %1409
    %1413 = vset.pattern.permute.xlu0 0
    %1414 = vperm.xlu0 %1413, %v1316
    %v1415 = vpop.permute.xlu0 %1414
    %1418 = vset.pattern.permute.xlu0 0
    %1419 = vperm.xlu0 %1418, %v1317
    %v1420 = vpop.permute.xlu0 %1419
    %v1422 = vmul.f32 %v1213, %v1405
    %v1423 = vmul.f32 %v1214, %v1410
    %v1424 = vmul.f32 %v1215, %v1415
    %v1425 = vmul.f32 %v1216, %v1420
    %1427 = vset.pattern.permute.xlu0 0
    %1428 = vperm.xlu0 %1427, %v1360
    %v1429 = vpop.permute.xlu0 %1428
    %1432 = vset.pattern.permute.xlu0 0
    %1433 = vperm.xlu0 %1432, %v1361
    %v1434 = vpop.permute.xlu0 %1433
    %1437 = vset.pattern.permute.xlu0 0
    %1438 = vperm.xlu0 %1437, %v1400
    %v1439 = vpop.permute.xlu0 %1438
    %1442 = vset.pattern.permute.xlu0 0
    %1443 = vperm.xlu0 %1442, %v1401
    %v1444 = vpop.permute.xlu0 %1443
    %v1446 = vmul.f32 %v1422, %v1429
    %v1447 = vmul.f32 %v1423, %v1434
    %v1448 = vmul.f32 %v1424, %v1439
    %v1449 = vmul.f32 %v1425, %v1444
    %v1450 = vsel %vm486, %v1360, 0.0
    %v1451 = vsel %vm486, %v1361, 0.0
    %v1452 = vadd.f32 %v1450, %v1451
    %v1453 = vrot.slane %v1452, 4
    %v1454 = vadd.f32 %v1452, %v1453
    %v1455 = vrot.slane %v1454, 2
    %v1456 = vadd.f32 %v1454, %v1455
    %v1457 = vrot.slane %v1456, 1
    %v1458 = vadd.f32 %v1456, %v1457
    %v1459 = vmax.f32 %v1458, 1.0
    %v1460 = vsel %vm171, %v1446, 0.0
    %v1461 = vsel %vm171, %v1447, 0.0
    %v1462 = vadd.f32 %v1460, %v1461
    %v1463 = vrot.slane %v1462, 4
    %v1464 = vadd.f32 %v1462, %v1463
    %v1465 = vrot.slane %v1464, 2
    %v1466 = vadd.f32 %v1464, %v1465
    %v1467 = vrot.slane %v1466, 1
    %v1468 = vadd.f32 %v1466, %v1467
    %1470 = vset.pattern.permute.xlu0 0
    %1471 = vperm.xlu0 %1470, %v1459
    %v1472 = vpop.permute.xlu0 %1471
    %v1474 = vrcp.pop %v1472
    %v1475 = vmul.f32 %v1472, %v1474
    %v1476 = vsub.f32 1.0, %v1475
    %v1477 = vmul.f32 %v1474, %v1476
    %v1478 = vadd.f32 %v1474, %v1477
    %vm1479 = vweird.f32 %v1472
    %vm1480 = vweird.f32 %v1474
    %vm1481 = vmor %vm1479, %vm1480
    %v1482 = vsel %vm1481, %v1474, %v1478
    %v1483 = vand.u32 2147483647, %v1472
    %vm1484 = vcmp.eq.f32.partialorder %v1483, 8.507059e+37
    %v1485 = vand.u32 %v1472, 2147483648
    %v1486 = vor.u32 1.1754944e-38, %v1485
    %v1487 = vsel %vm1484, %v1486, %v1482
    %v1488 = vmul.f32 %v1468, %v1487
    %vm1489 = vcmp.gt.f32.partialorder %v1360, 0.0
    %vm1490 = vcmp.gt.f32.partialorder %v1361, 0.0
    %v1491 = vsel %vm1489, 1, 0
    %v1492 = vsel %vm1490, 1, 0
    %1493 = vset.pattern.permute.xlu0 0
    %1494 = vperm.xlu0 %1493, %v1491
    %v1495 = vpop.permute.xlu0 %1494
    %1496 = vset.pattern.permute.xlu0 0
    %1497 = vperm.xlu0 %1496, %v1492
    %v1498 = vpop.permute.xlu0 %1497
    %vm1499 = vcmp.eq.s32.totalorder %v1495, 1
    %vm1500 = vcmp.eq.s32.totalorder %v1498, 1
    %v1501 = vsel %vm1499, %v1446, -1e+30
    %v1502 = vsel %vm1500, %v1447, -1e+30
    %v1503 = vsel %vm171, %v1501, -inf
    %v1504 = vsel %vm171, %v1502, -inf
    %v1505 = vmax.f32 %v1503, %v1504
    %v1506 = vrot.slane %v1505, 4
    %v1507 = vmax.f32 %v1505, %v1506
    %v1508 = vrot.slane %v1507, 2
    %v1509 = vmax.f32 %v1507, %v1508
    %v1510 = vrot.slane %v1509, 1
    %v1511 = vmax.f32 %v1509, %v1510
    %1513 = vrot.lane.b32.xlu0 %v1488, 32
    %v1514 = vpop.permute.xlu0 %1513
    %v1516 = vsel %vm171, %v1511, %v1514
    %v1517 = vsel %vm486, %v1400, 0.0
    %v1518 = vsel %vm486, %v1401, 0.0
    %v1519 = vadd.f32 %v1517, %v1518
    %v1520 = vrot.slane %v1519, 4
    %v1521 = vadd.f32 %v1519, %v1520
    %v1522 = vrot.slane %v1521, 2
    %v1523 = vadd.f32 %v1521, %v1522
    %v1524 = vrot.slane %v1523, 1
    %v1525 = vadd.f32 %v1523, %v1524
    %v1526 = vmax.f32 %v1525, 1.0
    %v1527 = vsel %vm171, %v1448, 0.0
    %v1528 = vsel %vm171, %v1449, 0.0
    %v1529 = vadd.f32 %v1527, %v1528
    %v1530 = vrot.slane %v1529, 4
    %v1531 = vadd.f32 %v1529, %v1530
    %v1532 = vrot.slane %v1531, 2
    %v1533 = vadd.f32 %v1531, %v1532
    %v1534 = vrot.slane %v1533, 1
    %v1535 = vadd.f32 %v1533, %v1534
    %1537 = vset.pattern.permute.xlu0 0
    %1538 = vperm.xlu0 %1537, %v1526
    %v1539 = vpop.permute.xlu0 %1538
    %v1541 = vrcp.pop %v1539
    %v1542 = vmul.f32 %v1539, %v1541
    %v1543 = vsub.f32 1.0, %v1542
    %v1544 = vmul.f32 %v1541, %v1543
    %v1545 = vadd.f32 %v1541, %v1544
    %vm1546 = vweird.f32 %v1539
    %vm1547 = vweird.f32 %v1541
    %vm1548 = vmor %vm1546, %vm1547
    %v1549 = vsel %vm1548, %v1541, %v1545
    %v1550 = vand.u32 2147483647, %v1539
    %vm1551 = vcmp.eq.f32.partialorder %v1550, 8.507059e+37
    %v1552 = vand.u32 %v1539, 2147483648
    %v1553 = vor.u32 1.1754944e-38, %v1552
    %v1554 = vsel %vm1551, %v1553, %v1549
    %v1555 = vmul.f32 %v1535, %v1554
    %vm1556 = vcmp.gt.f32.partialorder %v1400, 0.0
    %vm1557 = vcmp.gt.f32.partialorder %v1401, 0.0
    %v1558 = vsel %vm1556, 1, 0
    %v1559 = vsel %vm1557, 1, 0
    %1560 = vset.pattern.permute.xlu0 0
    %1561 = vperm.xlu0 %1560, %v1558
    %v1562 = vpop.permute.xlu0 %1561
    %1563 = vset.pattern.permute.xlu0 0
    %1564 = vperm.xlu0 %1563, %v1559
    %v1565 = vpop.permute.xlu0 %1564
    %vm1566 = vcmp.eq.s32.totalorder %v1562, 1
    %vm1567 = vcmp.eq.s32.totalorder %v1565, 1
    %v1568 = vsel %vm1566, %v1448, -1e+30
    %v1569 = vsel %vm1567, %v1449, -1e+30
    %v1570 = vsel %vm171, %v1568, -inf
    %v1571 = vsel %vm171, %v1569, -inf
    %v1572 = vmax.f32 %v1570, %v1571
    %v1573 = vrot.slane %v1572, 4
    %v1574 = vmax.f32 %v1572, %v1573
    %v1575 = vrot.slane %v1574, 2
    %v1576 = vmax.f32 %v1574, %v1575
    %v1577 = vrot.slane %v1576, 1
    %v1578 = vmax.f32 %v1576, %v1577
    %1580 = vrot.lane.b32.xlu0 %v1555, 32
    %v1581 = vpop.permute.xlu0 %1580
    %v1583 = vsel %vm171, %v1578, %v1581
    %v1585 = vrot.slane %v1583, 7
    %v1587 = vsel %vm1004, %v1516, %v1585
    %v1588 = vadd.f32 %v1006, %v1587
    %v1589 = vpack.c.bf16 %v1361, %v1360
    %v1590 = vpack.c.bf16 %v1401, %v1400
    %v1591 = vld [vmem:[%s14] sm:$0xff]
    %v1592 = vld [vmem:[%s14 + $0x8] sm:$0xff]
    %v1593 = vld [vmem:[%s14 + $0x10] sm:$0xff]
    %v1594 = vld [vmem:[%s14 + $0x18] sm:$0xff]
    %v1595 = vld [vmem:[%s15] sm:$0xff]
    %v1596 = vld [vmem:[%s15 + $0x8] sm:$0xff]
    %v1597 = vld [vmem:[%s15 + $0x10] sm:$0xff]
    %v1598 = vld [vmem:[%s15 + $0x18] sm:$0xff]
    %v1599 = vld [vmem:[%s16] sm:$0x1]
    %1600 = vmatpush.bf16.msra.mxu0 0
    %1601 = vmatpush.bf16.msra.mxu0 0
    %1602 = vmatpush.bf16.msra.mxu0 0
    %1603 = vmatpush.bf16.msra.mxu0 0
    %1604 = vmatpush.bf16.msra.mxu0 0
    %1605 = vmatpush.bf16.msra.mxu0 0
    %1606 = vmatpush.bf16.msra.mxu0 %v1590
    %1607 = vmatpush.bf16.msra.mxu0 %v1589
    %1608 = vmatmul.bf16.gmra.mxu0 %v173
    %v1609 = vpop.f32.mrf.mxu0
    %v1610 = vadd.f32 0.0, %v1609
    %v1611 = vpop.f32.mrf.mxu0
    %v1612 = vadd.f32 0.0, %v1611
    %1613 = vmatmul.bf16.gmra.mxu0 %v176
    %v1614 = vpop.f32.mrf.mxu0
    %v1615 = vadd.f32 0.0, %v1614
    %v1616 = vpop.f32.mrf.mxu0
    %v1617 = vadd.f32 0.0, %v1616
    %1618 = vdwg.mxu0
    %v1619 = vmax.f32 %v1610, 1.0
    %v1620 = vmax.f32 %v1612, 1.0
    %v1621 = vmax.f32 %v1615, 1.0
    %v1622 = vmax.f32 %v1617, 1.0
    %v1623 = vrcp.pop %v1619
    %v1624 = vmul.f32 %v1619, %v1623
    %v1625 = vsub.f32 1.0, %v1624
    %v1626 = vmul.f32 %v1623, %v1625
    %v1627 = vadd.f32 %v1623, %v1626
    %vm1628 = vweird.f32 %v1619
    %vm1629 = vweird.f32 %v1623
    %vm1630 = vmor %vm1628, %vm1629
    %v1631 = vsel %vm1630, %v1623, %v1627
    %v1632 = vand.u32 2147483647, %v1619
    %vm1633 = vcmp.eq.f32.partialorder %v1632, 8.507059e+37
    %v1634 = vand.u32 %v1619, 2147483648
    %v1635 = vor.u32 1.1754944e-38, %v1634
    %v1636 = vsel %vm1633, %v1635, %v1631
    %v1637 = vmul.f32 1.0, %v1636
    %v1638 = vrcp.pop %v1620
    %v1639 = vmul.f32 %v1620, %v1638
    %v1640 = vsub.f32 1.0, %v1639
    %v1641 = vmul.f32 %v1638, %v1640
    %v1642 = vadd.f32 %v1638, %v1641
    %vm1643 = vweird.f32 %v1620
    %vm1644 = vweird.f32 %v1638
    %vm1645 = vmor %vm1643, %vm1644
    %v1646 = vsel %vm1645, %v1638, %v1642
    %v1647 = vand.u32 2147483647, %v1620
    %vm1648 = vcmp.eq.f32.partialorder %v1647, 8.507059e+37
    %v1649 = vand.u32 %v1620, 2147483648
    %v1650 = vor.u32 1.1754944e-38, %v1649
    %v1651 = vsel %vm1648, %v1650, %v1646
    %v1652 = vmul.f32 1.0, %v1651
    %v1653 = vrcp.pop %v1621
    %v1654 = vmul.f32 %v1621, %v1653
    %v1655 = vsub.f32 1.0, %v1654
    %v1656 = vmul.f32 %v1653, %v1655
    %v1657 = vadd.f32 %v1653, %v1656
    %vm1658 = vweird.f32 %v1621
    %vm1659 = vweird.f32 %v1653
    %vm1660 = vmor %vm1658, %vm1659
    %v1661 = vsel %vm1660, %v1653, %v1657
    %v1662 = vand.u32 2147483647, %v1621
    %vm1663 = vcmp.eq.f32.partialorder %v1662, 8.507059e+37
    %v1664 = vand.u32 %v1621, 2147483648
    %v1665 = vor.u32 1.1754944e-38, %v1664
    %v1666 = vsel %vm1663, %v1665, %v1661
    %v1667 = vmul.f32 1.0, %v1666
    %v1668 = vrcp.pop %v1622
    %v1669 = vmul.f32 %v1622, %v1668
    %v1670 = vsub.f32 1.0, %v1669
    %v1671 = vmul.f32 %v1668, %v1670
    %v1672 = vadd.f32 %v1668, %v1671
    %vm1673 = vweird.f32 %v1622
    %vm1674 = vweird.f32 %v1668
    %vm1675 = vmor %vm1673, %vm1674
    %v1676 = vsel %vm1675, %v1668, %v1672
    %v1677 = vand.u32 2147483647, %v1622
    %vm1678 = vcmp.eq.f32.partialorder %v1677, 8.507059e+37
    %v1679 = vand.u32 %v1622, 2147483648
    %v1680 = vor.u32 1.1754944e-38, %v1679
    %v1681 = vsel %vm1678, %v1680, %v1676
    %v1682 = vmul.f32 1.0, %v1681
    %v1683 = vpack.c.bf16 %v1447, %v1446
    %v1684 = vpack.c.bf16 %v1449, %v1448
    %1685 = vmatpush.bf16.msra.mxu0 0
    %1686 = vmatpush.bf16.msra.mxu0 0
    %1687 = vmatpush.bf16.msra.mxu0 0
    %1688 = vmatpush.bf16.msra.mxu0 0
    %1689 = vmatpush.bf16.msra.mxu0 0
    %1690 = vmatpush.bf16.msra.mxu0 0
    %1691 = vmatpush.bf16.msra.mxu0 %v1684
    %1692 = vmatpush.bf16.msra.mxu0 %v1683
    %1693 = vmatmul.bf16.gmra.mxu0 %v173
    %v1694 = vpop.f32.mrf.mxu0
    %v1695 = vadd.f32 0.0, %v1694
    %v1696 = vpop.f32.mrf.mxu0
    %v1697 = vadd.f32 0.0, %v1696
    %1698 = vmatmul.bf16.gmra.mxu0 %v176
    %v1699 = vpop.f32.mrf.mxu0
    %v1700 = vadd.f32 0.0, %v1699
    %v1701 = vpop.f32.mrf.mxu0
    %v1702 = vadd.f32 0.0, %v1701
    %1703 = vdwg.mxu0
    %1705 = vset.pattern.permute.xlu0 0
    %1706 = vperm.xlu0 %1705, %v1637
    %v1707 = vpop.permute.xlu0 %1706
    %1710 = vset.pattern.permute.xlu0 0
    %1711 = vperm.xlu0 %1710, %v1652
    %v1712 = vpop.permute.xlu0 %1711
    %1715 = vset.pattern.permute.xlu0 0
    %1716 = vperm.xlu0 %1715, %v1667
    %v1717 = vpop.permute.xlu0 %1716
    %1720 = vset.pattern.permute.xlu0 0
    %1721 = vperm.xlu0 %1720, %v1682
    %v1722 = vpop.permute.xlu0 %1721
    %v1724 = vmul.f32 %v1695, %v1707
    %v1725 = vmul.f32 %v1697, %v1712
    %v1726 = vmul.f32 %v1700, %v1717
    %v1727 = vmul.f32 %v1702, %v1722
    %v1728 = vpack.c.bf16 %v1725, %v1724
    %v1729 = vpack.c.bf16 %v1727, %v1726
    %v1730 = vpack.c.bf16 %v1592, %v1591
    %v1731 = vpack.c.bf16 %v1594, %v1593
    %v1732 = vpack.c.bf16 %v1596, %v1595
    %v1733 = vpack.c.bf16 %v1598, %v1597
    %v1735 = vsel %vm171, %v1683, 0
    %v1738 = vsel %vm171, %v1684, 0
    %1740 = vmatpush.bf16.msra.mxu0 0
    %1741 = vmatpush.bf16.msra.mxu0 0
    %1742 = vmatpush.bf16.msra.mxu0 0
    %1743 = vmatpush.bf16.msra.mxu0 0
    %1744 = vmatpush.bf16.msra.mxu0 0
    %1745 = vmatpush.bf16.msra.mxu0 0
    %1746 = vmatpush.bf16.msra.mxu0 %v1733
    %1747 = vmatpush.bf16.msra.mxu0 %v1732
    %1748 = vmatmul.bf16.gmra.mxu0 %v1735
    %v1749 = vpop.f32.mrf.mxu0
    %v1750 = vadd.f32 0.0, %v1749
    %v1751 = vpop.f32.mrf.mxu0
    %v1752 = vadd.f32 0.0, %v1751
    %1753 = vmatmul.bf16.gmra.mxu0 %v1738
    %v1754 = vpop.f32.mrf.mxu0
    %v1755 = vadd.f32 0.0, %v1754
    %v1756 = vpop.f32.mrf.mxu0
    %v1757 = vadd.f32 0.0, %v1756
    %1758 = vdwg.mxu0
    %v1760 = vsel %vm171, %v1728, 0
    %v1763 = vsel %vm171, %v1729, 0
    %1765 = vmatpush.bf16.msra.mxu0 0
    %1766 = vmatpush.bf16.msra.mxu0 0
    %1767 = vmatpush.bf16.msra.mxu0 0
    %1768 = vmatpush.bf16.msra.mxu0 0
    %1769 = vmatpush.bf16.msra.mxu0 0
    %1770 = vmatpush.bf16.msra.mxu0 0
    %1771 = vmatpush.bf16.msra.mxu0 %v1731
    %1772 = vmatpush.bf16.msra.mxu0 %v1730
    %1773 = vmatmul.bf16.gmra.mxu0 %v1760
    %v1774 = vpop.f32.mrf.mxu0
    %v1775 = vadd.f32 %v1750, %v1774
    %v1776 = vpop.f32.mrf.mxu0
    %v1777 = vadd.f32 %v1752, %v1776
    %1778 = vmatmul.bf16.gmra.mxu0 %v1763
    %v1779 = vpop.f32.mrf.mxu0
    %v1780 = vadd.f32 %v1755, %v1779
    %v1781 = vpop.f32.mrf.mxu0
    %v1782 = vadd.f32 %v1757, %v1781
    %1783 = vdwg.mxu0
    %v1785 = vperm.slane %v1599, 0
    %v1787 = vadd.f32 %v1775, %v1785
    %v1788 = vadd.f32 %v1777, %v1785
    %v1789 = vadd.f32 %v1780, %v1785
    %v1790 = vadd.f32 %v1782, %v1785
    %v1791 = vmax.f32 %v1787, 0.0
    %v1792 = vmax.f32 %v1788, 0.0
    %v1793 = vmax.f32 %v1789, 0.0
    %v1794 = vmax.f32 %v1790, 0.0
    %v1795 = vmul.f32 %v1791, %v1429
    %v1796 = vmul.f32 %v1792, %v1434
    %v1797 = vmul.f32 %v1793, %v1439
    %v1798 = vmul.f32 %v1794, %v1444
    %v1799 = vld [vmem:[%s17] sm:$0xff]
    %v1800 = vld [vmem:[%s17 + $0x8] sm:$0xff]
    %v1801 = vld [vmem:[%s17 + $0x10] sm:$0xff]
    %v1802 = vld [vmem:[%s17 + $0x18] sm:$0xff]
    %v1803 = vld [vmem:[%s18] sm:$0xff]
    %v1804 = vld [vmem:[%s18 + $0x8] sm:$0xff]
    %v1805 = vld [vmem:[%s18 + $0x10] sm:$0xff]
    %v1806 = vld [vmem:[%s18 + $0x18] sm:$0xff]
    %v1807 = vld [vmem:[#allocation4] sm:$0x1]
    %v1808 = vpack.c.bf16 %v1796, %v1795
    %v1809 = vpack.c.bf16 %v1798, %v1797
    %1810 = vmatpush.bf16.msra.mxu0 0
    %1811 = vmatpush.bf16.msra.mxu0 0
    %1812 = vmatpush.bf16.msra.mxu0 0
    %1813 = vmatpush.bf16.msra.mxu0 0
    %1814 = vmatpush.bf16.msra.mxu0 0
    %1815 = vmatpush.bf16.msra.mxu0 0
    %1816 = vmatpush.bf16.msra.mxu0 %v1809
    %1817 = vmatpush.bf16.msra.mxu0 %v1808
    %1818 = vmatmul.bf16.gmra.mxu0 %v173
    %v1819 = vpop.f32.mrf.mxu0
    %v1820 = vadd.f32 0.0, %v1819
    %v1821 = vpop.f32.mrf.mxu0
    %v1822 = vadd.f32 0.0, %v1821
    %1823 = vmatmul.bf16.gmra.mxu0 %v176
    %v1824 = vpop.f32.mrf.mxu0
    %v1825 = vadd.f32 0.0, %v1824
    %v1826 = vpop.f32.mrf.mxu0
    %v1827 = vadd.f32 0.0, %v1826
    %1828 = vdwg.mxu0
    %v1829 = vmul.f32 %v1820, %v1707
    %v1830 = vmul.f32 %v1822, %v1712
    %v1831 = vmul.f32 %v1825, %v1717
    %v1832 = vmul.f32 %v1827, %v1722
    %v1833 = vpack.c.bf16 %v1830, %v1829
    %v1834 = vpack.c.bf16 %v1832, %v1831
    %v1835 = vpack.c.bf16 %v1800, %v1799
    %v1836 = vpack.c.bf16 %v1802, %v1801
    %v1837 = vpack.c.bf16 %v1804, %v1803
    %v1838 = vpack.c.bf16 %v1806, %v1805
    %v1840 = vsel %vm171, %v1808, 0
    %v1843 = vsel %vm171, %v1809, 0
    %1845 = vmatpush.bf16.msra.mxu0 0
    %1846 = vmatpush.bf16.msra.mxu0 0
    %1847 = vmatpush.bf16.msra.mxu0 0
    %1848 = vmatpush.bf16.msra.mxu0 0
    %1849 = vmatpush.bf16.msra.mxu0 0
    %1850 = vmatpush.bf16.msra.mxu0 0
    %1851 = vmatpush.bf16.msra.mxu0 %v1838
    %1852 = vmatpush.bf16.msra.mxu0 %v1837
    %1853 = vmatmul.bf16.gmra.mxu0 %v1840
    %v1854 = vpop.f32.mrf.mxu0
    %v1855 = vadd.f32 0.0, %v1854
    %v1856 = vpop.f32.mrf.mxu0
    %v1857 = vadd.f32 0.0, %v1856
    %1858 = vmatmul.bf16.gmra.mxu0 %v1843
    %v1859 = vpop.f32.mrf.mxu0
    %v1860 = vadd.f32 0.0, %v1859
    %v1861 = vpop.f32.mrf.mxu0
    %v1862 = vadd.f32 0.0, %v1861
    %1863 = vdwg.mxu0
    %v1865 = vsel %vm171, %v1833, 0
    %v1868 = vsel %vm171, %v1834, 0
    %1870 = vmatpush.bf16.msra.mxu0 0
    %1871 = vmatpush.bf16.msra.mxu0 0
    %1872 = vmatpush.bf16.msra.mxu0 0
    %1873 = vmatpush.bf16.msra.mxu0 0
    %1874 = vmatpush.bf16.msra.mxu0 0
    %1875 = vmatpush.bf16.msra.mxu0 0
    %1876 = vmatpush.bf16.msra.mxu0 %v1836
    %1877 = vmatpush.bf16.msra.mxu0 %v1835
    %1878 = vmatmul.bf16.gmra.mxu0 %v1865
    %v1879 = vpop.f32.mrf.mxu0
    %v1880 = vadd.f32 %v1855, %v1879
    %v1881 = vpop.f32.mrf.mxu0
    %v1882 = vadd.f32 %v1857, %v1881
    %1883 = vmatmul.bf16.gmra.mxu0 %v1868
    %v1884 = vpop.f32.mrf.mxu0
    %v1885 = vadd.f32 %v1860, %v1884
    %v1886 = vpop.f32.mrf.mxu0
    %v1887 = vadd.f32 %v1862, %v1886
    %1888 = vdwg.mxu0
    %v1890 = vperm.slane %v1807, 0
    %v1892 = vadd.f32 %v1880, %v1890
    %v1893 = vadd.f32 %v1882, %v1890
    %v1894 = vadd.f32 %v1885, %v1890
    %v1895 = vadd.f32 %v1887, %v1890
    %v1896 = vtanh.pop %v1892
    %v1897 = vtanh.pop %v1893
    %v1898 = vtanh.pop %v1894
    %v1899 = vtanh.pop %v1895
    %v1900 = vsel %vm1489, %v1896, -1e+30
    %v1901 = vsel %vm1490, %v1897, -1e+30
    %v1902 = vsel %vm1556, %v1898, -1e+30
    %v1903 = vsel %vm1557, %v1899, -1e+30
    %v1904 = vsel %vm486, %v1900, -inf
    %v1905 = vsel %vm486, %v1901, -inf
    %v1906 = vmax.f32 %v1904, %v1905
    %v1907 = vrot.slane %v1906, 4
    %v1908 = vmax.f32 %v1906, %v1907
    %v1909 = vrot.slane %v1908, 2
    %v1910 = vmax.f32 %v1908, %v1909
    %v1911 = vrot.slane %v1910, 1
    %v1912 = vmax.f32 %v1910, %v1911
    %vm1913 = vcmp.ge.f32.partialorder %v1900, %v1912
    %vm1914 = vcmp.ge.f32.partialorder %v1901, %v1912
    %vm1915 = vcmp.gt.f32.partialorder %v1900, -5e+29
    %vm1916 = vcmp.gt.f32.partialorder %v1901, -5e+29
    %vm1917 = vmand %vm1913, %vm1915
    %vm1918 = vmand %vm1914, %vm1916
    %v1919 = vsel %vm1917, %v484, 16
    %v1920 = vsel %vm1918, %v485, 16
    %v1921 = vsel %vm486, %v1919, 2147483647
    %v1922 = vsel %vm486, %v1920, 2147483647
    %vm1923 = vcmp.lt.s32.totalorder %v1921, %v1922
    %v1924 = vsel %vm1923, %v1921, %v1922
    %v1925 = vrot.slane %v1924, 4
    %vm1926 = vcmp.lt.s32.totalorder %v1924, %v1925
    %v1927 = vsel %vm1926, %v1924, %v1925
    %v1928 = vrot.slane %v1927, 2
    %vm1929 = vcmp.lt.s32.totalorder %v1927, %v1928
    %v1930 = vsel %vm1929, %v1927, %v1928
    %v1931 = vrot.slane %v1930, 1
    %vm1932 = vcmp.lt.s32.totalorder %v1930, %v1931
    %v1933 = vsel %vm1932, %v1930, %v1931
    %vm1934 = vcmp.eq.s32.totalorder %v484, %v1933
    %vm1935 = vcmp.eq.s32.totalorder %v485, %v1933
    %vm1936 = vmand %vm1917, %vm1934
    %vm1937 = vmand %vm1918, %vm1935
    %v1938 = vsel %vm1936, 1, 0
    %v1939 = vsel %vm1937, 1, 0
    %v1940 = vcvt.s32.f32 %v1938
    %v1941 = vcvt.s32.f32 %v1939
    %v1942 = vadd.f32 %v1940, 0.0
    %v1943 = vadd.f32 %v1941, 0.0
    %v1944 = vsel %vm486, %v1902, -inf
    %v1945 = vsel %vm486, %v1903, -inf
    %v1946 = vmax.f32 %v1944, %v1945
    %v1947 = vrot.slane %v1946, 4
    %v1948 = vmax.f32 %v1946, %v1947
    %v1949 = vrot.slane %v1948, 2
    %v1950 = vmax.f32 %v1948, %v1949
    %v1951 = vrot.slane %v1950, 1
    %v1952 = vmax.f32 %v1950, %v1951
    %vm1953 = vcmp.ge.f32.partialorder %v1902, %v1952
    %vm1954 = vcmp.ge.f32.partialorder %v1903, %v1952
    %vm1955 = vcmp.gt.f32.partialorder %v1902, -5e+29
    %vm1956 = vcmp.gt.f32.partialorder %v1903, -5e+29
    %vm1957 = vmand %vm1953, %vm1955
    %vm1958 = vmand %vm1954, %vm1956
    %v1959 = vsel %vm1957, %v484, 16
    %v1960 = vsel %vm1958, %v485, 16
    %v1961 = vsel %vm486, %v1959, 2147483647
    %v1962 = vsel %vm486, %v1960, 2147483647
    %vm1963 = vcmp.lt.s32.totalorder %v1961, %v1962
    %v1964 = vsel %vm1963, %v1961, %v1962
    %v1965 = vrot.slane %v1964, 4
    %vm1966 = vcmp.lt.s32.totalorder %v1964, %v1965
    %v1967 = vsel %vm1966, %v1964, %v1965
    %v1968 = vrot.slane %v1967, 2
    %vm1969 = vcmp.lt.s32.totalorder %v1967, %v1968
    %v1970 = vsel %vm1969, %v1967, %v1968
    %v1971 = vrot.slane %v1970, 1
    %vm1972 = vcmp.lt.s32.totalorder %v1970, %v1971
    %v1973 = vsel %vm1972, %v1970, %v1971
    %vm1974 = vcmp.eq.s32.totalorder %v484, %v1973
    %vm1975 = vcmp.eq.s32.totalorder %v485, %v1973
    %vm1976 = vmand %vm1957, %vm1974
    %vm1977 = vmand %vm1958, %vm1975
    %v1978 = vsel %vm1976, 1, 0
    %v1979 = vsel %vm1977, 1, 0
    %v1980 = vcvt.s32.f32 %v1978
    %v1981 = vcvt.s32.f32 %v1979
    %v1982 = vadd.f32 %v1980, 0.0
    %v1983 = vadd.f32 %v1981, 0.0
    %1985 = vset.pattern.permute.xlu0 0
    %1986 = vperm.xlu0 %1985, %v1896
    %v1987 = vpop.permute.xlu0 %1986
    %1990 = vset.pattern.permute.xlu0 0
    %1991 = vperm.xlu0 %1990, %v1897
    %v1992 = vpop.permute.xlu0 %1991
    %1995 = vset.pattern.permute.xlu0 0
    %1996 = vperm.xlu0 %1995, %v1898
    %v1997 = vpop.permute.xlu0 %1996
    %2000 = vset.pattern.permute.xlu0 0
    %2001 = vperm.xlu0 %2000, %v1899
    %v2002 = vpop.permute.xlu0 %2001
    %v2004 = vmul.f32 %v1795, %v1987
    %v2005 = vmul.f32 %v1796, %v1992
    %v2006 = vmul.f32 %v1797, %v1997
    %v2007 = vmul.f32 %v1798, %v2002
    %2009 = vset.pattern.permute.xlu0 0
    %2010 = vperm.xlu0 %2009, %v1942
    %v2011 = vpop.permute.xlu0 %2010
    %2014 = vset.pattern.permute.xlu0 0
    %2015 = vperm.xlu0 %2014, %v1943
    %v2016 = vpop.permute.xlu0 %2015
    %2019 = vset.pattern.permute.xlu0 0
    %2020 = vperm.xlu0 %2019, %v1982
    %v2021 = vpop.permute.xlu0 %2020
    %2024 = vset.pattern.permute.xlu0 0
    %2025 = vperm.xlu0 %2024, %v1983
    %v2026 = vpop.permute.xlu0 %2025
    %v2028 = vmul.f32 %v2004, %v2011
    %v2029 = vmul.f32 %v2005, %v2016
    %v2030 = vmul.f32 %v2006, %v2021
    %v2031 = vmul.f32 %v2007, %v2026
    %v2032 = vsel %vm486, %v1942, 0.0
    %v2033 = vsel %vm486, %v1943, 0.0
    %v2034 = vadd.f32 %v2032, %v2033
    %v2035 = vrot.slane %v2034, 4
    %v2036 = vadd.f32 %v2034, %v2035
    %v2037 = vrot.slane %v2036, 2
    %v2038 = vadd.f32 %v2036, %v2037
    %v2039 = vrot.slane %v2038, 1
    %v2040 = vadd.f32 %v2038, %v2039
    %v2041 = vmax.f32 %v2040, 1.0
    %v2042 = vsel %vm171, %v2028, 0.0
    %v2043 = vsel %vm171, %v2029, 0.0
    %v2044 = vadd.f32 %v2042, %v2043
    %v2045 = vrot.slane %v2044, 4
    %v2046 = vadd.f32 %v2044, %v2045
    %v2047 = vrot.slane %v2046, 2
    %v2048 = vadd.f32 %v2046, %v2047
    %v2049 = vrot.slane %v2048, 1
    %v2050 = vadd.f32 %v2048, %v2049
    %2052 = vset.pattern.permute.xlu0 0
    %2053 = vperm.xlu0 %2052, %v2041
    %v2054 = vpop.permute.xlu0 %2053
    %v2056 = vrcp.pop %v2054
    %v2057 = vmul.f32 %v2054, %v2056
    %v2058 = vsub.f32 1.0, %v2057
    %v2059 = vmul.f32 %v2056, %v2058
    %v2060 = vadd.f32 %v2056, %v2059
    %vm2061 = vweird.f32 %v2054
    %vm2062 = vweird.f32 %v2056
    %vm2063 = vmor %vm2061, %vm2062
    %v2064 = vsel %vm2063, %v2056, %v2060
    %v2065 = vand.u32 2147483647, %v2054
    %vm2066 = vcmp.eq.f32.partialorder %v2065, 8.507059e+37
    %v2067 = vand.u32 %v2054, 2147483648
    %v2068 = vor.u32 1.1754944e-38, %v2067
    %v2069 = vsel %vm2066, %v2068, %v2064
    %v2070 = vmul.f32 %v2050, %v2069
    %vm2071 = vcmp.gt.f32.partialorder %v1942, 0.0
    %vm2072 = vcmp.gt.f32.partialorder %v1943, 0.0
    %v2073 = vsel %vm2071, 1, 0
    %v2074 = vsel %vm2072, 1, 0
    %2075 = vset.pattern.permute.xlu0 0
    %2076 = vperm.xlu0 %2075, %v2073
    %v2077 = vpop.permute.xlu0 %2076
    %2078 = vset.pattern.permute.xlu0 0
    %2079 = vperm.xlu0 %2078, %v2074
    %v2080 = vpop.permute.xlu0 %2079
    %vm2081 = vcmp.eq.s32.totalorder %v2077, 1
    %vm2082 = vcmp.eq.s32.totalorder %v2080, 1
    %v2083 = vsel %vm2081, %v2028, -1e+30
    %v2084 = vsel %vm2082, %v2029, -1e+30
    %v2085 = vsel %vm171, %v2083, -inf
    %v2086 = vsel %vm171, %v2084, -inf
    %v2087 = vmax.f32 %v2085, %v2086
    %v2088 = vrot.slane %v2087, 4
    %v2089 = vmax.f32 %v2087, %v2088
    %v2090 = vrot.slane %v2089, 2
    %v2091 = vmax.f32 %v2089, %v2090
    %v2092 = vrot.slane %v2091, 1
    %v2093 = vmax.f32 %v2091, %v2092
    %2095 = vrot.lane.b32.xlu0 %v2070, 32
    %v2096 = vpop.permute.xlu0 %2095
    %v2098 = vsel %vm171, %v2093, %v2096
    %v2099 = vsel %vm486, %v1982, 0.0
    %v2100 = vsel %vm486, %v1983, 0.0
    %v2101 = vadd.f32 %v2099, %v2100
    %v2102 = vrot.slane %v2101, 4
    %v2103 = vadd.f32 %v2101, %v2102
    %v2104 = vrot.slane %v2103, 2
    %v2105 = vadd.f32 %v2103, %v2104
    %v2106 = vrot.slane %v2105, 1
    %v2107 = vadd.f32 %v2105, %v2106
    %v2108 = vmax.f32 %v2107, 1.0
    %v2109 = vsel %vm171, %v2030, 0.0
    %v2110 = vsel %vm171, %v2031, 0.0
    %v2111 = vadd.f32 %v2109, %v2110
    %v2112 = vrot.slane %v2111, 4
    %v2113 = vadd.f32 %v2111, %v2112
    %v2114 = vrot.slane %v2113, 2
    %v2115 = vadd.f32 %v2113, %v2114
    %v2116 = vrot.slane %v2115, 1
    %v2117 = vadd.f32 %v2115, %v2116
    %2119 = vset.pattern.permute.xlu0 0
    %2120 = vperm.xlu0 %2119, %v2108
    %v2121 = vpop.permute.xlu0 %2120
    %v2123 = vrcp.pop %v2121
    %v2124 = vmul.f32 %v2121, %v2123
    %v2125 = vsub.f32 1.0, %v2124
    %v2126 = vmul.f32 %v2123, %v2125
    %v2127 = vadd.f32 %v2123, %v2126
    %vm2128 = vweird.f32 %v2121
    %vm2129 = vweird.f32 %v2123
    %vm2130 = vmor %vm2128, %vm2129
    %v2131 = vsel %vm2130, %v2123, %v2127
    %v2132 = vand.u32 2147483647, %v2121
    %vm2133 = vcmp.eq.f32.partialorder %v2132, 8.507059e+37
    %v2134 = vand.u32 %v2121, 2147483648
    %v2135 = vor.u32 1.1754944e-38, %v2134
    %v2136 = vsel %vm2133, %v2135, %v2131
    %v2137 = vmul.f32 %v2117, %v2136
    %vm2138 = vcmp.gt.f32.partialorder %v1982, 0.0
    %vm2139 = vcmp.gt.f32.partialorder %v1983, 0.0
    %v2140 = vsel %vm2138, 1, 0
    %v2141 = vsel %vm2139, 1, 0
    %2142 = vset.pattern.permute.xlu0 0
    %2143 = vperm.xlu0 %2142, %v2140
    %v2144 = vpop.permute.xlu0 %2143
    %2145 = vset.pattern.permute.xlu0 0
    %2146 = vperm.xlu0 %2145, %v2141
    %v2147 = vpop.permute.xlu0 %2146
    %vm2148 = vcmp.eq.s32.totalorder %v2144, 1
    %vm2149 = vcmp.eq.s32.totalorder %v2147, 1
    %v2150 = vsel %vm2148, %v2030, -1e+30
    %v2151 = vsel %vm2149, %v2031, -1e+30
    %v2152 = vsel %vm171, %v2150, -inf
    %v2153 = vsel %vm171, %v2151, -inf
    %v2154 = vmax.f32 %v2152, %v2153
    %v2155 = vrot.slane %v2154, 4
    %v2156 = vmax.f32 %v2154, %v2155
    %v2157 = vrot.slane %v2156, 2
    %v2158 = vmax.f32 %v2156, %v2157
    %v2159 = vrot.slane %v2158, 1
    %v2160 = vmax.f32 %v2158, %v2159
    %2162 = vrot.lane.b32.xlu0 %v2137, 32
    %v2163 = vpop.permute.xlu0 %2162
    %v2165 = vsel %vm171, %v2160, %v2163
    %v2167 = vrot.slane %v2165, 7
    %v2169 = vsel %vm1004, %v2098, %v2167
    %v2170 = vadd.f32 %v1588, %v2169
    %v2171 = vld [vmem:[%s20] sm:$0xff]
    %v2172 = vld [vmem:[%s20 + $0x8] sm:$0xff]
    %v2173 = vld [vmem:[%s20 + $0x10] sm:$0xff]
    %v2174 = vld [vmem:[%s20 + $0x18] sm:$0xff]
    %v2175 = vld [vmem:[%s20 + $0x20] sm:$0xff]
    %v2176 = vld [vmem:[%s20 + $0x28] sm:$0xff]
    %v2177 = vld [vmem:[%s20 + $0x30] sm:$0xff]
    %v2178 = vld [vmem:[%s20 + $0x38] sm:$0xff]
    %v2179 = vld [vmem:[%s21] sm:$0x1]
    %v2181 = vperm.slane %v2179, 0
    %v2184 = vsel %vm104, %v2170, 0
    %2186 = vmatpush.msra.mxu0 0.0
    %2187 = vmatpush.msra.mxu0 0.0
    %2188 = vmatpush.msra.mxu0 0.0
    %2189 = vmatpush.msra.mxu0 0.0
    %2190 = vmatpush.msra.mxu0 0.0
    %2191 = vmatpush.msra.mxu0 0.0
    %2192 = vmatpush.msra.mxu0 0.0
    %2193 = vmatpush.msra.mxu0 0.0
    %2194 = vmatpush.msra.mxu0 %v2178
    %2195 = vmatpush.msra.mxu0 %v2177
    %2196 = vmatpush.msra.mxu0 %v2176
    %2197 = vmatpush.msra.mxu0 %v2175
    %2198 = vmatpush.msra.mxu0 %v2174
    %2199 = vmatpush.msra.mxu0 %v2173
    %2200 = vmatpush.msra.mxu0 %v2172
    %2201 = vmatpush.msra.mxu0 %v2171
    %2202 = vmatmul.f32.gmra.mxu0 %v2184
    %v2203 = vpop.f32.mrf.mxu0
    %v2204 = vadd.f32 %v2181, %v2203
    %2205 = vdwg.mxu0
    %v2206 = vmax.f32 %v2204, 0.0
    %v2207 = vld [vmem:[%s22] sm:$0xff]
    %v2208 = vld [vmem:[%s22 + $0x8] sm:$0xff]
    %v2209 = vld [vmem:[%s22 + $0x10] sm:$0xff]
    %v2210 = vld [vmem:[%s22 + $0x18] sm:$0xff]
    %v2211 = vld [vmem:[%s23] sm:$0x1]
    %v2213 = vperm.slane %v2211, 0
    %v2216 = vsel %vm171, %v2206, 0
    %2218 = vmatpush.msra.mxu0 0.0
    %2219 = vmatpush.msra.mxu0 0.0
    %2220 = vmatpush.msra.mxu0 0.0
    %2221 = vmatpush.msra.mxu0 0.0
    %2222 = vmatpush.msra.mxu0 0.0
    %2223 = vmatpush.msra.mxu0 0.0
    %2224 = vmatpush.msra.mxu0 0.0
    %2225 = vmatpush.msra.mxu0 0.0
    %2226 = vmatpush.msra.mxu0 0.0
    %2227 = vmatpush.msra.mxu0 0.0
    %2228 = vmatpush.msra.mxu0 0.0
    %2229 = vmatpush.msra.mxu0 0.0
    %2230 = vmatpush.msra.mxu0 %v2210
    %2231 = vmatpush.msra.mxu0 %v2209
    %2232 = vmatpush.msra.mxu0 %v2208
    %2233 = vmatpush.msra.mxu0 %v2207
    %2234 = vmatmul.f32.gmra.mxu0 %v2216
    %v2235 = vpop.f32.mrf.mxu0
    %v2236 = vadd.f32 %v2213, %v2235
    %2237 = vdwg.mxu0
    %v2238 = vmax.f32 %v2236, 0.0
    %vm2239 = vcmask 123904
    %2240 = vst.msk [vmem:[#allocation6] sm:$0x3] %vm2239, %v2238
    %v2241 = vld [vmem:[%s24] sm:$0xff]
    %v2242 = vld [vmem:[%s24 + $0x8] sm:$0xff]
    %v2243 = vld [vmem:[#allocation5] sm:$0x1]
    %v2245 = vperm.slane %v2243, 0
    %vm2247 = vcmask 130048
    %v2249 = vsel %vm2247, %v2238, 0
    %2251 = vmatpush.msra.mxu0 0.0
    %2252 = vmatpush.msra.mxu0 0.0
    %2253 = vmatpush.msra.mxu0 0.0
    %2254 = vmatpush.msra.mxu0 0.0
    %2255 = vmatpush.msra.mxu0 0.0
    %2256 = vmatpush.msra.mxu0 0.0
    %2257 = vmatpush.msra.mxu0 0.0
    %2258 = vmatpush.msra.mxu0 0.0
    %2259 = vmatpush.msra.mxu0 0.0
    %2260 = vmatpush.msra.mxu0 0.0
    %2261 = vmatpush.msra.mxu0 0.0
    %2262 = vmatpush.msra.mxu0 0.0
    %2263 = vmatpush.msra.mxu0 0.0
    %2264 = vmatpush.msra.mxu0 0.0
    %2265 = vmatpush.msra.mxu0 %v2242
    %2266 = vmatpush.msra.mxu0 %v2241
    %2267 = vmatmul.f32.gmra.mxu0 %v2249
    %v2268 = vpop.f32.mrf.mxu0
    %v2269 = vadd.f32 %v2245, %v2268
    %2270 = vdwg.mxu0
    %vm2271 = vcmask 1024
    %2272 = vst.msk [vmem:[%s27] sm:$0x3] %vm2271, %v2269
    // Predicated region
    $region106: #{tpu_custom_call.1} parent=1 // pred_check
      _
    $region107: #{tpu_custom_call.1} parent=1 // pred_check_branch
      %2274 = sbr.rel (0) target = $region109
    $region108: #{tpu_custom_call.1} parent=1 // pred_region
      %2276 = vsyncadd [#allocation7], 0
      %s2278 = sshll.u32 [#allocation6], 4
      %s2279 = int_to_ptr.vmem [resolvable:$true] %s2278
      %s2280 = sshll.u32 %s26, 4
      %s2281 = int_to_ptr.hbm [resolvable:$true] %s2280
      %2283 = dma.vmem_to_hbm [thread:$0]  %s2279, 32, %s2281, [#allocation7]
    $region109: #{tpu_custom_call.1} parent=1 // pred_fallthru
      _
    // Predicated region
    $region110: #{tpu_custom_call.1} parent=1 // pred_check
      _
    $region111: #{tpu_custom_call.1} parent=1 // pred_check_branch
      %2285 = sbr.rel (0) target = $region113
    $region112: #{tpu_custom_call.1} parent=1 // pred_region
      _
    $region113: #{tpu_custom_call.1} parent=1 // pred_fallthru
      _
    // Predicated region
    $region114: #{tpu_custom_call.1} parent=1 // pred_check
      _
    $region115: #{tpu_custom_call.1} parent=1 // pred_check_branch
      %2287 = sbr.rel (0) target = $region117
    $region116: #{tpu_custom_call.1} parent=1 // pred_region
      %2289 = dma.done [#allocation7], 32
    $region117: #{tpu_custom_call.1} parent=1 // pred_fallthru
      _
    // Predicated region
    $region118: #{tpu_custom_call.1} parent=1 // pred_check
      _
    $region119: #{tpu_custom_call.1} parent=1 // pred_check_branch
      %2291 = sbr.rel (0) target = $region121
    $region120: #{tpu_custom_call.1} parent=1 // pred_region
      _
    $region121: #{tpu_custom_call.1} parent=1 // pred_fallthru
      _
    %2292 = vsyncpa [#allocation7], 1

</llo_original>
